<compile_context>
chip_gen: v5e
topology: v5e:2x2
jax: 0.10.0
libtpu: 0.0.40
codegen_flags: <defaults>
</compile_context>

<pallas_src>
import functools
import math

import jax
import jax.numpy as jnp
import numpy as np
from jax import lax
from jax.experimental import pallas as pl
from jax.experimental.pallas import tpu as pltpu

SQRT_2_OVER_PI = math.sqrt(2.0 / math.pi)
LN_EPS = 1e-5          # torch.nn.LayerNorm default
MASK_VALUE = -1e9      # matches masked_fill_(-1000000000.0)


def _gelu(x):
    # exact tanh-approx gelu from the PyTorch source (x**3 written as x*x*x)
    x3 = x * x * x
    return 0.5 * x * (1.0 + jnp.tanh(SQRT_2_OVER_PI * (x + 0.044715 * x3)))


def _layernorm(x, g, b):
    mu = jnp.mean(x, axis=-1, keepdims=True)
    var = jnp.mean((x - mu) ** 2, axis=-1, keepdims=True)
    return (x - mu) * lax.rsqrt(var + LN_EPS) * g + b


def transformer_block_kernel(valid_len_ref,                     # scalar prefetch (SMEM)
                             xq_ref, xkv_ref,
                             ln1g_ref, ln1b_ref,
                             wq_ref, bq_ref,
                             wkv_ref, bkv_ref,
                             wo_ref, bo_ref,
                             ln2g_ref, ln2b_ref,
                             w1_ref, b1_ref,
                             w2_ref, b2_ref,
                             out_ref,
                             q_scr, m_scr, l_scr, acc_scr,
                             *, n_heads, d_k, kv_tile):
    b = pl.program_id(0)
    ki = pl.program_id(2)
    nk = pl.num_programs(2)

    H = n_heads * d_k
    scale = jnp.float32(1.0 / math.sqrt(d_k))

    # ---- once per (batch, q-tile): project the query tile, reset softmax state ----
    @pl.when(ki == 0)
    def _init():
        xq = xq_ref[0]                                              # (tq, H) f32
        nxq = _layernorm(xq, ln1g_ref[...], ln1b_ref[...])
        q = jnp.dot(nxq.astype(jnp.bfloat16), wq_ref[...],
                    preferred_element_type=jnp.float32) + bq_ref[...]
        q = q * scale                                               # fold 1/sqrt(d_k) into q
        tq = q.shape[0]
        q_scr[...] = q.reshape(tq, n_heads, d_k).transpose(1, 0, 2).astype(jnp.bfloat16)
        m_scr[...] = jnp.full(m_scr.shape, -jnp.inf, dtype=m_scr.dtype)
        l_scr[...] = jnp.zeros(l_scr.shape, dtype=l_scr.dtype)
        acc_scr[...] = jnp.zeros(acc_scr.shape, dtype=acc_scr.dtype)

    # ---- every kv step: project this kv tile and run the online-softmax update ----
    xkv = xkv_ref[0]                                                # (tkv, H) f32
    nxkv = _layernorm(xkv, ln1g_ref[...], ln1b_ref[...])
    kv = (jnp.dot(nxkv.astype(jnp.bfloat16), wkv_ref[...],
                  preferred_element_type=jnp.float32) + bkv_ref[...]).astype(jnp.bfloat16)
    tkv = kv.shape[0]
    k = kv[:, :H].reshape(tkv, n_heads, d_k).transpose(1, 0, 2)     # (nh, tkv, dk)
    v = kv[:, H:].reshape(tkv, n_heads, d_k).transpose(1, 0, 2)     # (nh, tkv, dk)

    s = jnp.einsum("hqd,hkd->hqk", q_scr[...], k,
                   preferred_element_type=jnp.float32)              # (nh, tq, tkv) f32

    # key-padding mask from a (1, 1, tkv) iota, broadcast by the select
    vl = valid_len_ref[b]
    key_pos = ki * kv_tile + lax.broadcasted_iota(jnp.int32, (1, 1, tkv), 2)
    s = jnp.where(key_pos >= vl, jnp.float32(MASK_VALUE), s)

    m_prev = m_scr[...]
    m_new = jnp.maximum(m_prev, jnp.max(s, axis=-1, keepdims=True))
    alpha = jnp.exp(m_prev - m_new)
    p = jnp.exp(s - m_new)
    l_scr[...] = alpha * l_scr[...] + jnp.sum(p, axis=-1, keepdims=True)
    acc_scr[...] = alpha * acc_scr[...] + jnp.einsum(
        "hqk,hkd->hqd", p.astype(jnp.bfloat16), v, preferred_element_type=jnp.float32)
    m_scr[...] = m_new

    # ---- last kv step: normalize, output proj, residual, LN2, FFN, residual ----
    @pl.when(ki == nk - 1)
    def _finalize():
        inv_l = pl.reciprocal(l_scr[...], approx=True)
        ctx = acc_scr[...] * inv_l                                  # (nh, tq, dk) f32
        tq = ctx.shape[1]
        ctx = ctx.transpose(1, 0, 2).reshape(tq, H)                 # merge heads
        attn_out = jnp.dot(ctx.astype(jnp.bfloat16), wo_ref[...],
                           preferred_element_type=jnp.float32) + bo_ref[...]
        x1 = xq_ref[0] + attn_out                                   # residual 1

        nx2 = _layernorm(x1, ln2g_ref[...], ln2b_ref[...])
        h1 = jnp.dot(nx2.astype(jnp.bfloat16), w1_ref[...],
                     preferred_element_type=jnp.float32) + b1_ref[...]   # (tq, I)
        h1 = _gelu(h1)
        ffn = jnp.dot(h1.astype(jnp.bfloat16), w2_ref[...],
                      preferred_element_type=jnp.float32) + b2_ref[...]
        out_ref[0] = x1 + ffn                                       # residual 2


def _pick_tile(S, target):
    """Largest multiple-of-8 divisor of S that is <= target (or S itself)."""
    if S <= target:
        return S
    best = None
    for t in range(8, target + 1, 8):
        if S % t == 0:
            best = t
    return best if best is not None else S


def _vmem_limit_bytes():
    """Per-generation VMEM limit: ~3/4 of physical capacity, capped at 100 MiB."""
    cap = None
    try:
        cap = getattr(pltpu.get_tpu_info(), "vmem_capacity_bytes", None)
    except Exception:
        cap = None
    if not cap:
        cap = 64 * 1024 * 1024          # conservative (v7x-sized) fallback
    return int(min(cap * 3 // 4, 100 * 1024 * 1024))


def transformer_block(x, valid_len, params, *, n_heads, q_tile=256, kv_tile=256):
    """x: (B, S, H) fp32; valid_len: (B,) int32 (keys >= valid_len[b] are masked)."""
    B, S, H = x.shape
    assert H % n_heads == 0
    d_k = H // n_heads
    I = params["w1"].shape[1]

    tq = _pick_tile(S, q_tile)
    tkv = _pick_tile(S, kv_tile)
    assert S % tq == 0 and S % tkv == 0
    nq, nk = S // tq, S // tkv

    # matmul weights cast to bf16 at the boundary; K/V fused into one (H, 2H) matmul
    wq = params["wq"].astype(jnp.bfloat16)
    wkv = jnp.concatenate([params["wk"], params["wv"]], axis=1).astype(jnp.bfloat16)
    bkv = jnp.concatenate([params["bk"], params["bv"]], axis=1)          # (1, 2H) f32
    wo = params["wo"].astype(jnp.bfloat16)
    w1 = params["w1"].astype(jnp.bfloat16)
    w2 = params["w2"].astype(jnp.bfloat16)

    kernel = functools.partial(transformer_block_kernel,
                               n_heads=n_heads, d_k=d_k, kv_tile=tkv)

    flops = 2 * B * S * (4 * H * H + 2 * S * H + 2 * H * I)
    transcendentals = B * S * I + 2 * B * n_heads * S * S
    bytes_accessed = (8 * B * S * H                       # x in + out (f32)
                      + 2 * (4 * H * H + 2 * H * I)       # bf16 weights
                      + 4 * (8 * H + I)                    # f32 biases + LN params
                      + 4 * B)                             # valid_len

    def build(buffer_weights_once):
        def rep(shape):
            n = len(shape)
            idx = lambda b, qi, ki, vl, _n=n: (0,) * _n
            if buffer_weights_once:
                # grid-invariant operand: single buffer is enough
                return pl.BlockSpec(shape, idx, pipeline_mode=pl.Buffered(1))
            return pl.BlockSpec(shape, idx)

        grid_spec = pltpu.PrefetchScalarGridSpec(
            num_scalar_prefetch=1,
            grid=(B, nq, nk),
            in_specs=[
                pl.BlockSpec((1, tq, H), lambda b, qi, ki, vl: (b, qi, 0)),   # x (query rows)
                pl.BlockSpec((1, tkv, H), lambda b, qi, ki, vl: (b, ki, 0)),  # x (key/value rows)
                rep((1, H)), rep((1, H)),                   # ln1 gamma / beta
                rep((H, H)), rep((1, H)),                   # W_Q, b_Q
                rep((H, 2 * H)), rep((1, 2 * H)),           # fused W_KV, b_KV
                rep((H, H)), rep((1, H)),                   # W_O, b_O
                rep((1, H)), rep((1, H)),                   # ln2 gamma / beta
                rep((H, I)), rep((1, I)),                   # fc1
                rep((I, H)), rep((1, H)),                   # fc2
            ],
            out_specs=pl.BlockSpec((1, tq, H), lambda b, qi, ki, vl: (b, qi, 0)),
            scratch_shapes=[
                pltpu.VMEM((n_heads, tq, d_k), jnp.bfloat16),   # q tile (head-split, pre-scaled)
                pltpu.VMEM((n_heads, tq, 1), jnp.float32),      # m (running max)
                pltpu.VMEM((n_heads, tq, 1), jnp.float32),      # l (running denominator)
                pltpu.VMEM((n_heads, tq, d_k), jnp.float32),    # acc (unnormalized context)
            ],
        )
        return pl.pallas_call(
            kernel,
            out_shape=jax.ShapeDtypeStruct((B, S, H), jnp.float32),
            grid_spec=grid_spec,
            compiler_params=pltpu.CompilerParams(
                dimension_semantics=("parallel", "parallel", "arbitrary"),
                vmem_limit_bytes=_vmem_limit_bytes()),
            cost_estimate=pl.CostEstimate(
                flops=flops, transcendentals=transcendentals,
                bytes_accessed=bytes_accessed),
        )

    args = (valid_len.astype(jnp.int32), x, x,
            params["ln1_g"], params["ln1_b"],
            wq, params["bq"], wkv, bkv, wo, params["bo"],
            params["ln2_g"], params["ln2_b"],
            w1, params["b1"], w2, params["b2"])

    try:
        return build(buffer_weights_once=True)(*args)
    except Exception:
        # pipeline_mode=pl.Buffered(1) unsupported on this jax version/backend:
        # fall back to default (double-buffered) replicated weights.
        return build(buffer_weights_once=False)(*args)


# ---------------- pure-JAX fp32 reference (for correctness check) ----------------
def reference_block(x, valid_len, p, *, n_heads):
    B, S, H = x.shape
    d_k = H // n_heads
    attn_mask = jnp.broadcast_to(
        jnp.arange(S)[None, None, :] >= valid_len[:, None, None], (B, S, S))
    nx = _layernorm(x, p["ln1_g"], p["ln1_b"])
    q = nx @ p["wq"] + p["bq"]
    k = nx @ p["wk"] + p["bk"]
    v = nx @ p["wv"] + p["bv"]
    q = q.reshape(B, S, n_heads, d_k).transpose(0, 2, 1, 3)
    k = k.reshape(B, S, n_heads, d_k).transpose(0, 2, 1, 3)
    v = v.reshape(B, S, n_heads, d_k).transpose(0, 2, 1, 3)
    scores = jnp.einsum("bhqd,bhkd->bhqk", q, k) / math.sqrt(d_k)
    scores = jnp.where(attn_mask[:, None, :, :], MASK_VALUE, scores)
    attn = jax.nn.softmax(scores, axis=-1)
    ctx = jnp.einsum("bhqk,bhkd->bhqd", attn, v).transpose(0, 2, 1, 3).reshape(B, S, H)
    x1 = x + (ctx @ p["wo"] + p["bo"])
    nx2 = _layernorm(x1, p["ln2_g"], p["ln2_b"])
    ffn = _gelu(nx2 @ p["w1"] + p["b1"]) @ p["w2"] + p["b2"]
    return x1 + ffn


if __name__ == "__main__":
    # small shapes; q_tile/kv_tile=8 forces nq=nk=2 so the online-softmax
    # multi-tile path (and partial / fully-masked kv tiles) is exercised.
    B, S, H, n_heads, I = 2, 16, 32, 4, 64

    key = jax.random.PRNGKey(0)
    ks = jax.random.split(key, 13)

    def w(k, shape):
        return (0.02 * jax.random.normal(k, shape)).astype(jnp.float32)

    params = {
        "ln1_g": jnp.ones((1, H), jnp.float32),
        "ln1_b": jnp.zeros((1, H), jnp.float32),
        "wq": w(ks[0], (H, H)), "bq": w(ks[1], (1, H)),
        "wk": w(ks[2], (H, H)), "bk": w(ks[3], (1, H)),
        "wv": w(ks[4], (H, H)), "bv": w(ks[5], (1, H)),
        "wo": w(ks[6], (H, H)), "bo": w(ks[7], (1, H)),
        "ln2_g": jnp.ones((1, H), jnp.float32),
        "ln2_b": jnp.zeros((1, H), jnp.float32),
        "w1": w(ks[8], (H, I)), "b1": w(ks[9], (1, I)),
        "w2": w(ks[10], (I, H)), "b2": w(ks[11], (1, H)),
    }

    x = jax.random.normal(ks[12], (B, S, H), jnp.float32)

    # key-padding: batch 0 attends to all 16 keys, batch 1 only to the first 6
    # (second kv tile of batch 1 is fully masked, first is partially masked)
    valid_len = jnp.array([16, 6], jnp.int32)

    out = transformer_block(x, valid_len, params, n_heads=n_heads, q_tile=8, kv_tile=8)
    out = jax.block_until_ready(out)

    ref = reference_block(x, valid_len, params, n_heads=n_heads)
    # bf16 matmuls + approx reciprocal -> loosened tolerance vs fp32 reference
    np.testing.assert_allclose(np.asarray(out), np.asarray(ref), rtol=2e-2, atol=2e-2)

    print("KERNEL_OK")
</pallas_src>

<mosaic_0001>
module attributes {stable_mosaic.version = 11 : i64} {
  func.func @transformer_block_kernel(%arg0: i32, %arg1: i32, %arg2: i32, %arg3: memref<2xi32, #tpu.memory_space<smem>>, %arg4: memref<1x8x32xf32, #tpu.memory_space<vmem>>, %arg5: memref<1x8x32xf32, #tpu.memory_space<vmem>>, %arg6: memref<1x32xf32, #tpu.memory_space<vmem>>, %arg7: memref<1x32xf32, #tpu.memory_space<vmem>>, %arg8: memref<32x32xbf16, #tpu.memory_space<vmem>>, %arg9: memref<1x32xf32, #tpu.memory_space<vmem>>, %arg10: memref<32x64xbf16, #tpu.memory_space<vmem>>, %arg11: memref<1x64xf32, #tpu.memory_space<vmem>>, %arg12: memref<32x32xbf16, #tpu.memory_space<vmem>>, %arg13: memref<1x32xf32, #tpu.memory_space<vmem>>, %arg14: memref<1x32xf32, #tpu.memory_space<vmem>>, %arg15: memref<1x32xf32, #tpu.memory_space<vmem>>, %arg16: memref<32x64xbf16, #tpu.memory_space<vmem>>, %arg17: memref<1x64xf32, #tpu.memory_space<vmem>>, %arg18: memref<64x32xbf16, #tpu.memory_space<vmem>>, %arg19: memref<1x32xf32, #tpu.memory_space<vmem>>, %arg20: memref<1x8x32xf32, #tpu.memory_space<vmem>>, %arg21: memref<4x8x8xbf16, #tpu.memory_space<vmem>>, %arg22: memref<4x8x1xf32, #tpu.memory_space<vmem>>, %arg23: memref<4x8x1xf32, #tpu.memory_space<vmem>>, %arg24: memref<4x8x8xf32, #tpu.memory_space<vmem>>) attributes {dimension_semantics = [#tpu.dimension_semantics<parallel>, #tpu.dimension_semantics<parallel>, #tpu.dimension_semantics<arbitrary>], iteration_bounds = array<i64: 2, 2, 2>, scalar_prefetch = 1 : i64, scratch_operands = 4 : i64, tpu.core_type = #tpu.core_type<tc>, window_params = [{transform_indices = @transform_0, window_bounds = array<i64: 1, 8, 32>}, {transform_indices = @transform_1, window_bounds = array<i64: 1, 8, 32>}, {pipeline_mode = #tpu.pipeline_mode<synchronous>, transform_indices = @transform_2, window_bounds = array<i64: 1, 32>}, {pipeline_mode = #tpu.pipeline_mode<synchronous>, transform_indices = @transform_3, window_bounds = array<i64: 1, 32>}, {pipeline_mode = #tpu.pipeline_mode<synchronous>, transform_indices = @transform_4, window_bounds = array<i64: 32, 32>}, {pipeline_mode = #tpu.pipeline_mode<synchronous>, transform_indices = @transform_5, window_bounds = array<i64: 1, 32>}, {pipeline_mode = #tpu.pipeline_mode<synchronous>, transform_indices = @transform_6, window_bounds = array<i64: 32, 64>}, {pipeline_mode = #tpu.pipeline_mode<synchronous>, transform_indices = @transform_7, window_bounds = array<i64: 1, 64>}, {pipeline_mode = #tpu.pipeline_mode<synchronous>, transform_indices = @transform_8, window_bounds = array<i64: 32, 32>}, {pipeline_mode = #tpu.pipeline_mode<synchronous>, transform_indices = @transform_9, window_bounds = array<i64: 1, 32>}, {pipeline_mode = #tpu.pipeline_mode<synchronous>, transform_indices = @transform_10, window_bounds = array<i64: 1, 32>}, {pipeline_mode = #tpu.pipeline_mode<synchronous>, transform_indices = @transform_11, window_bounds = array<i64: 1, 32>}, {pipeline_mode = #tpu.pipeline_mode<synchronous>, transform_indices = @transform_12, window_bounds = array<i64: 32, 64>}, {pipeline_mode = #tpu.pipeline_mode<synchronous>, transform_indices = @transform_13, window_bounds = array<i64: 1, 64>}, {pipeline_mode = #tpu.pipeline_mode<synchronous>, transform_indices = @transform_14, window_bounds = array<i64: 64, 32>}, {pipeline_mode = #tpu.pipeline_mode<synchronous>, transform_indices = @transform_15, window_bounds = array<i64: 1, 32>}, {transform_indices = @transform_16, window_bounds = array<i64: 1, 8, 32>}]} {
    %c0_i32 = arith.constant 0 : i32
    %0 = arith.cmpi eq, %arg2, %c0_i32 : i32
    %1 = arith.extui %0 : i1 to i32
    %cst = arith.constant 0.353553385 : f32
    %c0_i32_0 = arith.constant 0 : i32
    %2 = arith.cmpi ne, %1, %c0_i32_0 : i32
    scf.if %2 {
      %c0_44 = arith.constant 0 : index
      %c0_45 = arith.constant 0 : index
      %c0_46 = arith.constant 0 : index
      %82 = vector.load %arg4[%c0_44, %c0_45, %c0_46] : memref<1x8x32xf32, #tpu.memory_space<vmem>>, vector<1x8x32xf32>
      %83 = vector.shape_cast %82 : vector<1x8x32xf32> to vector<8x32xf32>
      %c0_47 = arith.constant 0 : index
      %c0_48 = arith.constant 0 : index
      %84 = vector.load %arg6[%c0_47, %c0_48] : memref<1x32xf32, #tpu.memory_space<vmem>>, vector<1x32xf32>
      %c0_49 = arith.constant 0 : index
      %c0_50 = arith.constant 0 : index
      %85 = vector.load %arg7[%c0_49, %c0_50] : memref<1x32xf32, #tpu.memory_space<vmem>>, vector<1x32xf32>
      %cst_51 = arith.constant dense<0.000000e+00> : vector<8xf32>
      %86 = vector.multi_reduction <add>, %83, %cst_51 [1] : vector<8x32xf32> to vector<8xf32>
      %87 = vector.shape_cast %86 : vector<8xf32> to vector<8x1xf32>
      %cst_52 = arith.constant 3.200000e+01 : f32
      %88 = vector.broadcast %cst_52 : f32 to vector<8x1xf32>
      %89 = arith.divf %87, %88 : vector<8x1xf32>
      %90 = vector.broadcast %89 : vector<8x1xf32> to vector<8x32xf32>
      %91 = arith.subf %83, %90 : vector<8x32xf32>
      %92 = arith.mulf %91, %91 : vector<8x32xf32>
      %cst_53 = arith.constant dense<0.000000e+00> : vector<8xf32>
      %93 = vector.multi_reduction <add>, %92, %cst_53 [1] : vector<8x32xf32> to vector<8xf32>
      %94 = vector.shape_cast %93 : vector<8xf32> to vector<8x1xf32>
      %cst_54 = arith.constant 3.200000e+01 : f32
      %95 = vector.broadcast %cst_54 : f32 to vector<8x1xf32>
      %96 = arith.divf %94, %95 : vector<8x1xf32>
      %97 = vector.broadcast %89 : vector<8x1xf32> to vector<8x32xf32>
      %98 = arith.subf %83, %97 : vector<8x32xf32>
      %cst_55 = arith.constant 9.99999974E-6 : f32
      %99 = vector.broadcast %cst_55 : f32 to vector<8x1xf32>
      %100 = arith.addf %96, %99 : vector<8x1xf32>
      %101 = math.rsqrt %100 : vector<8x1xf32>
      %102 = vector.broadcast %101 : vector<8x1xf32> to vector<8x32xf32>
      %103 = arith.mulf %98, %102 : vector<8x32xf32>
      %104 = vector.broadcast %84 : vector<1x32xf32> to vector<8x32xf32>
      %105 = arith.mulf %103, %104 : vector<8x32xf32>
      %106 = vector.broadcast %85 : vector<1x32xf32> to vector<8x32xf32>
      %107 = arith.addf %105, %106 : vector<8x32xf32>
      %108 = arith.truncf %107 : vector<8x32xf32> to vector<8x32xbf16>
      %c0_56 = arith.constant 0 : index
      %c0_57 = arith.constant 0 : index
      %109 = vector.load %arg8[%c0_56, %c0_57] : memref<32x32xbf16, #tpu.memory_space<vmem>>, vector<32x32xbf16>
      %cst_58 = arith.constant dense<0.000000e+00> : vector<8x32xf32>
      %110 = tpu.matmul %108, %109, %cst_58 {dimension_numbers = #tpu.dot_dimension_numbers<[1], [0], [0], [1], [0, 0, 1, 1], [], []>} : vector<8x32xbf16>, vector<32x32xbf16>, vector<8x32xf32> -> vector<8x32xf32>
      %c0_59 = arith.constant 0 : index
      %c0_60 = arith.constant 0 : index
      %111 = vector.load %arg9[%c0_59, %c0_60] : memref<1x32xf32, #tpu.memory_space<vmem>>, vector<1x32xf32>
      %112 = vector.broadcast %111 : vector<1x32xf32> to vector<8x32xf32>
      %113 = arith.addf %110, %112 : vector<8x32xf32>
      %114 = vector.broadcast %cst : f32 to vector<8x32xf32>
      %115 = arith.mulf %113, %114 : vector<8x32xf32>
      %116 = vector.shape_cast %115 : vector<8x32xf32> to vector<8x4x8xf32>
      %117 = tpu.transpose %116, [1, 0, 2] : vector<8x4x8xf32> -> vector<4x8x8xf32>
      %118 = arith.truncf %117 : vector<4x8x8xf32> to vector<4x8x8xbf16>
      %c0_61 = arith.constant 0 : index
      %c0_62 = arith.constant 0 : index
      %c0_63 = arith.constant 0 : index
      %119 = vector.load %arg21[%c0_61, %c0_62, %c0_63] : memref<4x8x8xbf16, #tpu.memory_space<vmem>>, vector<4x8x8xbf16>
      tpu.vector_store %arg21[%c0_61, %c0_62, %c0_63], %118 {strides = array<i32>} : memref<4x8x8xbf16, #tpu.memory_space<vmem>>, vector<4x8x8xbf16>,
      %cst_64 = arith.constant 0xFF800000 : f32
      %120 = vector.broadcast %cst_64 : f32 to vector<4x8x1xf32>
      %c0_65 = arith.constant 0 : index
      %c0_66 = arith.constant 0 : index
      %c0_67 = arith.constant 0 : index
      %121 = vector.load %arg22[%c0_65, %c0_66, %c0_67] : memref<4x8x1xf32, #tpu.memory_space<vmem>>, vector<4x8x1xf32>
      tpu.vector_store %arg22[%c0_65, %c0_66, %c0_67], %120 {strides = array<i32>} : memref<4x8x1xf32, #tpu.memory_space<vmem>>, vector<4x8x1xf32>,
      %cst_68 = arith.constant 0.000000e+00 : f32
      %122 = vector.broadcast %cst_68 : f32 to vector<4x8x1xf32>
      %c0_69 = arith.constant 0 : index
      %c0_70 = arith.constant 0 : index
      %c0_71 = arith.constant 0 : index
      %123 = vector.load %arg23[%c0_69, %c0_70, %c0_71] : memref<4x8x1xf32, #tpu.memory_space<vmem>>, vector<4x8x1xf32>
      tpu.vector_store %arg23[%c0_69, %c0_70, %c0_71], %122 {strides = array<i32>} : memref<4x8x1xf32, #tpu.memory_space<vmem>>, vector<4x8x1xf32>,
      %cst_72 = arith.constant 0.000000e+00 : f32
      %124 = vector.broadcast %cst_72 : f32 to vector<4x8x8xf32>
      %c0_73 = arith.constant 0 : index
      %c0_74 = arith.constant 0 : index
      %c0_75 = arith.constant 0 : index
      %125 = vector.load %arg24[%c0_73, %c0_74, %c0_75] : memref<4x8x8xf32, #tpu.memory_space<vmem>>, vector<4x8x8xf32>
      tpu.vector_store %arg24[%c0_73, %c0_74, %c0_75], %124 {strides = array<i32>} : memref<4x8x8xf32, #tpu.memory_space<vmem>>, vector<4x8x8xf32>,
    } else {
    }
    %c0 = arith.constant 0 : index
    %c0_1 = arith.constant 0 : index
    %c0_2 = arith.constant 0 : index
    %3 = vector.load %arg5[%c0, %c0_1, %c0_2] : memref<1x8x32xf32, #tpu.memory_space<vmem>>, vector<1x8x32xf32>
    %4 = vector.shape_cast %3 : vector<1x8x32xf32> to vector<8x32xf32>
    %c0_3 = arith.constant 0 : index
    %c0_4 = arith.constant 0 : index
    %5 = vector.load %arg6[%c0_3, %c0_4] : memref<1x32xf32, #tpu.memory_space<vmem>>, vector<1x32xf32>
    %c0_5 = arith.constant 0 : index
    %c0_6 = arith.constant 0 : index
    %6 = vector.load %arg7[%c0_5, %c0_6] : memref<1x32xf32, #tpu.memory_space<vmem>>, vector<1x32xf32>
    %cst_7 = arith.constant dense<0.000000e+00> : vector<8xf32>
    %7 = vector.multi_reduction <add>, %4, %cst_7 [1] : vector<8x32xf32> to vector<8xf32>
    %8 = vector.shape_cast %7 : vector<8xf32> to vector<8x1xf32>
    %cst_8 = arith.constant 3.200000e+01 : f32
    %9 = vector.broadcast %cst_8 : f32 to vector<8x1xf32>
    %10 = arith.divf %8, %9 : vector<8x1xf32>
    %11 = vector.broadcast %10 : vector<8x1xf32> to vector<8x32xf32>
    %12 = arith.subf %4, %11 : vector<8x32xf32>
    %13 = arith.mulf %12, %12 : vector<8x32xf32>
    %cst_9 = arith.constant dense<0.000000e+00> : vector<8xf32>
    %14 = vector.multi_reduction <add>, %13, %cst_9 [1] : vector<8x32xf32> to vector<8xf32>
    %15 = vector.shape_cast %14 : vector<8xf32> to vector<8x1xf32>
    %cst_10 = arith.constant 3.200000e+01 : f32
    %16 = vector.broadcast %cst_10 : f32 to vector<8x1xf32>
    %17 = arith.divf %15, %16 : vector<8x1xf32>
    %18 = vector.broadcast %10 : vector<8x1xf32> to vector<8x32xf32>
    %19 = arith.subf %4, %18 : vector<8x32xf32>
    %cst_11 = arith.constant 9.99999974E-6 : f32
    %20 = vector.broadcast %cst_11 : f32 to vector<8x1xf32>
    %21 = arith.addf %17, %20 : vector<8x1xf32>
    %22 = math.rsqrt %21 : vector<8x1xf32>
    %23 = vector.broadcast %22 : vector<8x1xf32> to vector<8x32xf32>
    %24 = arith.mulf %19, %23 : vector<8x32xf32>
    %25 = vector.broadcast %5 : vector<1x32xf32> to vector<8x32xf32>
    %26 = arith.mulf %24, %25 : vector<8x32xf32>
    %27 = vector.broadcast %6 : vector<1x32xf32> to vector<8x32xf32>
    %28 = arith.addf %26, %27 : vector<8x32xf32>
    %29 = arith.truncf %28 : vector<8x32xf32> to vector<8x32xbf16>
    %c0_12 = arith.constant 0 : index
    %c0_13 = arith.constant 0 : index
    %30 = vector.load %arg10[%c0_12, %c0_13] : memref<32x64xbf16, #tpu.memory_space<vmem>>, vector<32x64xbf16>
    %cst_14 = arith.constant dense<0.000000e+00> : vector<8x64xf32>
    %31 = tpu.matmul %29, %30, %cst_14 {dimension_numbers = #tpu.dot_dimension_numbers<[1], [0], [0], [1], [0, 0, 1, 1], [], []>} : vector<8x32xbf16>, vector<32x64xbf16>, vector<8x64xf32> -> vector<8x64xf32>
    %c0_15 = arith.constant 0 : index
    %c0_16 = arith.constant 0 : index
    %32 = vector.load %arg11[%c0_15, %c0_16] : memref<1x64xf32, #tpu.memory_space<vmem>>, vector<1x64xf32>
    %33 = vector.broadcast %32 : vector<1x64xf32> to vector<8x64xf32>
    %34 = arith.addf %31, %33 : vector<8x64xf32>
    %35 = arith.truncf %34 : vector<8x64xf32> to vector<8x64xbf16>
    %36 = vector.extract_strided_slice %35 {offsets = [0, 0], sizes = [8, 32], strides = [1, 1]} : vector<8x64xbf16> to vector<8x32xbf16>
    %37 = vector.shape_cast %36 : vector<8x32xbf16> to vector<8x4x8xbf16>
    %38 = tpu.transpose %37, [1, 0, 2] : vector<8x4x8xbf16> -> vector<4x8x8xbf16>
    %39 = vector.extract_strided_slice %35 {offsets = [0, 32], sizes = [8, 32], strides = [1, 1]} : vector<8x64xbf16> to vector<8x32xbf16>
    %40 = vector.shape_cast %39 : vector<8x32xbf16> to vector<8x4x8xbf16>
    %41 = tpu.transpose %40, [1, 0, 2] : vector<8x4x8xbf16> -> vector<4x8x8xbf16>
    %c0_17 = arith.constant 0 : index
    %c0_18 = arith.constant 0 : index
    %c0_19 = arith.constant 0 : index
    %42 = vector.load %arg21[%c0_17, %c0_18, %c0_19] : memref<4x8x8xbf16, #tpu.memory_space<vmem>>, vector<4x8x8xbf16>
    "tpu.trace_start"() <{level = 10 : i32, message = "hqd,hkd->hqk"}> : () -> ()
    %cst_20 = arith.constant dense<0.000000e+00> : vector<4x8x8xf32>
    %43 = tpu.matmul %42, %38, %cst_20 {dimension_numbers = #tpu.dot_dimension_numbers<[2], [2], [1], [1], [0, 0, 0, 1, 1, 1], [0], [0]>} : vector<4x8x8xbf16>, vector<4x8x8xbf16>, vector<4x8x8xf32> -> vector<4x8x8xf32>
    "tpu.trace_stop"() : () -> ()
    %44 = arith.index_cast %arg0 : i32 to index
    %45 = memref.load %arg3[%44] : memref<2xi32, #tpu.memory_space<smem>>
    %c8_i32 = arith.constant 8 : i32
    %46 = arith.muli %arg2, %c8_i32 : i32
    %47 = tpu.iota {dimensions = array<i32: 2>} : vector<1x1x8xi32>
    %48 = vector.broadcast %46 : i32 to vector<1x1x8xi32>
    %49 = arith.addi %48, %47 : vector<1x1x8xi32>
    %50 = vector.broadcast %45 : i32 to vector<1x1x8xi32>
    %51 = arith.cmpi sge, %49, %50 : vector<1x1x8xi32>
    %cst_21 = arith.constant -1.000000e+09 : f32
    %52 = vector.shape_cast %51 : vector<1x1x8xi1> to vector<1x1x8xi1>
    %53 = vector.broadcast %52 : vector<1x1x8xi1> to vector<4x8x8xi1>
    %54 = vector.broadcast %cst_21 : f32 to vector<4x8x8xf32>
    %55 = arith.select %53, %54, %43 : vector<4x8x8xi1>, vector<4x8x8xf32>
    %c0_22 = arith.constant 0 : index
    %c0_23 = arith.constant 0 : index
    %c0_24 = arith.constant 0 : index
    %56 = vector.load %arg22[%c0_22, %c0_23, %c0_24] : memref<4x8x1xf32, #tpu.memory_space<vmem>>, vector<4x8x1xf32>
    %cst_25 = arith.constant dense<0xFF800000> : vector<4x8xf32>
    %57 = vector.multi_reduction <maximumf>, %55, %cst_25 [2] : vector<4x8x8xf32> to vector<4x8xf32>
    %58 = vector.shape_cast %57 : vector<4x8xf32> to vector<4x8x1xf32>
    %59 = arith.maximumf %56, %58 : vector<4x8x1xf32>
    %60 = arith.subf %56, %59 : vector<4x8x1xf32>
    %61 = math.exp %60 : vector<4x8x1xf32>
    %62 = vector.broadcast %59 : vector<4x8x1xf32> to vector<4x8x8xf32>
    %63 = arith.subf %55, %62 : vector<4x8x8xf32>
    %64 = math.exp %63 : vector<4x8x8xf32>
    %c0_26 = arith.constant 0 : index
    %c0_27 = arith.constant 0 : index
    %c0_28 = arith.constant 0 : index
    %65 = vector.load %arg23[%c0_26, %c0_27, %c0_28] : memref<4x8x1xf32, #tpu.memory_space<vmem>>, vector<4x8x1xf32>
    %66 = arith.mulf %61, %65 : vector<4x8x1xf32>
    %cst_29 = arith.constant dense<0.000000e+00> : vector<4x8xf32>
    %67 = vector.multi_reduction <add>, %64, %cst_29 [2] : vector<4x8x8xf32> to vector<4x8xf32>
    %68 = vector.shape_cast %67 : vector<4x8xf32> to vector<4x8x1xf32>
    %69 = arith.addf %66, %68 : vector<4x8x1xf32>
    %c0_30 = arith.constant 0 : index
    %c0_31 = arith.constant 0 : index
    %c0_32 = arith.constant 0 : index
    %70 = vector.load %arg23[%c0_30, %c0_31, %c0_32] : memref<4x8x1xf32, #tpu.memory_space<vmem>>, vector<4x8x1xf32>
    tpu.vector_store %arg23[%c0_30, %c0_31, %c0_32], %69 {strides = array<i32>} : memref<4x8x1xf32, #tpu.memory_space<vmem>>, vector<4x8x1xf32>,
    %c0_33 = arith.constant 0 : index
    %c0_34 = arith.constant 0 : index
    %c0_35 = arith.constant 0 : index
    %71 = vector.load %arg24[%c0_33, %c0_34, %c0_35] : memref<4x8x8xf32, #tpu.memory_space<vmem>>, vector<4x8x8xf32>
    %72 = vector.broadcast %61 : vector<4x8x1xf32> to vector<4x8x8xf32>
    %73 = arith.mulf %72, %71 : vector<4x8x8xf32>
    %74 = arith.truncf %64 : vector<4x8x8xf32> to vector<4x8x8xbf16>
    "tpu.trace_start"() <{level = 10 : i32, message = "hqk,hkd->hqd"}> : () -> ()
    %cst_36 = arith.constant dense<0.000000e+00> : vector<4x8x8xf32>
    %75 = tpu.matmul %74, %41, %cst_36 {dimension_numbers = #tpu.dot_dimension_numbers<[2], [1], [1], [2], [0, 0, 0, 1, 1, 2], [0], [0]>} : vector<4x8x8xbf16>, vector<4x8x8xbf16>, vector<4x8x8xf32> -> vector<4x8x8xf32>
    "tpu.trace_stop"() : () -> ()
    %76 = arith.addf %73, %75 : vector<4x8x8xf32>
    %c0_37 = arith.constant 0 : index
    %c0_38 = arith.constant 0 : index
    %c0_39 = arith.constant 0 : index
    %77 = vector.load %arg24[%c0_37, %c0_38, %c0_39] : memref<4x8x8xf32, #tpu.memory_space<vmem>>, vector<4x8x8xf32>
    tpu.vector_store %arg24[%c0_37, %c0_38, %c0_39], %76 {strides = array<i32>} : memref<4x8x8xf32, #tpu.memory_space<vmem>>, vector<4x8x8xf32>,
    %c0_40 = arith.constant 0 : index
    %c0_41 = arith.constant 0 : index
    %c0_42 = arith.constant 0 : index
    %78 = vector.load %arg22[%c0_40, %c0_41, %c0_42] : memref<4x8x1xf32, #tpu.memory_space<vmem>>, vector<4x8x1xf32>
    tpu.vector_store %arg22[%c0_40, %c0_41, %c0_42], %59 {strides = array<i32>} : memref<4x8x1xf32, #tpu.memory_space<vmem>>, vector<4x8x1xf32>,
    %c1_i32 = arith.constant 1 : i32
    %79 = arith.cmpi eq, %arg2, %c1_i32 : i32
    %80 = arith.extui %79 : i1 to i32
    %c0_i32_43 = arith.constant 0 : i32
    %81 = arith.cmpi ne, %80, %c0_i32_43 : i32
    scf.if %81 {
      %c0_44 = arith.constant 0 : index
      %c0_45 = arith.constant 0 : index
      %c0_46 = arith.constant 0 : index
      %82 = vector.load %arg23[%c0_44, %c0_45, %c0_46] : memref<4x8x1xf32, #tpu.memory_space<vmem>>, vector<4x8x1xf32>
      %83 = tpu.reciprocal %82 {approx = true} : vector<4x8x1xf32> -> vector<4x8x1xf32>
      %c0_47 = arith.constant 0 : index
      %c0_48 = arith.constant 0 : index
      %c0_49 = arith.constant 0 : index
      %84 = vector.load %arg24[%c0_47, %c0_48, %c0_49] : memref<4x8x8xf32, #tpu.memory_space<vmem>>, vector<4x8x8xf32>
      %85 = vector.broadcast %83 : vector<4x8x1xf32> to vector<4x8x8xf32>
      %86 = arith.mulf %84, %85 : vector<4x8x8xf32>
      %87 = tpu.transpose %86, [1, 0, 2] : vector<4x8x8xf32> -> vector<8x4x8xf32>
      %88 = vector.shape_cast %87 : vector<8x4x8xf32> to vector<8x32xf32>
      %89 = arith.truncf %88 : vector<8x32xf32> to vector<8x32xbf16>
      %c0_50 = arith.constant 0 : index
      %c0_51 = arith.constant 0 : index
      %90 = vector.load %arg12[%c0_50, %c0_51] : memref<32x32xbf16, #tpu.memory_space<vmem>>, vector<32x32xbf16>
      %cst_52 = arith.constant dense<0.000000e+00> : vector<8x32xf32>
      %91 = tpu.matmul %89, %90, %cst_52 {dimension_numbers = #tpu.dot_dimension_numbers<[1], [0], [0], [1], [0, 0, 1, 1], [], []>} : vector<8x32xbf16>, vector<32x32xbf16>, vector<8x32xf32> -> vector<8x32xf32>
      %c0_53 = arith.constant 0 : index
      %c0_54 = arith.constant 0 : index
      %92 = vector.load %arg13[%c0_53, %c0_54] : memref<1x32xf32, #tpu.memory_space<vmem>>, vector<1x32xf32>
      %93 = vector.broadcast %92 : vector<1x32xf32> to vector<8x32xf32>
      %94 = arith.addf %91, %93 : vector<8x32xf32>
      %c0_55 = arith.constant 0 : index
      %c0_56 = arith.constant 0 : index
      %c0_57 = arith.constant 0 : index
      %95 = vector.load %arg4[%c0_55, %c0_56, %c0_57] : memref<1x8x32xf32, #tpu.memory_space<vmem>>, vector<1x8x32xf32>
      %96 = vector.shape_cast %95 : vector<1x8x32xf32> to vector<8x32xf32>
      %97 = arith.addf %96, %94 : vector<8x32xf32>
      %c0_58 = arith.constant 0 : index
      %c0_59 = arith.constant 0 : index
      %98 = vector.load %arg14[%c0_58, %c0_59] : memref<1x32xf32, #tpu.memory_space<vmem>>, vector<1x32xf32>
      %c0_60 = arith.constant 0 : index
      %c0_61 = arith.constant 0 : index
      %99 = vector.load %arg15[%c0_60, %c0_61] : memref<1x32xf32, #tpu.memory_space<vmem>>, vector<1x32xf32>
      %cst_62 = arith.constant dense<0.000000e+00> : vector<8xf32>
      %100 = vector.multi_reduction <add>, %97, %cst_62 [1] : vector<8x32xf32> to vector<8xf32>
      %101 = vector.shape_cast %100 : vector<8xf32> to vector<8x1xf32>
      %cst_63 = arith.constant 3.200000e+01 : f32
      %102 = vector.broadcast %cst_63 : f32 to vector<8x1xf32>
      %103 = arith.divf %101, %102 : vector<8x1xf32>
      %104 = vector.broadcast %103 : vector<8x1xf32> to vector<8x32xf32>
      %105 = arith.subf %97, %104 : vector<8x32xf32>
      %106 = arith.mulf %105, %105 : vector<8x32xf32>
      %cst_64 = arith.constant dense<0.000000e+00> : vector<8xf32>
      %107 = vector.multi_reduction <add>, %106, %cst_64 [1] : vector<8x32xf32> to vector<8xf32>
      %108 = vector.shape_cast %107 : vector<8xf32> to vector<8x1xf32>
      %cst_65 = arith.constant 3.200000e+01 : f32
      %109 = vector.broadcast %cst_65 : f32 to vector<8x1xf32>
      %110 = arith.divf %108, %109 : vector<8x1xf32>
      %111 = vector.broadcast %103 : vector<8x1xf32> to vector<8x32xf32>
      %112 = arith.subf %97, %111 : vector<8x32xf32>
      %cst_66 = arith.constant 9.99999974E-6 : f32
      %113 = vector.broadcast %cst_66 : f32 to vector<8x1xf32>
      %114 = arith.addf %110, %113 : vector<8x1xf32>
      %115 = math.rsqrt %114 : vector<8x1xf32>
      %116 = vector.broadcast %115 : vector<8x1xf32> to vector<8x32xf32>
      %117 = arith.mulf %112, %116 : vector<8x32xf32>
      %118 = vector.broadcast %98 : vector<1x32xf32> to vector<8x32xf32>
      %119 = arith.mulf %117, %118 : vector<8x32xf32>
      %120 = vector.broadcast %99 : vector<1x32xf32> to vector<8x32xf32>
      %121 = arith.addf %119, %120 : vector<8x32xf32>
      %122 = arith.truncf %121 : vector<8x32xf32> to vector<8x32xbf16>
      %c0_67 = arith.constant 0 : index
      %c0_68 = arith.constant 0 : index
      %123 = vector.load %arg16[%c0_67, %c0_68] : memref<32x64xbf16, #tpu.memory_space<vmem>>, vector<32x64xbf16>
      %cst_69 = arith.constant dense<0.000000e+00> : vector<8x64xf32>
      %124 = tpu.matmul %122, %123, %cst_69 {dimension_numbers = #tpu.dot_dimension_numbers<[1], [0], [0], [1], [0, 0, 1, 1], [], []>} : vector<8x32xbf16>, vector<32x64xbf16>, vector<8x64xf32> -> vector<8x64xf32>
      %c0_70 = arith.constant 0 : index
      %c0_71 = arith.constant 0 : index
      %125 = vector.load %arg17[%c0_70, %c0_71] : memref<1x64xf32, #tpu.memory_space<vmem>>, vector<1x64xf32>
      %126 = vector.broadcast %125 : vector<1x64xf32> to vector<8x64xf32>
      %127 = arith.addf %124, %126 : vector<8x64xf32>
      %128 = arith.mulf %127, %127 : vector<8x64xf32>
      %129 = arith.mulf %128, %127 : vector<8x64xf32>
      %cst_72 = arith.constant 5.000000e-01 : f32
      %130 = vector.broadcast %cst_72 : f32 to vector<8x64xf32>
      %131 = arith.mulf %130, %127 : vector<8x64xf32>
      %cst_73 = arith.constant 4.471500e-02 : f32
      %132 = vector.broadcast %cst_73 : f32 to vector<8x64xf32>
      %133 = arith.mulf %132, %129 : vector<8x64xf32>
      %134 = arith.addf %127, %133 : vector<8x64xf32>
      %cst_74 = arith.constant 0.797884583 : f32
      %135 = vector.broadcast %cst_74 : f32 to vector<8x64xf32>
      %136 = arith.mulf %135, %134 : vector<8x64xf32>
      %137 = math.tanh %136 : vector<8x64xf32>
      %cst_75 = arith.constant 1.000000e+00 : f32
      %138 = vector.broadcast %cst_75 : f32 to vector<8x64xf32>
      %139 = arith.addf %138, %137 : vector<8x64xf32>
      %140 = arith.mulf %131, %139 : vector<8x64xf32>
      %141 = arith.truncf %140 : vector<8x64xf32> to vector<8x64xbf16>
      %c0_76 = arith.constant 0 : index
      %c0_77 = arith.constant 0 : index
      %142 = vector.load %arg18[%c0_76, %c0_77] : memref<64x32xbf16, #tpu.memory_space<vmem>>, vector<64x32xbf16>
      %cst_78 = arith.constant dense<0.000000e+00> : vector<8x32xf32>
      %143 = tpu.matmul %141, %142, %cst_78 {dimension_numbers = #tpu.dot_dimension_numbers<[1], [0], [0], [1], [0, 0, 1, 1], [], []>} : vector<8x64xbf16>, vector<64x32xbf16>, vector<8x32xf32> -> vector<8x32xf32>
      %c0_79 = arith.constant 0 : index
      %c0_80 = arith.constant 0 : index
      %144 = vector.load %arg19[%c0_79, %c0_80] : memref<1x32xf32, #tpu.memory_space<vmem>>, vector<1x32xf32>
      %145 = vector.broadcast %144 : vector<1x32xf32> to vector<8x32xf32>
      %146 = arith.addf %143, %145 : vector<8x32xf32>
      %147 = arith.addf %97, %146 : vector<8x32xf32>
      %c0_81 = arith.constant 0 : index
      %c0_82 = arith.constant 0 : index
      %c0_83 = arith.constant 0 : index
      %148 = vector.load %arg20[%c0_81, %c0_82, %c0_83] : memref<1x8x32xf32, #tpu.memory_space<vmem>>, vector<1x8x32xf32>
      %149 = vector.shape_cast %148 : vector<1x8x32xf32> to vector<8x32xf32>
      %150 = vector.shape_cast %147 : vector<8x32xf32> to vector<1x8x32xf32>
      tpu.vector_store %arg20[%c0_81, %c0_82, %c0_83], %150 {strides = array<i32>} : memref<1x8x32xf32, #tpu.memory_space<vmem>>, vector<1x8x32xf32>,
    } else {
    }
    return
  }
  func.func @transform_0(%arg0: i32, %arg1: i32, %arg2: i32, %arg3: memref<2xi32, #tpu.memory_space<smem>>) -> (i32, i32, i32) {
    %c0_i32 = arith.constant 0 : i32
    %c0_i32_0 = arith.constant 0 : i32
    return %arg0, %arg1, %c0_i32 : i32, i32, i32
  }
  func.func @transform_1(%arg0: i32, %arg1: i32, %arg2: i32, %arg3: memref<2xi32, #tpu.memory_space<smem>>) -> (i32, i32, i32) {
    %c0_i32 = arith.constant 0 : i32
    %c0_i32_0 = arith.constant 0 : i32
    return %arg0, %arg2, %c0_i32 : i32, i32, i32
  }
  func.func @transform_2(%arg0: i32, %arg1: i32, %arg2: i32, %arg3: memref<2xi32, #tpu.memory_space<smem>>) -> (i32, i32) {
    %c0_i32 = arith.constant 0 : i32
    %c0_i32_0 = arith.constant 0 : i32
    %c0_i32_1 = arith.constant 0 : i32
    return %c0_i32, %c0_i32_0 : i32, i32
  }
  func.func @transform_3(%arg0: i32, %arg1: i32, %arg2: i32, %arg3: memref<2xi32, #tpu.memory_space<smem>>) -> (i32, i32) {
    %c0_i32 = arith.constant 0 : i32
    %c0_i32_0 = arith.constant 0 : i32
    %c0_i32_1 = arith.constant 0 : i32
    return %c0_i32, %c0_i32_0 : i32, i32
  }
  func.func @transform_4(%arg0: i32, %arg1: i32, %arg2: i32, %arg3: memref<2xi32, #tpu.memory_space<smem>>) -> (i32, i32) {
    %c0_i32 = arith.constant 0 : i32
    %c0_i32_0 = arith.constant 0 : i32
    %c0_i32_1 = arith.constant 0 : i32
    return %c0_i32, %c0_i32_0 : i32, i32
  }
  func.func @transform_5(%arg0: i32, %arg1: i32, %arg2: i32, %arg3: memref<2xi32, #tpu.memory_space<smem>>) -> (i32, i32) {
    %c0_i32 = arith.constant 0 : i32
    %c0_i32_0 = arith.constant 0 : i32
    %c0_i32_1 = arith.constant 0 : i32
    return %c0_i32, %c0_i32_0 : i32, i32
  }
  func.func @transform_6(%arg0: i32, %arg1: i32, %arg2: i32, %arg3: memref<2xi32, #tpu.memory_space<smem>>) -> (i32, i32) {
    %c0_i32 = arith.constant 0 : i32
    %c0_i32_0 = arith.constant 0 : i32
    %c0_i32_1 = arith.constant 0 : i32
    return %c0_i32, %c0_i32_0 : i32, i32
  }
  func.func @transform_7(%arg0: i32, %arg1: i32, %arg2: i32, %arg3: memref<2xi32, #tpu.memory_space<smem>>) -> (i32, i32) {
    %c0_i32 = arith.constant 0 : i32
    %c0_i32_0 = arith.constant 0 : i32
    %c0_i32_1 = arith.constant 0 : i32
    return %c0_i32, %c0_i32_0 : i32, i32
  }
  func.func @transform_8(%arg0: i32, %arg1: i32, %arg2: i32, %arg3: memref<2xi32, #tpu.memory_space<smem>>) -> (i32, i32) {
    %c0_i32 = arith.constant 0 : i32
    %c0_i32_0 = arith.constant 0 : i32
    %c0_i32_1 = arith.constant 0 : i32
    return %c0_i32, %c0_i32_0 : i32, i32
  }
  func.func @transform_9(%arg0: i32, %arg1: i32, %arg2: i32, %arg3: memref<2xi32, #tpu.memory_space<smem>>) -> (i32, i32) {
    %c0_i32 = arith.constant 0 : i32
    %c0_i32_0 = arith.constant 0 : i32
    %c0_i32_1 = arith.constant 0 : i32
    return %c0_i32, %c0_i32_0 : i32, i32
  }
  func.func @transform_10(%arg0: i32, %arg1: i32, %arg2: i32, %arg3: memref<2xi32, #tpu.memory_space<smem>>) -> (i32, i32) {
    %c0_i32 = arith.constant 0 : i32
    %c0_i32_0 = arith.constant 0 : i32
    %c0_i32_1 = arith.constant 0 : i32
    return %c0_i32, %c0_i32_0 : i32, i32
  }
  func.func @transform_11(%arg0: i32, %arg1: i32, %arg2: i32, %arg3: memref<2xi32, #tpu.memory_space<smem>>) -> (i32, i32) {
    %c0_i32 = arith.constant 0 : i32
    %c0_i32_0 = arith.constant 0 : i32
    %c0_i32_1 = arith.constant 0 : i32
    return %c0_i32, %c0_i32_0 : i32, i32
  }
  func.func @transform_12(%arg0: i32, %arg1: i32, %arg2: i32, %arg3: memref<2xi32, #tpu.memory_space<smem>>) -> (i32, i32) {
    %c0_i32 = arith.constant 0 : i32
    %c0_i32_0 = arith.constant 0 : i32
    %c0_i32_1 = arith.constant 0 : i32
    return %c0_i32, %c0_i32_0 : i32, i32
  }
  func.func @transform_13(%arg0: i32, %arg1: i32, %arg2: i32, %arg3: memref<2xi32, #tpu.memory_space<smem>>) -> (i32, i32) {
    %c0_i32 = arith.constant 0 : i32
    %c0_i32_0 = arith.constant 0 : i32
    %c0_i32_1 = arith.constant 0 : i32
    return %c0_i32, %c0_i32_0 : i32, i32
  }
  func.func @transform_14(%arg0: i32, %arg1: i32, %arg2: i32, %arg3: memref<2xi32, #tpu.memory_space<smem>>) -> (i32, i32) {
    %c0_i32 = arith.constant 0 : i32
    %c0_i32_0 = arith.constant 0 : i32
    %c0_i32_1 = arith.constant 0 : i32
    return %c0_i32, %c0_i32_0 : i32, i32
  }
  func.func @transform_15(%arg0: i32, %arg1: i32, %arg2: i32, %arg3: memref<2xi32, #tpu.memory_space<smem>>) -> (i32, i32) {
    %c0_i32 = arith.constant 0 : i32
    %c0_i32_0 = arith.constant 0 : i32
    %c0_i32_1 = arith.constant 0 : i32
    return %c0_i32, %c0_i32_0 : i32, i32
  }
  func.func @transform_16(%arg0: i32, %arg1: i32, %arg2: i32, %arg3: memref<2xi32, #tpu.memory_space<smem>>) -> (i32, i32, i32) {
    %c0_i32 = arith.constant 0 : i32
    %c0_i32_0 = arith.constant 0 : i32
    return %arg0, %arg1, %c0_i32 : i32, i32, i32
  }
}

module attributes {stable_mosaic.version = 11 : i64} {
  func.func @transformer_block_kernel(%arg0: i32, %arg1: i32, %arg2: i32, %arg3: memref<2xi32, #tpu.memory_space<smem>>, %arg4: memref<1x8x32xf32, #tpu.memory_space<vmem>>, %arg5: memref<1x8x32xf32, #tpu.memory_space<vmem>>, %arg6: memref<1x32xf32, #tpu.memory_space<vmem>>, %arg7: memref<1x32xf32, #tpu.memory_space<vmem>>, %arg8: memref<32x32xbf16, #tpu.memory_space<vmem>>, %arg9: memref<1x32xf32, #tpu.memory_space<vmem>>, %arg10: memref<32x64xbf16, #tpu.memory_space<vmem>>, %arg11: memref<1x64xf32, #tpu.memory_space<vmem>>, %arg12: memref<32x32xbf16, #tpu.memory_space<vmem>>, %arg13: memref<1x32xf32, #tpu.memory_space<vmem>>, %arg14: memref<1x32xf32, #tpu.memory_space<vmem>>, %arg15: memref<1x32xf32, #tpu.memory_space<vmem>>, %arg16: memref<32x64xbf16, #tpu.memory_space<vmem>>, %arg17: memref<1x64xf32, #tpu.memory_space<vmem>>, %arg18: memref<64x32xbf16, #tpu.memory_space<vmem>>, %arg19: memref<1x32xf32, #tpu.memory_space<vmem>>, %arg20: memref<1x8x32xf32, #tpu.memory_space<vmem>>, %arg21: memref<4x8x8xbf16, #tpu.memory_space<vmem>>, %arg22: memref<4x8x1xf32, #tpu.memory_space<vmem>>, %arg23: memref<4x8x1xf32, #tpu.memory_space<vmem>>, %arg24: memref<4x8x8xf32, #tpu.memory_space<vmem>>) attributes {dimension_semantics = [#tpu.dimension_semantics<parallel>, #tpu.dimension_semantics<parallel>, #tpu.dimension_semantics<arbitrary>], iteration_bounds = array<i64: 2, 2, 2>, scalar_prefetch = 1 : i64, scratch_operands = 4 : i64, tpu.core_type = #tpu.core_type<tc>, window_params = [{transform_indices = @transform_0, window_bounds = array<i64: 1, 8, 32>}, {transform_indices = @transform_1, window_bounds = array<i64: 1, 8, 32>}, {pipeline_mode = #tpu.pipeline_mode<synchronous>, transform_indices = @transform_2, window_bounds = array<i64: 1, 32>}, {pipeline_mode = #tpu.pipeline_mode<synchronous>, transform_indices = @transform_3, window_bounds = array<i64: 1, 32>}, {pipeline_mode = #tpu.pipeline_mode<synchronous>, transform_indices = @transform_4, window_bounds = array<i64: 32, 32>}, {pipeline_mode = #tpu.pipeline_mode<synchronous>, transform_indices = @transform_5, window_bounds = array<i64: 1, 32>}, {pipeline_mode = #tpu.pipeline_mode<synchronous>, transform_indices = @transform_6, window_bounds = array<i64: 32, 64>}, {pipeline_mode = #tpu.pipeline_mode<synchronous>, transform_indices = @transform_7, window_bounds = array<i64: 1, 64>}, {pipeline_mode = #tpu.pipeline_mode<synchronous>, transform_indices = @transform_8, window_bounds = array<i64: 32, 32>}, {pipeline_mode = #tpu.pipeline_mode<synchronous>, transform_indices = @transform_9, window_bounds = array<i64: 1, 32>}, {pipeline_mode = #tpu.pipeline_mode<synchronous>, transform_indices = @transform_10, window_bounds = array<i64: 1, 32>}, {pipeline_mode = #tpu.pipeline_mode<synchronous>, transform_indices = @transform_11, window_bounds = array<i64: 1, 32>}, {pipeline_mode = #tpu.pipeline_mode<synchronous>, transform_indices = @transform_12, window_bounds = array<i64: 32, 64>}, {pipeline_mode = #tpu.pipeline_mode<synchronous>, transform_indices = @transform_13, window_bounds = array<i64: 1, 64>}, {pipeline_mode = #tpu.pipeline_mode<synchronous>, transform_indices = @transform_14, window_bounds = array<i64: 64, 32>}, {pipeline_mode = #tpu.pipeline_mode<synchronous>, transform_indices = @transform_15, window_bounds = array<i64: 1, 32>}, {transform_indices = @transform_16, window_bounds = array<i64: 1, 8, 32>}]} {
    %c0_i32 = arith.constant 0 : i32
    %0 = arith.cmpi eq, %arg2, %c0_i32 : i32
    %1 = arith.extui %0 : i1 to i32
    %cst = arith.constant 0.353553385 : f32
    %c0_i32_0 = arith.constant 0 : i32
    %2 = arith.cmpi ne, %1, %c0_i32_0 : i32
    scf.if %2 {
      %c0_44 = arith.constant 0 : index
      %c0_45 = arith.constant 0 : index
      %c0_46 = arith.constant 0 : index
      %82 = vector.load %arg4[%c0_44, %c0_45, %c0_46] : memref<1x8x32xf32, #tpu.memory_space<vmem>>, vector<1x8x32xf32>
      %83 = vector.shape_cast %82 : vector<1x8x32xf32> to vector<8x32xf32>
      %c0_47 = arith.constant 0 : index
      %c0_48 = arith.constant 0 : index
      %84 = vector.load %arg6[%c0_47, %c0_48] : memref<1x32xf32, #tpu.memory_space<vmem>>, vector<1x32xf32>
      %c0_49 = arith.constant 0 : index
      %c0_50 = arith.constant 0 : index
      %85 = vector.load %arg7[%c0_49, %c0_50] : memref<1x32xf32, #tpu.memory_space<vmem>>, vector<1x32xf32>
      %cst_51 = arith.constant dense<0.000000e+00> : vector<8xf32>
      %86 = vector.multi_reduction <add>, %83, %cst_51 [1] : vector<8x32xf32> to vector<8xf32>
      %87 = vector.shape_cast %86 : vector<8xf32> to vector<8x1xf32>
      %cst_52 = arith.constant 3.200000e+01 : f32
      %88 = vector.broadcast %cst_52 : f32 to vector<8x1xf32>
      %89 = arith.divf %87, %88 : vector<8x1xf32>
      %90 = vector.broadcast %89 : vector<8x1xf32> to vector<8x32xf32>
      %91 = arith.subf %83, %90 : vector<8x32xf32>
      %92 = arith.mulf %91, %91 : vector<8x32xf32>
      %cst_53 = arith.constant dense<0.000000e+00> : vector<8xf32>
      %93 = vector.multi_reduction <add>, %92, %cst_53 [1] : vector<8x32xf32> to vector<8xf32>
      %94 = vector.shape_cast %93 : vector<8xf32> to vector<8x1xf32>
      %cst_54 = arith.constant 3.200000e+01 : f32
      %95 = vector.broadcast %cst_54 : f32 to vector<8x1xf32>
      %96 = arith.divf %94, %95 : vector<8x1xf32>
      %97 = vector.broadcast %89 : vector<8x1xf32> to vector<8x32xf32>
      %98 = arith.subf %83, %97 : vector<8x32xf32>
      %cst_55 = arith.constant 9.99999974E-6 : f32
      %99 = vector.broadcast %cst_55 : f32 to vector<8x1xf32>
      %100 = arith.addf %96, %99 : vector<8x1xf32>
      %101 = math.rsqrt %100 : vector<8x1xf32>
      %102 = vector.broadcast %101 : vector<8x1xf32> to vector<8x32xf32>
      %103 = arith.mulf %98, %102 : vector<8x32xf32>
      %104 = vector.broadcast %84 : vector<1x32xf32> to vector<8x32xf32>
      %105 = arith.mulf %103, %104 : vector<8x32xf32>
      %106 = vector.broadcast %85 : vector<1x32xf32> to vector<8x32xf32>
      %107 = arith.addf %105, %106 : vector<8x32xf32>
      %108 = arith.truncf %107 : vector<8x32xf32> to vector<8x32xbf16>
      %c0_56 = arith.constant 0 : index
      %c0_57 = arith.constant 0 : index
      %109 = vector.load %arg8[%c0_56, %c0_57] : memref<32x32xbf16, #tpu.memory_space<vmem>>, vector<32x32xbf16>
      %cst_58 = arith.constant dense<0.000000e+00> : vector<8x32xf32>
      %110 = tpu.matmul %108, %109, %cst_58 {dimension_numbers = #tpu.dot_dimension_numbers<[1], [0], [0], [1], [0, 0, 1, 1], [], []>} : vector<8x32xbf16>, vector<32x32xbf16>, vector<8x32xf32> -> vector<8x32xf32>
      %c0_59 = arith.constant 0 : index
      %c0_60 = arith.constant 0 : index
      %111 = vector.load %arg9[%c0_59, %c0_60] : memref<1x32xf32, #tpu.memory_space<vmem>>, vector<1x32xf32>
      %112 = vector.broadcast %111 : vector<1x32xf32> to vector<8x32xf32>
      %113 = arith.addf %110, %112 : vector<8x32xf32>
      %114 = vector.broadcast %cst : f32 to vector<8x32xf32>
      %115 = arith.mulf %113, %114 : vector<8x32xf32>
      %116 = vector.shape_cast %115 : vector<8x32xf32> to vector<8x4x8xf32>
      %117 = tpu.transpose %116, [1, 0, 2] : vector<8x4x8xf32> -> vector<4x8x8xf32>
      %118 = arith.truncf %117 : vector<4x8x8xf32> to vector<4x8x8xbf16>
      %c0_61 = arith.constant 0 : index
      %c0_62 = arith.constant 0 : index
      %c0_63 = arith.constant 0 : index
      %119 = vector.load %arg21[%c0_61, %c0_62, %c0_63] : memref<4x8x8xbf16, #tpu.memory_space<vmem>>, vector<4x8x8xbf16>
      tpu.vector_store %arg21[%c0_61, %c0_62, %c0_63], %118 {strides = array<i32>} : memref<4x8x8xbf16, #tpu.memory_space<vmem>>, vector<4x8x8xbf16>,
      %cst_64 = arith.constant 0xFF800000 : f32
      %120 = vector.broadcast %cst_64 : f32 to vector<4x8x1xf32>
      %c0_65 = arith.constant 0 : index
      %c0_66 = arith.constant 0 : index
      %c0_67 = arith.constant 0 : index
      %121 = vector.load %arg22[%c0_65, %c0_66, %c0_67] : memref<4x8x1xf32, #tpu.memory_space<vmem>>, vector<4x8x1xf32>
      tpu.vector_store %arg22[%c0_65, %c0_66, %c0_67], %120 {strides = array<i32>} : memref<4x8x1xf32, #tpu.memory_space<vmem>>, vector<4x8x1xf32>,
      %cst_68 = arith.constant 0.000000e+00 : f32
      %122 = vector.broadcast %cst_68 : f32 to vector<4x8x1xf32>
      %c0_69 = arith.constant 0 : index
      %c0_70 = arith.constant 0 : index
      %c0_71 = arith.constant 0 : index
      %123 = vector.load %arg23[%c0_69, %c0_70, %c0_71] : memref<4x8x1xf32, #tpu.memory_space<vmem>>, vector<4x8x1xf32>
      tpu.vector_store %arg23[%c0_69, %c0_70, %c0_71], %122 {strides = array<i32>} : memref<4x8x1xf32, #tpu.memory_space<vmem>>, vector<4x8x1xf32>,
      %cst_72 = arith.constant 0.000000e+00 : f32
      %124 = vector.broadcast %cst_72 : f32 to vector<4x8x8xf32>
      %c0_73 = arith.constant 0 : index
      %c0_74 = arith.constant 0 : index
      %c0_75 = arith.constant 0 : index
      %125 = vector.load %arg24[%c0_73, %c0_74, %c0_75] : memref<4x8x8xf32, #tpu.memory_space<vmem>>, vector<4x8x8xf32>
      tpu.vector_store %arg24[%c0_73, %c0_74, %c0_75], %124 {strides = array<i32>} : memref<4x8x8xf32, #tpu.memory_space<vmem>>, vector<4x8x8xf32>,
    } else {
    }
    %c0 = arith.constant 0 : index
    %c0_1 = arith.constant 0 : index
    %c0_2 = arith.constant 0 : index
    %3 = vector.load %arg5[%c0, %c0_1, %c0_2] : memref<1x8x32xf32, #tpu.memory_space<vmem>>, vector<1x8x32xf32>
    %4 = vector.shape_cast %3 : vector<1x8x32xf32> to vector<8x32xf32>
    %c0_3 = arith.constant 0 : index
    %c0_4 = arith.constant 0 : index
    %5 = vector.load %arg6[%c0_3, %c0_4] : memref<1x32xf32, #tpu.memory_space<vmem>>, vector<1x32xf32>
    %c0_5 = arith.constant 0 : index
    %c0_6 = arith.constant 0 : index
    %6 = vector.load %arg7[%c0_5, %c0_6] : memref<1x32xf32, #tpu.memory_space<vmem>>, vector<1x32xf32>
    %cst_7 = arith.constant dense<0.000000e+00> : vector<8xf32>
    %7 = vector.multi_reduction <add>, %4, %cst_7 [1] : vector<8x32xf32> to vector<8xf32>
    %8 = vector.shape_cast %7 : vector<8xf32> to vector<8x1xf32>
    %cst_8 = arith.constant 3.200000e+01 : f32
    %9 = vector.broadcast %cst_8 : f32 to vector<8x1xf32>
    %10 = arith.divf %8, %9 : vector<8x1xf32>
    %11 = vector.broadcast %10 : vector<8x1xf32> to vector<8x32xf32>
    %12 = arith.subf %4, %11 : vector<8x32xf32>
    %13 = arith.mulf %12, %12 : vector<8x32xf32>
    %cst_9 = arith.constant dense<0.000000e+00> : vector<8xf32>
    %14 = vector.multi_reduction <add>, %13, %cst_9 [1] : vector<8x32xf32> to vector<8xf32>
    %15 = vector.shape_cast %14 : vector<8xf32> to vector<8x1xf32>
    %cst_10 = arith.constant 3.200000e+01 : f32
    %16 = vector.broadcast %cst_10 : f32 to vector<8x1xf32>
    %17 = arith.divf %15, %16 : vector<8x1xf32>
    %18 = vector.broadcast %10 : vector<8x1xf32> to vector<8x32xf32>
    %19 = arith.subf %4, %18 : vector<8x32xf32>
    %cst_11 = arith.constant 9.99999974E-6 : f32
    %20 = vector.broadcast %cst_11 : f32 to vector<8x1xf32>
    %21 = arith.addf %17, %20 : vector<8x1xf32>
    %22 = math.rsqrt %21 : vector<8x1xf32>
    %23 = vector.broadcast %22 : vector<8x1xf32> to vector<8x32xf32>
    %24 = arith.mulf %19, %23 : vector<8x32xf32>
    %25 = vector.broadcast %5 : vector<1x32xf32> to vector<8x32xf32>
    %26 = arith.mulf %24, %25 : vector<8x32xf32>
    %27 = vector.broadcast %6 : vector<1x32xf32> to vector<8x32xf32>
    %28 = arith.addf %26, %27 : vector<8x32xf32>
    %29 = arith.truncf %28 : vector<8x32xf32> to vector<8x32xbf16>
    %c0_12 = arith.constant 0 : index
    %c0_13 = arith.constant 0 : index
    %30 = vector.load %arg10[%c0_12, %c0_13] : memref<32x64xbf16, #tpu.memory_space<vmem>>, vector<32x64xbf16>
    %cst_14 = arith.constant dense<0.000000e+00> : vector<8x64xf32>
    %31 = tpu.matmul %29, %30, %cst_14 {dimension_numbers = #tpu.dot_dimension_numbers<[1], [0], [0], [1], [0, 0, 1, 1], [], []>} : vector<8x32xbf16>, vector<32x64xbf16>, vector<8x64xf32> -> vector<8x64xf32>
    %c0_15 = arith.constant 0 : index
    %c0_16 = arith.constant 0 : index
    %32 = vector.load %arg11[%c0_15, %c0_16] : memref<1x64xf32, #tpu.memory_space<vmem>>, vector<1x64xf32>
    %33 = vector.broadcast %32 : vector<1x64xf32> to vector<8x64xf32>
    %34 = arith.addf %31, %33 : vector<8x64xf32>
    %35 = arith.truncf %34 : vector<8x64xf32> to vector<8x64xbf16>
    %36 = vector.extract_strided_slice %35 {offsets = [0, 0], sizes = [8, 32], strides = [1, 1]} : vector<8x64xbf16> to vector<8x32xbf16>
    %37 = vector.shape_cast %36 : vector<8x32xbf16> to vector<8x4x8xbf16>
    %38 = tpu.transpose %37, [1, 0, 2] : vector<8x4x8xbf16> -> vector<4x8x8xbf16>
    %39 = vector.extract_strided_slice %35 {offsets = [0, 32], sizes = [8, 32], strides = [1, 1]} : vector<8x64xbf16> to vector<8x32xbf16>
    %40 = vector.shape_cast %39 : vector<8x32xbf16> to vector<8x4x8xbf16>
    %41 = tpu.transpose %40, [1, 0, 2] : vector<8x4x8xbf16> -> vector<4x8x8xbf16>
    %c0_17 = arith.constant 0 : index
    %c0_18 = arith.constant 0 : index
    %c0_19 = arith.constant 0 : index
    %42 = vector.load %arg21[%c0_17, %c0_18, %c0_19] : memref<4x8x8xbf16, #tpu.memory_space<vmem>>, vector<4x8x8xbf16>
    "tpu.trace_start"() <{level = 10 : i32, message = "hqd,hkd->hqk"}> : () -> ()
    %cst_20 = arith.constant dense<0.000000e+00> : vector<4x8x8xf32>
    %43 = tpu.matmul %42, %38, %cst_20 {dimension_numbers = #tpu.dot_dimension_numbers<[2], [2], [1], [1], [0, 0, 0, 1, 1, 1], [0], [0]>} : vector<4x8x8xbf16>, vector<4x8x8xbf16>, vector<4x8x8xf32> -> vector<4x8x8xf32>
    "tpu.trace_stop"() : () -> ()
    %44 = arith.index_cast %arg0 : i32 to index
    %45 = memref.load %arg3[%44] : memref<2xi32, #tpu.memory_space<smem>>
    %c8_i32 = arith.constant 8 : i32
    %46 = arith.muli %arg2, %c8_i32 : i32
    %47 = tpu.iota {dimensions = array<i32: 2>} : vector<1x1x8xi32>
    %48 = vector.broadcast %46 : i32 to vector<1x1x8xi32>
    %49 = arith.addi %48, %47 : vector<1x1x8xi32>
    %50 = vector.broadcast %45 : i32 to vector<1x1x8xi32>
    %51 = arith.cmpi sge, %49, %50 : vector<1x1x8xi32>
    %cst_21 = arith.constant -1.000000e+09 : f32
    %52 = vector.shape_cast %51 : vector<1x1x8xi1> to vector<1x1x8xi1>
    %53 = vector.broadcast %52 : vector<1x1x8xi1> to vector<4x8x8xi1>
    %54 = vector.broadcast %cst_21 : f32 to vector<4x8x8xf32>
    %55 = arith.select %53, %54, %43 : vector<4x8x8xi1>, vector<4x8x8xf32>
    %c0_22 = arith.constant 0 : index
    %c0_23 = arith.constant 0 : index
    %c0_24 = arith.constant 0 : index
    %56 = vector.load %arg22[%c0_22, %c0_23, %c0_24] : memref<4x8x1xf32, #tpu.memory_space<vmem>>, vector<4x8x1xf32>
    %cst_25 = arith.constant dense<0xFF800000> : vector<4x8xf32>
    %57 = vector.multi_reduction <maximumf>, %55, %cst_25 [2] : vector<4x8x8xf32> to vector<4x8xf32>
    %58 = vector.shape_cast %57 : vector<4x8xf32> to vector<4x8x1xf32>
    %59 = arith.maximumf %56, %58 : vector<4x8x1xf32>
    %60 = arith.subf %56, %59 : vector<4x8x1xf32>
    %61 = math.exp %60 : vector<4x8x1xf32>
    %62 = vector.broadcast %59 : vector<4x8x1xf32> to vector<4x8x8xf32>
    %63 = arith.subf %55, %62 : vector<4x8x8xf32>
    %64 = math.exp %63 : vector<4x8x8xf32>
    %c0_26 = arith.constant 0 : index
    %c0_27 = arith.constant 0 : index
    %c0_28 = arith.constant 0 : index
    %65 = vector.load %arg23[%c0_26, %c0_27, %c0_28] : memref<4x8x1xf32, #tpu.memory_space<vmem>>, vector<4x8x1xf32>
    %66 = arith.mulf %61, %65 : vector<4x8x1xf32>
    %cst_29 = arith.constant dense<0.000000e+00> : vector<4x8xf32>
    %67 = vector.multi_reduction <add>, %64, %cst_29 [2] : vector<4x8x8xf32> to vector<4x8xf32>
    %68 = vector.shape_cast %67 : vector<4x8xf32> to vector<4x8x1xf32>
    %69 = arith.addf %66, %68 : vector<4x8x1xf32>
    %c0_30 = arith.constant 0 : index
    %c0_31 = arith.constant 0 : index
    %c0_32 = arith.constant 0 : index
    %70 = vector.load %arg23[%c0_30, %c0_31, %c0_32] : memref<4x8x1xf32, #tpu.memory_space<vmem>>, vector<4x8x1xf32>
    tpu.vector_store %arg23[%c0_30, %c0_31, %c0_32], %69 {strides = array<i32>} : memref<4x8x1xf32, #tpu.memory_space<vmem>>, vector<4x8x1xf32>,
    %c0_33 = arith.constant 0 : index
    %c0_34 = arith.constant 0 : index
    %c0_35 = arith.constant 0 : index
    %71 = vector.load %arg24[%c0_33, %c0_34, %c0_35] : memref<4x8x8xf32, #tpu.memory_space<vmem>>, vector<4x8x8xf32>
    %72 = vector.broadcast %61 : vector<4x8x1xf32> to vector<4x8x8xf32>
    %73 = arith.mulf %72, %71 : vector<4x8x8xf32>
    %74 = arith.truncf %64 : vector<4x8x8xf32> to vector<4x8x8xbf16>
    "tpu.trace_start"() <{level = 10 : i32, message = "hqk,hkd->hqd"}> : () -> ()
    %cst_36 = arith.constant dense<0.000000e+00> : vector<4x8x8xf32>
    %75 = tpu.matmul %74, %41, %cst_36 {dimension_numbers = #tpu.dot_dimension_numbers<[2], [1], [1], [2], [0, 0, 0, 1, 1, 2], [0], [0]>} : vector<4x8x8xbf16>, vector<4x8x8xbf16>, vector<4x8x8xf32> -> vector<4x8x8xf32>
    "tpu.trace_stop"() : () -> ()
    %76 = arith.addf %73, %75 : vector<4x8x8xf32>
    %c0_37 = arith.constant 0 : index
    %c0_38 = arith.constant 0 : index
    %c0_39 = arith.constant 0 : index
    %77 = vector.load %arg24[%c0_37, %c0_38, %c0_39] : memref<4x8x8xf32, #tpu.memory_space<vmem>>, vector<4x8x8xf32>
    tpu.vector_store %arg24[%c0_37, %c0_38, %c0_39], %76 {strides = array<i32>} : memref<4x8x8xf32, #tpu.memory_space<vmem>>, vector<4x8x8xf32>,
    %c0_40 = arith.constant 0 : index
    %c0_41 = arith.constant 0 : index
    %c0_42 = arith.constant 0 : index
    %78 = vector.load %arg22[%c0_40, %c0_41, %c0_42] : memref<4x8x1xf32, #tpu.memory_space<vmem>>, vector<4x8x1xf32>
    tpu.vector_store %arg22[%c0_40, %c0_41, %c0_42], %59 {strides = array<i32>} : memref<4x8x1xf32, #tpu.memory_space<vmem>>, vector<4x8x1xf32>,
    %c1_i32 = arith.constant 1 : i32
    %79 = arith.cmpi eq, %arg2, %c1_i32 : i32
    %80 = arith.extui %79 : i1 to i32
    %c0_i32_43 = arith.constant 0 : i32
    %81 = arith.cmpi ne, %80, %c0_i32_43 : i32
    scf.if %81 {
      %c0_44 = arith.constant 0 : index
      %c0_45 = arith.constant 0 : index
      %c0_46 = arith.constant 0 : index
      %82 = vector.load %arg23[%c0_44, %c0_45, %c0_46] : memref<4x8x1xf32, #tpu.memory_space<vmem>>, vector<4x8x1xf32>
      %83 = tpu.reciprocal %82 {approx = true} : vector<4x8x1xf32> -> vector<4x8x1xf32>
      %c0_47 = arith.constant 0 : index
      %c0_48 = arith.constant 0 : index
      %c0_49 = arith.constant 0 : index
      %84 = vector.load %arg24[%c0_47, %c0_48, %c0_49] : memref<4x8x8xf32, #tpu.memory_space<vmem>>, vector<4x8x8xf32>
      %85 = vector.broadcast %83 : vector<4x8x1xf32> to vector<4x8x8xf32>
      %86 = arith.mulf %84, %85 : vector<4x8x8xf32>
      %87 = tpu.transpose %86, [1, 0, 2] : vector<4x8x8xf32> -> vector<8x4x8xf32>
      %88 = vector.shape_cast %87 : vector<8x4x8xf32> to vector<8x32xf32>
      %89 = arith.truncf %88 : vector<8x32xf32> to vector<8x32xbf16>
      %c0_50 = arith.constant 0 : index
      %c0_51 = arith.constant 0 : index
      %90 = vector.load %arg12[%c0_50, %c0_51] : memref<32x32xbf16, #tpu.memory_space<vmem>>, vector<32x32xbf16>
      %cst_52 = arith.constant dense<0.000000e+00> : vector<8x32xf32>
      %91 = tpu.matmul %89, %90, %cst_52 {dimension_numbers = #tpu.dot_dimension_numbers<[1], [0], [0], [1], [0, 0, 1, 1], [], []>} : vector<8x32xbf16>, vector<32x32xbf16>, vector<8x32xf32> -> vector<8x32xf32>
      %c0_53 = arith.constant 0 : index
      %c0_54 = arith.constant 0 : index
      %92 = vector.load %arg13[%c0_53, %c0_54] : memref<1x32xf32, #tpu.memory_space<vmem>>, vector<1x32xf32>
      %93 = vector.broadcast %92 : vector<1x32xf32> to vector<8x32xf32>
      %94 = arith.addf %91, %93 : vector<8x32xf32>
      %c0_55 = arith.constant 0 : index
      %c0_56 = arith.constant 0 : index
      %c0_57 = arith.constant 0 : index
      %95 = vector.load %arg4[%c0_55, %c0_56, %c0_57] : memref<1x8x32xf32, #tpu.memory_space<vmem>>, vector<1x8x32xf32>
      %96 = vector.shape_cast %95 : vector<1x8x32xf32> to vector<8x32xf32>
      %97 = arith.addf %96, %94 : vector<8x32xf32>
      %c0_58 = arith.constant 0 : index
      %c0_59 = arith.constant 0 : index
      %98 = vector.load %arg14[%c0_58, %c0_59] : memref<1x32xf32, #tpu.memory_space<vmem>>, vector<1x32xf32>
      %c0_60 = arith.constant 0 : index
      %c0_61 = arith.constant 0 : index
      %99 = vector.load %arg15[%c0_60, %c0_61] : memref<1x32xf32, #tpu.memory_space<vmem>>, vector<1x32xf32>
      %cst_62 = arith.constant dense<0.000000e+00> : vector<8xf32>
      %100 = vector.multi_reduction <add>, %97, %cst_62 [1] : vector<8x32xf32> to vector<8xf32>
      %101 = vector.shape_cast %100 : vector<8xf32> to vector<8x1xf32>
      %cst_63 = arith.constant 3.200000e+01 : f32
      %102 = vector.broadcast %cst_63 : f32 to vector<8x1xf32>
      %103 = arith.divf %101, %102 : vector<8x1xf32>
      %104 = vector.broadcast %103 : vector<8x1xf32> to vector<8x32xf32>
      %105 = arith.subf %97, %104 : vector<8x32xf32>
      %106 = arith.mulf %105, %105 : vector<8x32xf32>
      %cst_64 = arith.constant dense<0.000000e+00> : vector<8xf32>
      %107 = vector.multi_reduction <add>, %106, %cst_64 [1] : vector<8x32xf32> to vector<8xf32>
      %108 = vector.shape_cast %107 : vector<8xf32> to vector<8x1xf32>
      %cst_65 = arith.constant 3.200000e+01 : f32
      %109 = vector.broadcast %cst_65 : f32 to vector<8x1xf32>
      %110 = arith.divf %108, %109 : vector<8x1xf32>
      %111 = vector.broadcast %103 : vector<8x1xf32> to vector<8x32xf32>
      %112 = arith.subf %97, %111 : vector<8x32xf32>
      %cst_66 = arith.constant 9.99999974E-6 : f32
      %113 = vector.broadcast %cst_66 : f32 to vector<8x1xf32>
      %114 = arith.addf %110, %113 : vector<8x1xf32>
      %115 = math.rsqrt %114 : vector<8x1xf32>
      %116 = vector.broadcast %115 : vector<8x1xf32> to vector<8x32xf32>
      %117 = arith.mulf %112, %116 : vector<8x32xf32>
      %118 = vector.broadcast %98 : vector<1x32xf32> to vector<8x32xf32>
      %119 = arith.mulf %117, %118 : vector<8x32xf32>
      %120 = vector.broadcast %99 : vector<1x32xf32> to vector<8x32xf32>
      %121 = arith.addf %119, %120 : vector<8x32xf32>
      %122 = arith.truncf %121 : vector<8x32xf32> to vector<8x32xbf16>
      %c0_67 = arith.constant 0 : index
      %c0_68 = arith.constant 0 : index
      %123 = vector.load %arg16[%c0_67, %c0_68] : memref<32x64xbf16, #tpu.memory_space<vmem>>, vector<32x64xbf16>
      %cst_69 = arith.constant dense<0.000000e+00> : vector<8x64xf32>
      %124 = tpu.matmul %122, %123, %cst_69 {dimension_numbers = #tpu.dot_dimension_numbers<[1], [0], [0], [1], [0, 0, 1, 1], [], []>} : vector<8x32xbf16>, vector<32x64xbf16>, vector<8x64xf32> -> vector<8x64xf32>
      %c0_70 = arith.constant 0 : index
      %c0_71 = arith.constant 0 : index
      %125 = vector.load %arg17[%c0_70, %c0_71] : memref<1x64xf32, #tpu.memory_space<vmem>>, vector<1x64xf32>
      %126 = vector.broadcast %125 : vector<1x64xf32> to vector<8x64xf32>
      %127 = arith.addf %124, %126 : vector<8x64xf32>
      %128 = arith.mulf %127, %127 : vector<8x64xf32>
      %129 = arith.mulf %128, %127 : vector<8x64xf32>
      %cst_72 = arith.constant 5.000000e-01 : f32
      %130 = vector.broadcast %cst_72 : f32 to vector<8x64xf32>
      %131 = arith.mulf %130, %127 : vector<8x64xf32>
      %cst_73 = arith.constant 4.471500e-02 : f32
      %132 = vector.broadcast %cst_73 : f32 to vector<8x64xf32>
      %133 = arith.mulf %132, %129 : vector<8x64xf32>
      %134 = arith.addf %127, %133 : vector<8x64xf32>
      %cst_74 = arith.constant 0.797884583 : f32
      %135 = vector.broadcast %cst_74 : f32 to vector<8x64xf32>
      %136 = arith.mulf %135, %134 : vector<8x64xf32>
      %137 = math.tanh %136 : vector<8x64xf32>
      %cst_75 = arith.constant 1.000000e+00 : f32
      %138 = vector.broadcast %cst_75 : f32 to vector<8x64xf32>
      %139 = arith.addf %138, %137 : vector<8x64xf32>
      %140 = arith.mulf %131, %139 : vector<8x64xf32>
      %141 = arith.truncf %140 : vector<8x64xf32> to vector<8x64xbf16>
      %c0_76 = arith.constant 0 : index
      %c0_77 = arith.constant 0 : index
      %142 = vector.load %arg18[%c0_76, %c0_77] : memref<64x32xbf16, #tpu.memory_space<vmem>>, vector<64x32xbf16>
      %cst_78 = arith.constant dense<0.000000e+00> : vector<8x32xf32>
      %143 = tpu.matmul %141, %142, %cst_78 {dimension_numbers = #tpu.dot_dimension_numbers<[1], [0], [0], [1], [0, 0, 1, 1], [], []>} : vector<8x64xbf16>, vector<64x32xbf16>, vector<8x32xf32> -> vector<8x32xf32>
      %c0_79 = arith.constant 0 : index
      %c0_80 = arith.constant 0 : index
      %144 = vector.load %arg19[%c0_79, %c0_80] : memref<1x32xf32, #tpu.memory_space<vmem>>, vector<1x32xf32>
      %145 = vector.broadcast %144 : vector<1x32xf32> to vector<8x32xf32>
      %146 = arith.addf %143, %145 : vector<8x32xf32>
      %147 = arith.addf %97, %146 : vector<8x32xf32>
      %c0_81 = arith.constant 0 : index
      %c0_82 = arith.constant 0 : index
      %c0_83 = arith.constant 0 : index
      %148 = vector.load %arg20[%c0_81, %c0_82, %c0_83] : memref<1x8x32xf32, #tpu.memory_space<vmem>>, vector<1x8x32xf32>
      %149 = vector.shape_cast %148 : vector<1x8x32xf32> to vector<8x32xf32>
      %150 = vector.shape_cast %147 : vector<8x32xf32> to vector<1x8x32xf32>
      tpu.vector_store %arg20[%c0_81, %c0_82, %c0_83], %150 {strides = array<i32>} : memref<1x8x32xf32, #tpu.memory_space<vmem>>, vector<1x8x32xf32>,
    } else {
    }
    return
  }
  func.func @transform_0(%arg0: i32, %arg1: i32, %arg2: i32, %arg3: memref<2xi32, #tpu.memory_space<smem>>) -> (i32, i32, i32) {
    %c0_i32 = arith.constant 0 : i32
    %c0_i32_0 = arith.constant 0 : i32
    return %arg0, %arg1, %c0_i32 : i32, i32, i32
  }
  func.func @transform_1(%arg0: i32, %arg1: i32, %arg2: i32, %arg3: memref<2xi32, #tpu.memory_space<smem>>) -> (i32, i32, i32) {
    %c0_i32 = arith.constant 0 : i32
    %c0_i32_0 = arith.constant 0 : i32
    return %arg0, %arg2, %c0_i32 : i32, i32, i32
  }
  func.func @transform_2(%arg0: i32, %arg1: i32, %arg2: i32, %arg3: memref<2xi32, #tpu.memory_space<smem>>) -> (i32, i32) {
    %c0_i32 = arith.constant 0 : i32
    %c0_i32_0 = arith.constant 0 : i32
    %c0_i32_1 = arith.constant 0 : i32
    return %c0_i32, %c0_i32_0 : i32, i32
  }
  func.func @transform_3(%arg0: i32, %arg1: i32, %arg2: i32, %arg3: memref<2xi32, #tpu.memory_space<smem>>) -> (i32, i32) {
    %c0_i32 = arith.constant 0 : i32
    %c0_i32_0 = arith.constant 0 : i32
    %c0_i32_1 = arith.constant 0 : i32
    return %c0_i32, %c0_i32_0 : i32, i32
  }
  func.func @transform_4(%arg0: i32, %arg1: i32, %arg2: i32, %arg3: memref<2xi32, #tpu.memory_space<smem>>) -> (i32, i32) {
    %c0_i32 = arith.constant 0 : i32
    %c0_i32_0 = arith.constant 0 : i32
    %c0_i32_1 = arith.constant 0 : i32
    return %c0_i32, %c0_i32_0 : i32, i32
  }
  func.func @transform_5(%arg0: i32, %arg1: i32, %arg2: i32, %arg3: memref<2xi32, #tpu.memory_space<smem>>) -> (i32, i32) {
    %c0_i32 = arith.constant 0 : i32
    %c0_i32_0 = arith.constant 0 : i32
    %c0_i32_1 = arith.constant 0 : i32
    return %c0_i32, %c0_i32_0 : i32, i32
  }
  func.func @transform_6(%arg0: i32, %arg1: i32, %arg2: i32, %arg3: memref<2xi32, #tpu.memory_space<smem>>) -> (i32, i32) {
    %c0_i32 = arith.constant 0 : i32
    %c0_i32_0 = arith.constant 0 : i32
    %c0_i32_1 = arith.constant 0 : i32
    return %c0_i32, %c0_i32_0 : i32, i32
  }
  func.func @transform_7(%arg0: i32, %arg1: i32, %arg2: i32, %arg3: memref<2xi32, #tpu.memory_space<smem>>) -> (i32, i32) {
    %c0_i32 = arith.constant 0 : i32
    %c0_i32_0 = arith.constant 0 : i32
    %c0_i32_1 = arith.constant 0 : i32
    return %c0_i32, %c0_i32_0 : i32, i32
  }
  func.func @transform_8(%arg0: i32, %arg1: i32, %arg2: i32, %arg3: memref<2xi32, #tpu.memory_space<smem>>) -> (i32, i32) {
    %c0_i32 = arith.constant 0 : i32
    %c0_i32_0 = arith.constant 0 : i32
    %c0_i32_1 = arith.constant 0 : i32
    return %c0_i32, %c0_i32_0 : i32, i32
  }
  func.func @transform_9(%arg0: i32, %arg1: i32, %arg2: i32, %arg3: memref<2xi32, #tpu.memory_space<smem>>) -> (i32, i32) {
    %c0_i32 = arith.constant 0 : i32
    %c0_i32_0 = arith.constant 0 : i32
    %c0_i32_1 = arith.constant 0 : i32
    return %c0_i32, %c0_i32_0 : i32, i32
  }
  func.func @transform_10(%arg0: i32, %arg1: i32, %arg2: i32, %arg3: memref<2xi32, #tpu.memory_space<smem>>) -> (i32, i32) {
    %c0_i32 = arith.constant 0 : i32
    %c0_i32_0 = arith.constant 0 : i32
    %c0_i32_1 = arith.constant 0 : i32
    return %c0_i32, %c0_i32_0 : i32, i32
  }
  func.func @transform_11(%arg0: i32, %arg1: i32, %arg2: i32, %arg3: memref<2xi32, #tpu.memory_space<smem>>) -> (i32, i32) {
    %c0_i32 = arith.constant 0 : i32
    %c0_i32_0 = arith.constant 0 : i32
    %c0_i32_1 = arith.constant 0 : i32
    return %c0_i32, %c0_i32_0 : i32, i32
  }
  func.func @transform_12(%arg0: i32, %arg1: i32, %arg2: i32, %arg3: memref<2xi32, #tpu.memory_space<smem>>) -> (i32, i32) {
    %c0_i32 = arith.constant 0 : i32
    %c0_i32_0 = arith.constant 0 : i32
    %c0_i32_1 = arith.constant 0 : i32
    return %c0_i32, %c0_i32_0 : i32, i32
  }
  func.func @transform_13(%arg0: i32, %arg1: i32, %arg2: i32, %arg3: memref<2xi32, #tpu.memory_space<smem>>) -> (i32, i32) {
    %c0_i32 = arith.constant 0 : i32
    %c0_i32_0 = arith.constant 0 : i32
    %c0_i32_1 = arith.constant 0 : i32
    return %c0_i32, %c0_i32_0 : i32, i32
  }
  func.func @transform_14(%arg0: i32, %arg1: i32, %arg2: i32, %arg3: memref<2xi32, #tpu.memory_space<smem>>) -> (i32, i32) {
    %c0_i32 = arith.constant 0 : i32
    %c0_i32_0 = arith.constant 0 : i32
    %c0_i32_1 = arith.constant 0 : i32
    return %c0_i32, %c0_i32_0 : i32, i32
  }
  func.func @transform_15(%arg0: i32, %arg1: i32, %arg2: i32, %arg3: memref<2xi32, #tpu.memory_space<smem>>) -> (i32, i32) {
    %c0_i32 = arith.constant 0 : i32
    %c0_i32_0 = arith.constant 0 : i32
    %c0_i32_1 = arith.constant 0 : i32
    return %c0_i32, %c0_i32_0 : i32, i32
  }
  func.func @transform_16(%arg0: i32, %arg1: i32, %arg2: i32, %arg3: memref<2xi32, #tpu.memory_space<smem>>) -> (i32, i32, i32) {
    %c0_i32 = arith.constant 0 : i32
    %c0_i32_0 = arith.constant 0 : i32
    return %arg0, %arg1, %c0_i32 : i32, i32, i32
  }
}

</mosaic_0001>

<llo_original>
// kernel: tpu_custom_call.1
$region0: #{tpu_custom_call.1}
  #allocation0 [shape = 'u32[]', space=smem, size = 0x4, offset = 0x4, fixed_abs, tag = 'smem constant byte address 0x4 - core index']
  #allocation1 [shape = 'u32[72,128]{1,0:T(1,128)}', space=vmem, size = 0x9000, scoped, tag = 'internal scratch']
  #allocation2 [shape = 'bf16[4,8,8]{2,1,0:T(8,128)(2,1)}', space=vmem, size = 0x2000, scoped, tag = 'scratch operand']
  #allocation3 [shape = 'f32[4,8,1]{2,1,0:T(8,128)}', space=vmem, size = 0x4000, scoped, tag = 'scratch operand']
  #allocation4 [shape = 'f32[4,8,1]{2,1,0:T(8,128)}', space=vmem, size = 0x4000, scoped, tag = 'scratch operand']
  #allocation5 [shape = 'f32[4,8,8]{2,1,0:T(8,128)}', space=vmem, size = 0x4000, scoped, tag = 'scratch operand']
  #allocation6 [shape = 's32[1]{0}', space=sflag, size = 0x4, scoped, tag = 'scoped memory for tpu_custom_call.1']
  #allocation7 [shape = 'u8[512]{0}', space=smem, size = 0x200, scoped, tag = 'prefetched SMEM operand 0']
  %s0 = inlined_call_operand.hbm [shape: s32[2], index: 0, kind: input, shape index: {}]
  %s1 = inlined_call_operand.vmem [shape: f32[2,16,32], index: 1, kind: input, shape index: {}]
  %s2 = inlined_call_operand.hbm [shape: f32[2,16,32], index: 2, kind: input, shape index: {}]
  %s3 = inlined_call_operand.vmem [shape: f32[1,32], index: 3, kind: input, shape index: {}]
  %s4 = inlined_call_operand.vmem [shape: f32[1,32], index: 4, kind: input, shape index: {}]
  %s5 = inlined_call_operand.vmem [shape: bf16[32,32], index: 5, kind: input, shape index: {}]
  %s6 = inlined_call_operand.vmem [shape: f32[1,32], index: 6, kind: input, shape index: {}]
  %s7 = inlined_call_operand.hbm [shape: bf16[32,64], index: 7, kind: input, shape index: {}]
  %s8 = inlined_call_operand.vmem [shape: f32[1,64], index: 8, kind: input, shape index: {}]
  %s9 = inlined_call_operand.hbm [shape: bf16[32,32], index: 9, kind: input, shape index: {}]
  %s10 = inlined_call_operand.vmem [shape: f32[1,32], index: 10, kind: input, shape index: {}]
  %s11 = inlined_call_operand.vmem [shape: f32[1,32], index: 11, kind: input, shape index: {}]
  %s12 = inlined_call_operand.vmem [shape: f32[1,32], index: 12, kind: input, shape index: {}]
  %s13 = inlined_call_operand.hbm [shape: bf16[32,64], index: 13, kind: input, shape index: {}]
  %s14 = inlined_call_operand.vmem [shape: f32[1,64], index: 14, kind: input, shape index: {}]
  %s15 = inlined_call_operand.vmem [shape: bf16[64,32], index: 15, kind: input, shape index: {}]
  %s16 = inlined_call_operand.vmem [shape: f32[1,32], index: 16, kind: input, shape index: {}]
  %s17 = inlined_call_operand.hbm [shape: f32[2,16,32], index: 17, kind: output, shape index: {}]
  %s18 = sld [smem:[#allocation0]]
  $region121: #{tpu_custom_call.1} parent=0
    _
  %s20 = ssub.s32 1, %s18
  %s21 = scalar_select 0, %s20, %s18
  %s23 = sshll.u32 %s0, 4
  %s24 = int_to_ptr.hbm [resolvable:$true] %s23
  %26 = dma.hbm_to_smem %s24, 16, [#allocation7], [#allocation6]
  %28 = dma.done [#allocation6], 16
  %29 = sfence
  $region1: #{tpu_custom_call.1} parent=0
    #allocation8 [shape = 'u8[8192]{0}', space=vmem, size = 0x2000, scoped, tag = 'input window, operand 2']
    #allocation9 [shape = 's32[2]{0}', space=sflag, size = 0x8, scoped, tag = 'scoped memory for tpu_custom_call.1']
    #allocation10 [shape = 's32[2]{0}', space=sflag, size = 0x8, scoped, tag = 'scoped memory for tpu_custom_call.1']
    #allocation11 [shape = 'u8[8192]{0}', space=vmem, size = 0x2000, scoped, tag = 'input window, operand 7, single buffered']
    #allocation12 [shape = 's32[1]{0}', space=sflag, size = 0x4, scoped, tag = 'scoped memory for tpu_custom_call.1']
    #allocation13 [shape = 'u8[8192]{0}', space=vmem, size = 0x2000, scoped, tag = 'input window, operand 9, single buffered']
    #allocation14 [shape = 'u8[8192]{0}', space=vmem, size = 0x2000, scoped, tag = 'input window, operand 13, single buffered']
    #allocation15 [shape = 's32[1]{0}', space=sflag, size = 0x4, scoped, tag = 'scoped memory for tpu_custom_call.1']
    #allocation16 [shape = 'u8[8192]{0}', space=vmem, size = 0x2000, scoped, tag = 'output window, operand 0']
    %30 = vsyncpa [#allocation9], 0
    %s31 = scalar_lea.sflag [#allocation9], 1
    %32 = vsyncpa %s31, 0
    %33 = vsyncpa [#allocation12], 0
    %34 = vsyncpa [#allocation15], 0
    %35 = vsyncpa [#allocation10], 0
    %s36 = scalar_lea.sflag [#allocation10], 1
    %37 = vsyncpa %s36, 0
    loop: start=0, step=1, limit=10
    $region2: #{tpu_custom_call.1} parent=1 // loop_pre_header
      _
    $region3: #{tpu_custom_call.1} parent=1 // loop_header
      %s39 = sphi 0, %s43
      %p40 = scmp.ge.s32.totalorder %s39, 10
      %s46 = sphi 0, %s65
      %s47 = sphi 0, %s61
      %s48 = sphi 0, %s57
      %s49 = sphi 0, %s46
      %s50 = sphi 0, %s47
      %s51 = sphi 0, %s48
      %s52 = sphi 0, %s49
      %s53 = sphi 0, %s50
      %s54 = sphi 0, %s51
      %s70 = sphi 0, %s72
      %s73 = sphi 0, %s70
      %s74 = sphi 0, %s73
      %s90 = sphi 0, %s74
      %s98 = sphi 0, %s100
      %s101 = sphi 0, %s98
      %s102 = sphi 0, %s101
      %s118 = sphi 0, %s102
      %s122 = sphi 0, %s122
      %s124 = sphi 0, %s122
      %s125 = sphi 0, %s124
      %s139 = sphi 0, %s125
      %s143 = sphi 0, %s143
      %s145 = sphi 0, %s143
      %s146 = sphi 0, %s145
      %s160 = sphi 0, %s146
      %s164 = sphi 0, %s164
      %s166 = sphi 0, %s164
      %s167 = sphi 0, %s166
      %s181 = sphi 0, %s167
      %s185 = sphi 0, %s185
      %s187 = sphi 0, %s185
      %s188 = sphi 0, %s187
      %s202 = sphi 0, %s188
      %s206 = sphi 0, %s206
      %s208 = sphi 0, %s206
      %s209 = sphi 0, %s208
      %s223 = sphi 0, %s209
      %s227 = sphi 0, %s227
      %s229 = sphi 0, %s227
      %s230 = sphi 0, %s229
      %s244 = sphi 0, %s230
      %s248 = sphi 0, %s248
      %s250 = sphi 0, %s248
      %s251 = sphi 0, %s250
      %s265 = sphi 0, %s251
      %s269 = sphi 0, %s269
      %s271 = sphi 0, %s269
      %s272 = sphi 0, %s271
      %s286 = sphi 0, %s272
      %s290 = sphi 0, %s290
      %s292 = sphi 0, %s290
      %s293 = sphi 0, %s292
      %s307 = sphi 0, %s293
      %s311 = sphi 0, %s311
      %s313 = sphi 0, %s311
      %s314 = sphi 0, %s313
      %s328 = sphi 0, %s314
      %s332 = sphi 0, %s332
      %s334 = sphi 0, %s332
      %s335 = sphi 0, %s334
      %s349 = sphi 0, %s335
      %s353 = sphi 0, %s353
      %s355 = sphi 0, %s353
      %s356 = sphi 0, %s355
      %s370 = sphi 0, %s356
      %s374 = sphi 0, %s374
      %s376 = sphi 0, %s374
      %s377 = sphi 0, %s376
      %s391 = sphi 0, %s377
      %s395 = sphi 0, %s395
      %s397 = sphi 0, %s395
      %s398 = sphi 0, %s397
      %s412 = sphi 0, %s398
      %s420 = sphi 0, %s422
      %s423 = sphi 0, %s420
      %s424 = sphi 0, %s423
      %s440 = sphi 0, %s424
    $region4: #{tpu_custom_call.1} parent=1 // loop_header_branch
      %42 = sbr.rel (%p40) target = $region8
    $region5: #{tpu_custom_call.1} parent=1 // loop_body
      %s44 = ssub.s32 %s39, 1
      %s45 = ssub.s32 %s39, 2
      %s55 = sadd.s32 1, %s48
      %p56 = scmp.ge.s32.totalorder %s55, 2
      %s57 = scalar_select %p56, 0, %s55
      %s58 = sadd.s32 1, %s47
      %s59 = scalar_select %p56, %s58, %s47
      %p60 = scmp.ge.s32.totalorder %s59, 2
      %s61 = scalar_select %p60, 0, %s59
      %s62 = sadd.s32 1, %s46
      %s63 = scalar_select %p60, %s62, %s46
      %p64 = scmp.ge.s32.totalorder %s63, 2
      %s65 = scalar_select %p64, 0, %s63
      %s66 = ssub.s32 %s46, %s65
      %s67 = ssub.s32 %s47, %s61
      %s68 = sor.u32 %s66, %s67
      %p69 = scmp.eq.s32.totalorder %s68, 0
      %s71 = sadd.s32 %s70, 1
      %s72 = scalar_select %p69, %s70, %s71
      %p75 = pneg %p69
      %p76 = scmp.eq.s32.totalorder %s39, 7
      %p77 = por %p75, %p76
      %p78 = scmp.ne.s32.totalorder %s70, %s73
      %p79 = scmp.eq.s32.totalorder %s39, 0
      %p80 = por %p78, %p79
      %p81 = scmp.ne.s32.totalorder %s70, %s73
      %p82 = scmp.eq.s32.totalorder %s44, 7
      %p83 = por %p81, %p82
      %p84 = scmp.ne.s32.totalorder %s73, %s74
      %p85 = scmp.eq.s32.totalorder %s44, 0
      %p86 = por %p84, %p85
      %p87 = scmp.ne.s32.totalorder %s73, %s74
      %p88 = scmp.eq.s32.totalorder %s45, 7
      %p89 = por %p87, %p88
      %p91 = scmp.ne.s32.totalorder %s74, %s90
      %p92 = scmp.eq.s32.totalorder %s45, 0
      %p93 = por %p91, %p92
      %s94 = ssub.s32 %s46, %s65
      %s95 = ssub.s32 %s48, %s57
      %s96 = sor.u32 %s94, %s95
      %p97 = scmp.eq.s32.totalorder %s96, 0
      %s99 = sadd.s32 %s98, 1
      %s100 = scalar_select %p97, %s98, %s99
      %p103 = pneg %p97
      %p104 = scmp.eq.s32.totalorder %s39, 7
      %p105 = por %p103, %p104
      %p106 = scmp.ne.s32.totalorder %s98, %s101
      %p107 = scmp.eq.s32.totalorder %s39, 0
      %p108 = por %p106, %p107
      %p109 = scmp.ne.s32.totalorder %s98, %s101
      %p110 = scmp.eq.s32.totalorder %s44, 7
      %p111 = por %p109, %p110
      %p112 = scmp.ne.s32.totalorder %s101, %s102
      %p113 = scmp.eq.s32.totalorder %s44, 0
      %p114 = por %p112, %p113
      %p115 = scmp.ne.s32.totalorder %s101, %s102
      %p116 = scmp.eq.s32.totalorder %s45, 7
      %p117 = por %p115, %p116
      %p119 = scmp.ne.s32.totalorder %s102, %s118
      %p120 = scmp.eq.s32.totalorder %s45, 0
      %p121 = por %p119, %p120
      %s123 = sadd.s32 %s122, 1
      %p126 = scmp.eq.s32.totalorder %s39, 7
      %p127 = scmp.ne.s32.totalorder %s122, %s124
      %p128 = scmp.eq.s32.totalorder %s39, 0
      %p129 = por %p127, %p128
      %p130 = scmp.ne.s32.totalorder %s122, %s124
      %p131 = scmp.eq.s32.totalorder %s44, 7
      %p132 = por %p130, %p131
      %p133 = scmp.ne.s32.totalorder %s124, %s125
      %p134 = scmp.eq.s32.totalorder %s44, 0
      %p135 = por %p133, %p134
      %p136 = scmp.ne.s32.totalorder %s124, %s125
      %p137 = scmp.eq.s32.totalorder %s45, 7
      %p138 = por %p136, %p137
      %p140 = scmp.ne.s32.totalorder %s125, %s139
      %p141 = scmp.eq.s32.totalorder %s45, 0
      %p142 = por %p140, %p141
      %s144 = sadd.s32 %s143, 1
      %p147 = scmp.eq.s32.totalorder %s39, 7
      %p148 = scmp.ne.s32.totalorder %s143, %s145
      %p149 = scmp.eq.s32.totalorder %s39, 0
      %p150 = por %p148, %p149
      %p151 = scmp.ne.s32.totalorder %s143, %s145
      %p152 = scmp.eq.s32.totalorder %s44, 7
      %p153 = por %p151, %p152
      %p154 = scmp.ne.s32.totalorder %s145, %s146
      %p155 = scmp.eq.s32.totalorder %s44, 0
      %p156 = por %p154, %p155
      %p157 = scmp.ne.s32.totalorder %s145, %s146
      %p158 = scmp.eq.s32.totalorder %s45, 7
      %p159 = por %p157, %p158
      %p161 = scmp.ne.s32.totalorder %s146, %s160
      %p162 = scmp.eq.s32.totalorder %s45, 0
      %p163 = por %p161, %p162
      %s165 = sadd.s32 %s164, 1
      %p168 = scmp.eq.s32.totalorder %s39, 7
      %p169 = scmp.ne.s32.totalorder %s164, %s166
      %p170 = scmp.eq.s32.totalorder %s39, 0
      %p171 = por %p169, %p170
      %p172 = scmp.ne.s32.totalorder %s164, %s166
      %p173 = scmp.eq.s32.totalorder %s44, 7
      %p174 = por %p172, %p173
      %p175 = scmp.ne.s32.totalorder %s166, %s167
      %p176 = scmp.eq.s32.totalorder %s44, 0
      %p177 = por %p175, %p176
      %p178 = scmp.ne.s32.totalorder %s166, %s167
      %p179 = scmp.eq.s32.totalorder %s45, 7
      %p180 = por %p178, %p179
      %p182 = scmp.ne.s32.totalorder %s167, %s181
      %p183 = scmp.eq.s32.totalorder %s45, 0
      %p184 = por %p182, %p183
      %s186 = sadd.s32 %s185, 1
      %p189 = scmp.eq.s32.totalorder %s39, 7
      %p190 = scmp.ne.s32.totalorder %s185, %s187
      %p191 = scmp.eq.s32.totalorder %s39, 0
      %p192 = por %p190, %p191
      %p193 = scmp.ne.s32.totalorder %s185, %s187
      %p194 = scmp.eq.s32.totalorder %s44, 7
      %p195 = por %p193, %p194
      %p196 = scmp.ne.s32.totalorder %s187, %s188
      %p197 = scmp.eq.s32.totalorder %s44, 0
      %p198 = por %p196, %p197
      %p199 = scmp.ne.s32.totalorder %s187, %s188
      %p200 = scmp.eq.s32.totalorder %s45, 7
      %p201 = por %p199, %p200
      %p203 = scmp.ne.s32.totalorder %s188, %s202
      %p204 = scmp.eq.s32.totalorder %s45, 0
      %p205 = por %p203, %p204
      %s207 = sadd.s32 %s206, 1
      %p210 = scmp.eq.s32.totalorder %s39, 7
      %p211 = scmp.ne.s32.totalorder %s206, %s208
      %p212 = scmp.eq.s32.totalorder %s39, 0
      %p213 = por %p211, %p212
      %p214 = scmp.ne.s32.totalorder %s206, %s208
      %p215 = scmp.eq.s32.totalorder %s44, 7
      %p216 = por %p214, %p215
      %p217 = scmp.ne.s32.totalorder %s208, %s209
      %p218 = scmp.eq.s32.totalorder %s44, 0
      %p219 = por %p217, %p218
      %p220 = scmp.ne.s32.totalorder %s208, %s209
      %p221 = scmp.eq.s32.totalorder %s45, 7
      %p222 = por %p220, %p221
      %p224 = scmp.ne.s32.totalorder %s209, %s223
      %p225 = scmp.eq.s32.totalorder %s45, 0
      %p226 = por %p224, %p225
      %s228 = sadd.s32 %s227, 1
      %p231 = scmp.eq.s32.totalorder %s39, 7
      %p232 = scmp.ne.s32.totalorder %s227, %s229
      %p233 = scmp.eq.s32.totalorder %s39, 0
      %p234 = por %p232, %p233
      %p235 = scmp.ne.s32.totalorder %s227, %s229
      %p236 = scmp.eq.s32.totalorder %s44, 7
      %p237 = por %p235, %p236
      %p238 = scmp.ne.s32.totalorder %s229, %s230
      %p239 = scmp.eq.s32.totalorder %s44, 0
      %p240 = por %p238, %p239
      %p241 = scmp.ne.s32.totalorder %s229, %s230
      %p242 = scmp.eq.s32.totalorder %s45, 7
      %p243 = por %p241, %p242
      %p245 = scmp.ne.s32.totalorder %s230, %s244
      %p246 = scmp.eq.s32.totalorder %s45, 0
      %p247 = por %p245, %p246
      %s249 = sadd.s32 %s248, 1
      %p252 = scmp.eq.s32.totalorder %s39, 7
      %p253 = scmp.ne.s32.totalorder %s248, %s250
      %p254 = scmp.eq.s32.totalorder %s39, 0
      %p255 = por %p253, %p254
      %p256 = scmp.ne.s32.totalorder %s248, %s250
      %p257 = scmp.eq.s32.totalorder %s44, 7
      %p258 = por %p256, %p257
      %p259 = scmp.ne.s32.totalorder %s250, %s251
      %p260 = scmp.eq.s32.totalorder %s44, 0
      %p261 = por %p259, %p260
      %p262 = scmp.ne.s32.totalorder %s250, %s251
      %p263 = scmp.eq.s32.totalorder %s45, 7
      %p264 = por %p262, %p263
      %p266 = scmp.ne.s32.totalorder %s251, %s265
      %p267 = scmp.eq.s32.totalorder %s45, 0
      %p268 = por %p266, %p267
      %s270 = sadd.s32 %s269, 1
      %p273 = scmp.eq.s32.totalorder %s39, 7
      %p274 = scmp.ne.s32.totalorder %s269, %s271
      %p275 = scmp.eq.s32.totalorder %s39, 0
      %p276 = por %p274, %p275
      %p277 = scmp.ne.s32.totalorder %s269, %s271
      %p278 = scmp.eq.s32.totalorder %s44, 7
      %p279 = por %p277, %p278
      %p280 = scmp.ne.s32.totalorder %s271, %s272
      %p281 = scmp.eq.s32.totalorder %s44, 0
      %p282 = por %p280, %p281
      %p283 = scmp.ne.s32.totalorder %s271, %s272
      %p284 = scmp.eq.s32.totalorder %s45, 7
      %p285 = por %p283, %p284
      %p287 = scmp.ne.s32.totalorder %s272, %s286
      %p288 = scmp.eq.s32.totalorder %s45, 0
      %p289 = por %p287, %p288
      %s291 = sadd.s32 %s290, 1
      %p294 = scmp.eq.s32.totalorder %s39, 7
      %p295 = scmp.ne.s32.totalorder %s290, %s292
      %p296 = scmp.eq.s32.totalorder %s39, 0
      %p297 = por %p295, %p296
      %p298 = scmp.ne.s32.totalorder %s290, %s292
      %p299 = scmp.eq.s32.totalorder %s44, 7
      %p300 = por %p298, %p299
      %p301 = scmp.ne.s32.totalorder %s292, %s293
      %p302 = scmp.eq.s32.totalorder %s44, 0
      %p303 = por %p301, %p302
      %p304 = scmp.ne.s32.totalorder %s292, %s293
      %p305 = scmp.eq.s32.totalorder %s45, 7
      %p306 = por %p304, %p305
      %p308 = scmp.ne.s32.totalorder %s293, %s307
      %p309 = scmp.eq.s32.totalorder %s45, 0
      %p310 = por %p308, %p309
      %s312 = sadd.s32 %s311, 1
      %p315 = scmp.eq.s32.totalorder %s39, 7
      %p316 = scmp.ne.s32.totalorder %s311, %s313
      %p317 = scmp.eq.s32.totalorder %s39, 0
      %p318 = por %p316, %p317
      %p319 = scmp.ne.s32.totalorder %s311, %s313
      %p320 = scmp.eq.s32.totalorder %s44, 7
      %p321 = por %p319, %p320
      %p322 = scmp.ne.s32.totalorder %s313, %s314
      %p323 = scmp.eq.s32.totalorder %s44, 0
      %p324 = por %p322, %p323
      %p325 = scmp.ne.s32.totalorder %s313, %s314
      %p326 = scmp.eq.s32.totalorder %s45, 7
      %p327 = por %p325, %p326
      %p329 = scmp.ne.s32.totalorder %s314, %s328
      %p330 = scmp.eq.s32.totalorder %s45, 0
      %p331 = por %p329, %p330
      %s333 = sadd.s32 %s332, 1
      %p336 = scmp.eq.s32.totalorder %s39, 7
      %p337 = scmp.ne.s32.totalorder %s332, %s334
      %p338 = scmp.eq.s32.totalorder %s39, 0
      %p339 = por %p337, %p338
      %p340 = scmp.ne.s32.totalorder %s332, %s334
      %p341 = scmp.eq.s32.totalorder %s44, 7
      %p342 = por %p340, %p341
      %p343 = scmp.ne.s32.totalorder %s334, %s335
      %p344 = scmp.eq.s32.totalorder %s44, 0
      %p345 = por %p343, %p344
      %p346 = scmp.ne.s32.totalorder %s334, %s335
      %p347 = scmp.eq.s32.totalorder %s45, 7
      %p348 = por %p346, %p347
      %p350 = scmp.ne.s32.totalorder %s335, %s349
      %p351 = scmp.eq.s32.totalorder %s45, 0
      %p352 = por %p350, %p351
      %s354 = sadd.s32 %s353, 1
      %p357 = scmp.eq.s32.totalorder %s39, 7
      %p358 = scmp.ne.s32.totalorder %s353, %s355
      %p359 = scmp.eq.s32.totalorder %s39, 0
      %p360 = por %p358, %p359
      %p361 = scmp.ne.s32.totalorder %s353, %s355
      %p362 = scmp.eq.s32.totalorder %s44, 7
      %p363 = por %p361, %p362
      %p364 = scmp.ne.s32.totalorder %s355, %s356
      %p365 = scmp.eq.s32.totalorder %s44, 0
      %p366 = por %p364, %p365
      %p367 = scmp.ne.s32.totalorder %s355, %s356
      %p368 = scmp.eq.s32.totalorder %s45, 7
      %p369 = por %p367, %p368
      %p371 = scmp.ne.s32.totalorder %s356, %s370
      %p372 = scmp.eq.s32.totalorder %s45, 0
      %p373 = por %p371, %p372
      %s375 = sadd.s32 %s374, 1
      %p378 = scmp.eq.s32.totalorder %s39, 7
      %p379 = scmp.ne.s32.totalorder %s374, %s376
      %p380 = scmp.eq.s32.totalorder %s39, 0
      %p381 = por %p379, %p380
      %p382 = scmp.ne.s32.totalorder %s374, %s376
      %p383 = scmp.eq.s32.totalorder %s44, 7
      %p384 = por %p382, %p383
      %p385 = scmp.ne.s32.totalorder %s376, %s377
      %p386 = scmp.eq.s32.totalorder %s44, 0
      %p387 = por %p385, %p386
      %p388 = scmp.ne.s32.totalorder %s376, %s377
      %p389 = scmp.eq.s32.totalorder %s45, 7
      %p390 = por %p388, %p389
      %p392 = scmp.ne.s32.totalorder %s377, %s391
      %p393 = scmp.eq.s32.totalorder %s45, 0
      %p394 = por %p392, %p393
      %s396 = sadd.s32 %s395, 1
      %p399 = scmp.eq.s32.totalorder %s39, 7
      %p400 = scmp.ne.s32.totalorder %s395, %s397
      %p401 = scmp.eq.s32.totalorder %s39, 0
      %p402 = por %p400, %p401
      %p403 = scmp.ne.s32.totalorder %s395, %s397
      %p404 = scmp.eq.s32.totalorder %s44, 7
      %p405 = por %p403, %p404
      %p406 = scmp.ne.s32.totalorder %s397, %s398
      %p407 = scmp.eq.s32.totalorder %s44, 0
      %p408 = por %p406, %p407
      %p409 = scmp.ne.s32.totalorder %s397, %s398
      %p410 = scmp.eq.s32.totalorder %s45, 7
      %p411 = por %p409, %p410
      %p413 = scmp.ne.s32.totalorder %s398, %s412
      %p414 = scmp.eq.s32.totalorder %s45, 0
      %p415 = por %p413, %p414
      %s416 = ssub.s32 %s46, %s65
      %s417 = ssub.s32 %s47, %s61
      %s418 = sor.u32 %s416, %s417
      %p419 = scmp.eq.s32.totalorder %s418, 0
      %s421 = sadd.s32 %s420, 1
      %s422 = scalar_select %p419, %s420, %s421
      %p425 = pneg %p419
      %p426 = scmp.eq.s32.totalorder %s39, 7
      %p427 = por %p425, %p426
      %p428 = scmp.ne.s32.totalorder %s420, %s423
      %p429 = scmp.eq.s32.totalorder %s39, 0
      %p430 = por %p428, %p429
      %p431 = scmp.ne.s32.totalorder %s420, %s423
      %p432 = scmp.eq.s32.totalorder %s44, 7
      %p433 = por %p431, %p432
      %p434 = scmp.ne.s32.totalorder %s423, %s424
      %p435 = scmp.eq.s32.totalorder %s44, 0
      %p436 = por %p434, %p435
      %p437 = scmp.ne.s32.totalorder %s423, %s424
      %p438 = scmp.eq.s32.totalorder %s45, 7
      %p439 = por %p437, %p438
      %p441 = scmp.ne.s32.totalorder %s424, %s440
      %p442 = scmp.eq.s32.totalorder %s45, 0
      %p443 = por %p441, %p442
      %p444 = scmp.le.s32.totalorder 1, %s39
      %p445 = scmp.lt.s32.totalorder %s39, 9
      %p446 = pnand %p444, %p445
      %p447 = pneg %p446
      // Predicated region
      $region9: #{tpu_custom_call.1} parent=5 // pred_check
        _
      $region10: #{tpu_custom_call.1} parent=5 // pred_check_branch
        %449 = sbr.rel (%p446) target = $region12
      $region11: #{tpu_custom_call.1} parent=5 // pred_region
        %s450 = ssub.s32 %s39, 1
        // Predicated region
        $region13: #{tpu_custom_call.1} parent=11 // pred_check
          %p451 = pneg %p135
        $region14: #{tpu_custom_call.1} parent=11 // pred_check_branch
          %453 = sbr.rel (%p451) target = $region16
        $region15: #{tpu_custom_call.1} parent=11 // pred_region
          _
        $region16: #{tpu_custom_call.1} parent=11 // pred_fallthru
          _
        // Predicated region
        $region17: #{tpu_custom_call.1} parent=11 // pred_check
          %p454 = pneg %p156
        $region18: #{tpu_custom_call.1} parent=11 // pred_check_branch
          %456 = sbr.rel (%p454) target = $region20
        $region19: #{tpu_custom_call.1} parent=11 // pred_region
          _
        $region20: #{tpu_custom_call.1} parent=11 // pred_fallthru
          _
        // Predicated region
        $region21: #{tpu_custom_call.1} parent=11 // pred_check
          %p457 = pneg %p177
        $region22: #{tpu_custom_call.1} parent=11 // pred_check_branch
          %459 = sbr.rel (%p457) target = $region24
        $region23: #{tpu_custom_call.1} parent=11 // pred_region
          _
        $region24: #{tpu_custom_call.1} parent=11 // pred_fallthru
          _
        // Predicated region
        $region25: #{tpu_custom_call.1} parent=11 // pred_check
          %p460 = pneg %p198
        $region26: #{tpu_custom_call.1} parent=11 // pred_check_branch
          %462 = sbr.rel (%p460) target = $region28
        $region27: #{tpu_custom_call.1} parent=11 // pred_region
          _
        $region28: #{tpu_custom_call.1} parent=11 // pred_fallthru
          _
        // Predicated region
        $region29: #{tpu_custom_call.1} parent=11 // pred_check
          %p463 = pneg %p219
        $region30: #{tpu_custom_call.1} parent=11 // pred_check_branch
          %465 = sbr.rel (%p463) target = $region32
        $region31: #{tpu_custom_call.1} parent=11 // pred_region
          %467 = vsyncadd [#allocation12], 0
          %s468 = sshll.u32 %s7, 4
          %s469 = int_to_ptr.hbm [resolvable:$true] %s468
          %s470 = sshll.u32 [#allocation11], 4
          %s471 = int_to_ptr.vmem [resolvable:$true] %s470
          %476 = dma.hbm_to_vmem [thread:$0]  %s469, 256, %s471, [#allocation12], 64, 64, 4
        $region32: #{tpu_custom_call.1} parent=11 // pred_fallthru
          _
        // Predicated region
        $region33: #{tpu_custom_call.1} parent=11 // pred_check
          %p477 = pneg %p240
        $region34: #{tpu_custom_call.1} parent=11 // pred_check_branch
          %479 = sbr.rel (%p477) target = $region36
        $region35: #{tpu_custom_call.1} parent=11 // pred_region
          _
        $region36: #{tpu_custom_call.1} parent=11 // pred_fallthru
          _
        // Predicated region
        $region37: #{tpu_custom_call.1} parent=11 // pred_check
          %p480 = pneg %p261
        $region38: #{tpu_custom_call.1} parent=11 // pred_check_branch
          %482 = sbr.rel (%p480) target = $region40
        $region39: #{tpu_custom_call.1} parent=11 // pred_region
          %484 = vsyncadd [#allocation12], 0
          %s485 = sshll.u32 %s9, 4
          %s486 = int_to_ptr.hbm [resolvable:$true] %s485
          %s487 = sshll.u32 [#allocation13], 4
          %s488 = int_to_ptr.vmem [resolvable:$true] %s487
          %493 = dma.hbm_to_vmem [thread:$0]  %s486, 256, %s488, [#allocation12], 64, 64, 4
        $region40: #{tpu_custom_call.1} parent=11 // pred_fallthru
          _
        // Predicated region
        $region41: #{tpu_custom_call.1} parent=11 // pred_check
          %p494 = pneg %p282
        $region42: #{tpu_custom_call.1} parent=11 // pred_check_branch
          %496 = sbr.rel (%p494) target = $region44
        $region43: #{tpu_custom_call.1} parent=11 // pred_region
          _
        $region44: #{tpu_custom_call.1} parent=11 // pred_fallthru
          _
        // Predicated region
        $region45: #{tpu_custom_call.1} parent=11 // pred_check
          %p497 = pneg %p303
        $region46: #{tpu_custom_call.1} parent=11 // pred_check_branch
          %499 = sbr.rel (%p497) target = $region48
        $region47: #{tpu_custom_call.1} parent=11 // pred_region
          _
        $region48: #{tpu_custom_call.1} parent=11 // pred_fallthru
          _
        // Predicated region
        $region49: #{tpu_custom_call.1} parent=11 // pred_check
          %p500 = pneg %p324
        $region50: #{tpu_custom_call.1} parent=11 // pred_check_branch
          %502 = sbr.rel (%p500) target = $region52
        $region51: #{tpu_custom_call.1} parent=11 // pred_region
          _
        $region52: #{tpu_custom_call.1} parent=11 // pred_fallthru
          _
        // Predicated region
        $region53: #{tpu_custom_call.1} parent=11 // pred_check
          %p503 = pneg %p345
        $region54: #{tpu_custom_call.1} parent=11 // pred_check_branch
          %505 = sbr.rel (%p503) target = $region56
        $region55: #{tpu_custom_call.1} parent=11 // pred_region
          %507 = vsyncadd [#allocation15], 0
          %s508 = sshll.u32 %s13, 4
          %s509 = int_to_ptr.hbm [resolvable:$true] %s508
          %s510 = sshll.u32 [#allocation14], 4
          %s511 = int_to_ptr.vmem [resolvable:$true] %s510
          %516 = dma.hbm_to_vmem [thread:$0]  %s509, 256, %s511, [#allocation15], 64, 64, 4
        $region56: #{tpu_custom_call.1} parent=11 // pred_fallthru
          _
        // Predicated region
        $region57: #{tpu_custom_call.1} parent=11 // pred_check
          %p517 = pneg %p366
        $region58: #{tpu_custom_call.1} parent=11 // pred_check_branch
          %519 = sbr.rel (%p517) target = $region60
        $region59: #{tpu_custom_call.1} parent=11 // pred_region
          _
        $region60: #{tpu_custom_call.1} parent=11 // pred_fallthru
          _
        // Predicated region
        $region61: #{tpu_custom_call.1} parent=11 // pred_check
          %p520 = pneg %p387
        $region62: #{tpu_custom_call.1} parent=11 // pred_check_branch
          %522 = sbr.rel (%p520) target = $region64
        $region63: #{tpu_custom_call.1} parent=11 // pred_region
          _
        $region64: #{tpu_custom_call.1} parent=11 // pred_fallthru
          _
        // Predicated region
        $region65: #{tpu_custom_call.1} parent=11 // pred_check
          %p523 = pneg %p408
        $region66: #{tpu_custom_call.1} parent=11 // pred_check_branch
          %525 = sbr.rel (%p523) target = $region68
        $region67: #{tpu_custom_call.1} parent=11 // pred_region
          _
        $region68: #{tpu_custom_call.1} parent=11 // pred_fallthru
          _
      $region12: #{tpu_custom_call.1} parent=5 // pred_fallthru
        _
      %p526 = scmp.lt.s32.totalorder %s39, 8
      // Predicated region
      $region69: #{tpu_custom_call.1} parent=5 // pred_check
        %p527 = pneg %p526
      $region70: #{tpu_custom_call.1} parent=5 // pred_check_branch
        %529 = sbr.rel (%p527) target = $region72
      $region71: #{tpu_custom_call.1} parent=5 // pred_region
        // Predicated region
        $region73: #{tpu_custom_call.1} parent=71 // pred_check
          %p530 = pneg %p80
        $region74: #{tpu_custom_call.1} parent=71 // pred_check_branch
          %532 = sbr.rel (%p530) target = $region76
        $region75: #{tpu_custom_call.1} parent=71 // pred_region
          %p533 = scmp.lt.s32.totalorder %s46, 1
          %s534 = scalar_select %p533, %s46, 1
          %p535 = scmp.lt.s32.totalorder %s47, 1
          %s536 = scalar_select %p535, %s47, 1
          %s537 = smul.addr %s534, 2
          %s538 = sadd.s32 %s536, %s537
          %s539 = smul.addr %s538, 8
          %s540 = scalar_lea.vmem %s1, %s539
        $region76: #{tpu_custom_call.1} parent=71 // pred_fallthru
          _
        // Predicated region
        $region77: #{tpu_custom_call.1} parent=71 // pred_check
          %p541 = pneg %p108
        $region78: #{tpu_custom_call.1} parent=71 // pred_check_branch
          %543 = sbr.rel (%p541) target = $region80
        $region79: #{tpu_custom_call.1} parent=71 // pred_region
          %s544 = sand.u32 %s98, 1
          %s545 = scalar_lea.sflag [#allocation9], %s544
          %s546 = sand.u32 %s98, 1
          %s547 = smul.addr %s546, 8
          %s548 = scalar_lea.vmem [#allocation8], %s547
          %550 = vsyncadd %s545, 0
          %s551 = smul.addr %s46, 2
          %s552 = sadd.s32 %s48, %s551
          %s553 = smul.addr %s552, 8
          %s554 = scalar_lea.hbm %s2, %s553
          %s556 = sshll.u32 %s554, 4
          %s557 = int_to_ptr.hbm [resolvable:$true] %s556
          %s558 = sshll.u32 %s548, 4
          %s559 = int_to_ptr.vmem [resolvable:$true] %s558
          %561 = dma.hbm_to_vmem [thread:$0]  %s557, 128, %s559, %s545
        $region80: #{tpu_custom_call.1} parent=71 // pred_fallthru
          _
      $region72: #{tpu_custom_call.1} parent=5 // pred_fallthru
        _
      %p562 = scmp.le.s32.totalorder 1, %s39
      %p563 = scmp.lt.s32.totalorder %s39, 9
      %p564 = pnand %p562, %p563
      %p565 = pneg %p564
      // Predicated region
      $region81: #{tpu_custom_call.1} parent=5 // pred_check
        _
      $region82: #{tpu_custom_call.1} parent=5 // pred_check_branch
        %567 = sbr.rel (%p564) target = $region84
      $region83: #{tpu_custom_call.1} parent=5 // pred_region
        %s568 = ssub.s32 %s39, 1
        %s569 = sand.u32 %s101, 1
        %s570 = scalar_lea.sflag [#allocation9], %s569
        %s571 = sand.u32 %s101, 1
        %s572 = smul.addr %s571, 8
        %s573 = scalar_lea.vmem [#allocation8], %s572
        // Predicated region
        $region85: #{tpu_custom_call.1} parent=83 // pred_check
          %p574 = pneg %p114
        $region86: #{tpu_custom_call.1} parent=83 // pred_check_branch
          %576 = sbr.rel (%p574) target = $region88
        $region87: #{tpu_custom_call.1} parent=83 // pred_region
          %578 = dma.done %s570, 128
        $region88: #{tpu_custom_call.1} parent=83 // pred_fallthru
          _
        // Predicated region
        $region89: #{tpu_custom_call.1} parent=83 // pred_check
          %p579 = pneg %p219
        $region90: #{tpu_custom_call.1} parent=83 // pred_check_branch
          %581 = sbr.rel (%p579) target = $region92
        $region91: #{tpu_custom_call.1} parent=83 // pred_region
          %583 = dma.done [#allocation12], 256
        $region92: #{tpu_custom_call.1} parent=83 // pred_fallthru
          _
        // Predicated region
        $region93: #{tpu_custom_call.1} parent=83 // pred_check
          %p584 = pneg %p261
        $region94: #{tpu_custom_call.1} parent=83 // pred_check_branch
          %586 = sbr.rel (%p584) target = $region96
        $region95: #{tpu_custom_call.1} parent=83 // pred_region
          %588 = dma.done [#allocation12], 256
        $region96: #{tpu_custom_call.1} parent=83 // pred_fallthru
          _
        // Predicated region
        $region97: #{tpu_custom_call.1} parent=83 // pred_check
          %p589 = pneg %p345
        $region98: #{tpu_custom_call.1} parent=83 // pred_check_branch
          %591 = sbr.rel (%p589) target = $region100
        $region99: #{tpu_custom_call.1} parent=83 // pred_region
          %593 = dma.done [#allocation15], 256
        $region100: #{tpu_custom_call.1} parent=83 // pred_fallthru
          _
        %p594 = scmp.lt.s32.totalorder %s49, 1
        %s595 = scalar_select %p594, %s49, 1
        %p596 = scmp.lt.s32.totalorder %s50, 1
        %s597 = scalar_select %p596, %s50, 1
        %s598 = smul.addr %s595, 2
        %s599 = sadd.s32 %s597, %s598
        %s600 = smul.addr %s599, 8
        %s601 = scalar_lea.vmem %s1, %s600
        %p602 = pneg %p86
        %p603 = pneg %p83
        %s604 = sand.u32 %s101, 1
        %s605 = scalar_lea.sflag [#allocation9], %s604
        %s606 = sand.u32 %s101, 1
        %s607 = smul.addr %s606, 8
        %s608 = scalar_lea.vmem [#allocation8], %s607
        %p609 = pneg %p114
        %p610 = pneg %p111
        %p611 = pneg %p135
        %p612 = pneg %p132
        %p613 = pneg %p156
        %p614 = pneg %p153
        %p615 = pneg %p177
        %p616 = pneg %p174
        %p617 = pneg %p198
        %p618 = pneg %p195
        %p619 = pneg %p219
        %p620 = pneg %p216
        %p621 = pneg %p240
        %p622 = pneg %p237
        %p623 = pneg %p261
        %p624 = pneg %p258
        %p625 = pneg %p282
        %p626 = pneg %p279
        %p627 = pneg %p303
        %p628 = pneg %p300
        %p629 = pneg %p324
        %p630 = pneg %p321
        %p631 = pneg %p345
        %p632 = pneg %p342
        %p633 = pneg %p366
        %p634 = pneg %p363
        %p635 = pneg %p387
        %p636 = pneg %p384
        %p637 = pneg %p408
        %p638 = pneg %p405
        %p639 = pneg %p436
        %p640 = pneg %p433
        %s641 = sand.u32 %s423, 1
        %s642 = scalar_lea.sflag [#allocation10], %s641
        %s643 = sand.u32 %s423, 1
        %s644 = smul.addr %s643, 8
        %s645 = scalar_lea.vmem [#allocation16], %s644
        %p646 = scmp.lt.s32.totalorder %s49, 1
        %s647 = scalar_select %p646, %s49, 1
        %p648 = scmp.lt.s32.totalorder %s50, 1
        %s649 = scalar_select %p648, %s50, 1
        %s650 = smul.addr %s647, 2
        %s651 = sadd.s32 %s649, %s650
        %s652 = smul.addr %s651, 8
        %s653 = scalar_lea.vmem %s1, %s652
        %p655 = scmp.eq.s32.totalorder %s51, 0
        // Predicated region
        $region101: #{tpu_custom_call.1} parent=83 // pred_check
          %p656 = pneg %p655
        $region102: #{tpu_custom_call.1} parent=83 // pred_check_branch
          %658 = sbr.rel (%p656) target = $region104
        $region103: #{tpu_custom_call.1} parent=83 // pred_region
          %v659 = vld [vmem:[%s653] sm:$0xff]
          %v660 = vld [vmem:[%s3] sm:$0x1]
          %v661 = vld [vmem:[%s4] sm:$0x1]
          %vm662 = vcmask 261120
          %v663 = vsel %vm662, %v659, 0.0
          %664 = vadd.xlane.f32.xlu0 %v663
          %v665 = vpop.xlane.xlu0 %664
          %v666 = vrcp.pop 32.0
          %v667 = vmul.f32 32.0, %v666
          %v668 = vsub.f32 1.0, %v667
          %v669 = vmul.f32 %v666, %v668
          %v670 = vadd.f32 %v666, %v669
          %vm671 = vweird.f32 %v666
          %v672 = vsel %vm671, %v666, %v670
          %v673 = vmul.f32 %v665, %v672
          %v674 = vsub.f32 %v659, %v673
          %v675 = vmul.f32 %v674, %v674
          %v676 = vsel %vm662, %v675, 0.0
          %677 = vadd.xlane.f32.xlu0 %v676
          %v678 = vpop.xlane.xlu0 %677
          %v679 = vmul.f32 %v678, %v672
          %v680 = vadd.f32 %v679, 1e-05
          %v681 = vrsqrt.pop %v680
          %v682 = vmul.f32 %v681, %v680
          %v683 = vmul.f32 %v682, %v681
          %v684 = vmul.f32 0.5, %v683
          %v685 = vsub.f32 1.5, %v684
          %v686 = vmul.f32 %v681, %v685
          %vm687 = vweird.f32 %v680
          %vm688 = vweird.f32 %v681
          %vm689 = vmor %vm687, %vm688
          %v690 = vsel %vm689, %v681, %v686
          %v691 = vmul.f32 %v674, %v690
          %v693 = vperm.slane %v660, 0
          %v695 = vmul.f32 %v691, %v693
          %v697 = vperm.slane %v661, 0
          %v699 = vadd.f32 %v695, %v697
          %v700 = vpack.c.bf16 %v699, %v699
          %v701 = vld [vmem:[%s5] sm:$0xf]
          %v702 = vld [vmem:[%s5 + $0x4] sm:$0xf]
          %v703 = vld [vmem:[%s5 + $0x8] sm:$0xf]
          %v704 = vld [vmem:[%s5 + $0xc] sm:$0xf]
          %v705 = vld [vmem:[%s6] sm:$0x1]
          %v707 = vperm.slane %v705, 0
          %v713 = vunpack.c.l.b16 %v701
          %v714 = vunpack.c.l.b16 %v702
          %v715 = vunpack.c.l.b16 %v703
          %v716 = vunpack.c.l.b16 %v704
          %v717 = vpack.c.b16 %v714, %v713
          %v718 = vpack.c.b16 %v716, %v715
          %v722 = vsel %vm662, %v700, 0
          %724 = vmatpush.bf16.msra.mxu0 0
          %725 = vmatpush.bf16.msra.mxu0 0
          %726 = vmatpush.bf16.msra.mxu0 0
          %727 = vmatpush.bf16.msra.mxu0 0
          %728 = vmatpush.bf16.msra.mxu0 0
          %729 = vmatpush.bf16.msra.mxu0 0
          %730 = vmatpush.bf16.msra.mxu0 %v718
          %731 = vmatpush.bf16.msra.mxu0 %v717
          %732 = vmatmul.bf16.gmra.mxu0 %v722
          %v733 = vpop.f32.mrf.mxu0
          %v734 = vadd.f32 %v707, %v733
          %v735 = vpop.f32.mrf.mxu0
          %736 = vdwg.mxu0
          %v737 = vmul.f32 %v734, 0.35355338
          %739 = vrot.lane.b32.xlu0 %v737, 120
          %v740 = vpop.permute.xlu0 %739
          %742 = vrot.lane.b32.xlu0 %v737, 112
          %v743 = vpop.permute.xlu0 %742
          %745 = vrot.lane.b32.xlu0 %v737, 104
          %v746 = vpop.permute.xlu0 %745
          %v748 = vrot.slane %v743, 4
          %vm749 = vcmask 1047556
          %v750 = vsel %vm749, %v748, %v737
          %v751 = vrot.slane %v737, 4
          %v752 = vsel %vm749, %v743, %v751
          %v754 = vunpack.c.l.s4 1983009808
          %v755 = vunpack.c.0.s8 %v754
          %v756 = vperm.slane %v750, %v755
          %v758 = vunpack.c.l.s4 1983009808
          %v759 = vunpack.c.0.s8 %v758
          %v760 = vperm.slane %v752, %v759
          %v761 = vrot.slane %v746, 4
          %v762 = vsel %vm749, %v761, %v740
          %v763 = vrot.slane %v740, 4
          %v764 = vsel %vm749, %v746, %v763
          %v766 = vunpack.c.l.s4 1983009808
          %v767 = vunpack.c.0.s8 %v766
          %v768 = vperm.slane %v762, %v767
          %v770 = vunpack.c.l.s4 1983009808
          %v771 = vunpack.c.0.s8 %v770
          %v772 = vperm.slane %v764, %v771
          %v773 = vrot.slane %v768, 4
          %v774 = vsel %vm749, %v773, %v756
          %v775 = vrot.slane %v756, 4
          %v776 = vsel %vm749, %v768, %v775
          %v778 = vunpack.c.l.s4 1934713408
          %v779 = vunpack.c.0.s8 %v778
          %v780 = vperm.slane %v774, %v779
          %v782 = vunpack.c.l.s4 1934713408
          %v783 = vunpack.c.0.s8 %v782
          %v784 = vperm.slane %v776, %v783
          %v785 = vrot.slane %v772, 4
          %v786 = vsel %vm749, %v785, %v760
          %v787 = vrot.slane %v760, 4
          %v788 = vsel %vm749, %v772, %v787
          %v790 = vunpack.c.l.s4 1934713408
          %v791 = vunpack.c.0.s8 %v790
          %v792 = vperm.slane %v786, %v791
          %v794 = vunpack.c.l.s4 1934713408
          %v795 = vunpack.c.0.s8 %v794
          %v796 = vperm.slane %v788, %v795
          %v797 = vrot.slane %v780, 4
          %v798 = vsel %vm749, 0.0, %v797
          %v799 = vrot.slane %v784, 4
          %v800 = vsel %vm749, 0.0, %v799
          %v801 = vrot.slane %v792, 4
          %v802 = vsel %vm749, 0.0, %v801
          %v803 = vrot.slane %v796, 4
          %v804 = vsel %vm749, 0.0, %v803
          %v805 = vsel %vm749, %v799, %v780
          %v807 = vunpack.c.l.s4 1983009808
          %v808 = vunpack.c.0.s8 %v807
          %v809 = vperm.slane %v805, %v808
          %v810 = vrot.slane %v800, 4
          %v811 = vsel %vm749, %v810, %v798
          %v813 = vunpack.c.l.s4 1983009808
          %v814 = vunpack.c.0.s8 %v813
          %v815 = vperm.slane %v811, %v814
          %v816 = vsel %vm749, %v803, %v792
          %v818 = vunpack.c.l.s4 1983009808
          %v819 = vunpack.c.0.s8 %v818
          %v820 = vperm.slane %v816, %v819
          %v821 = vrot.slane %v804, 4
          %v822 = vsel %vm749, %v821, %v802
          %v824 = vunpack.c.l.s4 1983009808
          %v825 = vunpack.c.0.s8 %v824
          %v826 = vperm.slane %v822, %v825
          %v827 = vrot.slane %v815, 4
          %v828 = vsel %vm749, %v827, %v809
          %v829 = vrot.slane %v809, 4
          %v830 = vsel %vm749, %v815, %v829
          %v832 = vunpack.c.l.s4 1934713408
          %v833 = vunpack.c.0.s8 %v832
          %v834 = vperm.slane %v828, %v833
          %v836 = vunpack.c.l.s4 1934713408
          %v837 = vunpack.c.0.s8 %v836
          %v838 = vperm.slane %v830, %v837
          %v839 = vrot.slane %v826, 4
          %v840 = vsel %vm749, %v839, %v820
          %v841 = vrot.slane %v820, 4
          %v842 = vsel %vm749, %v826, %v841
          %v844 = vunpack.c.l.s4 1934713408
          %v845 = vunpack.c.0.s8 %v844
          %v846 = vperm.slane %v840, %v845
          %v848 = vunpack.c.l.s4 1934713408
          %v849 = vunpack.c.0.s8 %v848
          %v850 = vperm.slane %v842, %v849
          %v851 = vrot.slane %v846, 4
          %v852 = vsel %vm749, %v851, %v834
          %v853 = vrot.slane %v834, 4
          %v854 = vsel %vm749, %v846, %v853
          %v855 = vrot.slane %v850, 4
          %v856 = vsel %vm749, %v855, %v838
          %v857 = vrot.slane %v838, 4
          %v858 = vsel %vm749, %v850, %v857
          %v859 = vpack.c.bf16 %v852, %v852
          %v860 = vpack.c.bf16 %v854, %v854
          %v861 = vpack.c.bf16 %v856, %v856
          %v862 = vpack.c.bf16 %v858, %v858
          %vm863 = vcmask 60416
          %864 = vst.msk [vmem:[#allocation2] sm:$0xf] %vm863, %v859
          %865 = vst.msk [vmem:[#allocation2 + $0x4] sm:$0xf] %vm863, %v860
          %866 = vst.msk [vmem:[#allocation2 + $0x8] sm:$0xf] %vm863, %v861
          %867 = vst.msk [vmem:[#allocation2 + $0xc] sm:$0xf] %vm863, %v862
          %vm868 = vcmask 7168
          %869 = vst.msk [vmem:[#allocation3] sm:$0xff] %vm868, -inf
          %870 = vst.msk [vmem:[#allocation3 + $0x8] sm:$0xff] %vm868, -inf
          %871 = vst.msk [vmem:[#allocation3 + $0x10] sm:$0xff] %vm868, -inf
          %872 = vst.msk [vmem:[#allocation3 + $0x18] sm:$0xff] %vm868, -inf
          %873 = vst.msk [vmem:[#allocation4] sm:$0xff] %vm868, 0.0
          %874 = vst.msk [vmem:[#allocation4 + $0x8] sm:$0xff] %vm868, 0.0
          %875 = vst.msk [vmem:[#allocation4 + $0x10] sm:$0xff] %vm868, 0.0
          %876 = vst.msk [vmem:[#allocation4 + $0x18] sm:$0xff] %vm868, 0.0
          %vm877 = vcmask 64512
          %878 = vst.msk [vmem:[#allocation5] sm:$0xff] %vm877, 0.0
          %879 = vst.msk [vmem:[#allocation5 + $0x8] sm:$0xff] %vm877, 0.0
          %880 = vst.msk [vmem:[#allocation5 + $0x10] sm:$0xff] %vm877, 0.0
          %881 = vst.msk [vmem:[#allocation5 + $0x18] sm:$0xff] %vm877, 0.0
        $region104: #{tpu_custom_call.1} parent=83 // pred_fallthru
          _
        %v882 = vld [vmem:[%s573] sm:$0xff]
        %v883 = vld [vmem:[%s3] sm:$0x1]
        %v884 = vld [vmem:[%s4] sm:$0x1]
        %vm885 = vcmask 261120
        %v886 = vsel %vm885, %v882, 0.0
        %887 = vadd.xlane.f32.xlu0 %v886
        %v888 = vpop.xlane.xlu0 %887
        %v889 = vrcp.pop 32.0
        %v890 = vmul.f32 32.0, %v889
        %v891 = vsub.f32 1.0, %v890
        %v892 = vmul.f32 %v889, %v891
        %v893 = vadd.f32 %v889, %v892
        %vm894 = vweird.f32 %v889
        %v895 = vsel %vm894, %v889, %v893
        %v896 = vmul.f32 %v888, %v895
        %v897 = vsub.f32 %v882, %v896
        %v898 = vmul.f32 %v897, %v897
        %v899 = vsel %vm885, %v898, 0.0
        %900 = vadd.xlane.f32.xlu0 %v899
        %v901 = vpop.xlane.xlu0 %900
        %v902 = vmul.f32 %v901, %v895
        %v903 = vadd.f32 %v902, 1e-05
        %v904 = vrsqrt.pop %v903
        %v905 = vmul.f32 %v904, %v903
        %v906 = vmul.f32 %v905, %v904
        %v907 = vmul.f32 0.5, %v906
        %v908 = vsub.f32 1.5, %v907
        %v909 = vmul.f32 %v904, %v908
        %vm910 = vweird.f32 %v903
        %vm911 = vweird.f32 %v904
        %vm912 = vmor %vm910, %vm911
        %v913 = vsel %vm912, %v904, %v909
        %v914 = vmul.f32 %v897, %v913
        %v916 = vperm.slane %v883, 0
        %v918 = vmul.f32 %v914, %v916
        %v920 = vperm.slane %v884, 0
        %v922 = vadd.f32 %v918, %v920
        %v923 = vpack.c.bf16 %v922, %v922
        %v924 = vld [vmem:[#allocation11] sm:$0xf]
        %v925 = vld [vmem:[#allocation11 + $0x4] sm:$0xf]
        %v926 = vld [vmem:[#allocation11 + $0x8] sm:$0xf]
        %v927 = vld [vmem:[#allocation11 + $0xc] sm:$0xf]
        %v928 = vld [vmem:[%s8] sm:$0x1]
        %v930 = vperm.slane %v928, 0
        %v936 = vunpack.c.l.b16 %v924
        %v937 = vunpack.c.l.b16 %v925
        %v938 = vunpack.c.l.b16 %v926
        %v939 = vunpack.c.l.b16 %v927
        %v940 = vpack.c.b16 %v937, %v936
        %v941 = vpack.c.b16 %v939, %v938
        %v945 = vsel %vm885, %v923, 0
        %947 = vmatpush.bf16.msra.mxu0 0
        %948 = vmatpush.bf16.msra.mxu0 0
        %949 = vmatpush.bf16.msra.mxu0 0
        %950 = vmatpush.bf16.msra.mxu0 0
        %951 = vmatpush.bf16.msra.mxu0 0
        %952 = vmatpush.bf16.msra.mxu0 0
        %953 = vmatpush.bf16.msra.mxu0 %v941
        %954 = vmatpush.bf16.msra.mxu0 %v940
        %955 = vmatmul.bf16.gmra.mxu0 %v945
        %v956 = vpop.f32.mrf.mxu0
        %v957 = vadd.f32 %v930, %v956
        %v958 = vpop.f32.mrf.mxu0
        %959 = vdwg.mxu0
        %v960 = vpack.c.bf16 %v957, %v957
        %962 = vrot.lane.b32.xlu0 %v960, 120
        %v963 = vpop.permute.xlu0 %962
        %964 = vrot.lane.b32.xlu0 %v960, 112
        %v965 = vpop.permute.xlu0 %964
        %966 = vrot.lane.b32.xlu0 %v960, 104
        %v967 = vpop.permute.xlu0 %966
        %v970 = vpack.i.b16 %v963, %v960
        %v971 = vshrl.u32 %v960, 16
        %v972 = vshrl.u32 %v963, 16
        %v973 = vpack.i.b16 %v972, %v971
        %v976 = vpack.i.b16 %v967, %v965
        %v977 = vshrl.u32 %v965, 16
        %v978 = vshrl.u32 %v967, 16
        %v979 = vpack.i.b16 %v978, %v977
        %v982 = vunpack.c.l.s4 1983009808
        %v983 = vunpack.c.0.s8 %v982
        %v984 = vperm.slane %v970, %v983
        %v987 = vunpack.c.l.s4 1983009808
        %v988 = vunpack.c.0.s8 %v987
        %v989 = vperm.slane %v976, %v988
        %v990 = vrot.slane %v989, 4
        %vm991 = vcmask 1047556
        %v992 = vsel %vm991, %v990, %v984
        %v993 = vrot.slane %v984, 4
        %v994 = vsel %vm991, %v989, %v993
        %v996 = vunpack.c.l.s4 1934713408
        %v997 = vunpack.c.0.s8 %v996
        %v998 = vperm.slane %v992, %v997
        %v1000 = vunpack.c.l.s4 1934713408
        %v1001 = vunpack.c.0.s8 %v1000
        %v1002 = vperm.slane %v994, %v1001
        %v1003 = vrot.slane %v998, 4
        %v1004 = vsel %vm991, 0, %v1003
        %v1005 = vrot.slane %v1002, 4
        %v1006 = vsel %vm991, 0, %v1005
        %v1009 = vunpack.c.l.s4 1983009808
        %v1010 = vunpack.c.0.s8 %v1009
        %v1011 = vperm.slane %v973, %v1010
        %v1014 = vunpack.c.l.s4 1983009808
        %v1015 = vunpack.c.0.s8 %v1014
        %v1016 = vperm.slane %v979, %v1015
        %v1017 = vrot.slane %v1016, 4
        %v1018 = vsel %vm991, %v1017, %v1011
        %v1019 = vrot.slane %v1011, 4
        %v1020 = vsel %vm991, %v1016, %v1019
        %v1022 = vunpack.c.l.s4 1934713408
        %v1023 = vunpack.c.0.s8 %v1022
        %v1024 = vperm.slane %v1018, %v1023
        %v1026 = vunpack.c.l.s4 1934713408
        %v1027 = vunpack.c.0.s8 %v1026
        %v1028 = vperm.slane %v1020, %v1027
        %v1029 = vrot.slane %v1024, 4
        %v1030 = vsel %vm991, 0, %v1029
        %v1031 = vrot.slane %v1028, 4
        %v1032 = vsel %vm991, 0, %v1031
        %v1033 = vsel %vm991, %v1005, %v998
        %v1035 = vunpack.c.l.s4 1983009808
        %v1036 = vunpack.c.0.s8 %v1035
        %v1037 = vperm.slane %v1033, %v1036
        %v1038 = vrot.slane %v1006, 4
        %v1039 = vsel %vm991, %v1038, %v1004
        %v1041 = vunpack.c.l.s4 1983009808
        %v1042 = vunpack.c.0.s8 %v1041
        %v1043 = vperm.slane %v1039, %v1042
        %v1044 = vrot.slane %v1043, 4
        %v1045 = vsel %vm991, %v1044, %v1037
        %v1047 = vunpack.c.l.s4 1934713408
        %v1048 = vunpack.c.0.s8 %v1047
        %v1049 = vperm.slane %v1045, %v1048
        %v1050 = vrot.slane %v1049, 4
        %v1051 = vsel %vm991, 0, %v1050
        %v1052 = vsel %vm991, %v1031, %v1024
        %v1054 = vunpack.c.l.s4 1983009808
        %v1055 = vunpack.c.0.s8 %v1054
        %v1056 = vperm.slane %v1052, %v1055
        %v1057 = vrot.slane %v1032, 4
        %v1058 = vsel %vm991, %v1057, %v1030
        %v1060 = vunpack.c.l.s4 1983009808
        %v1061 = vunpack.c.0.s8 %v1060
        %v1062 = vperm.slane %v1058, %v1061
        %v1063 = vrot.slane %v1062, 4
        %v1064 = vsel %vm991, %v1063, %v1056
        %v1066 = vunpack.c.l.s4 1934713408
        %v1067 = vunpack.c.0.s8 %v1066
        %v1068 = vperm.slane %v1064, %v1067
        %v1069 = vrot.slane %v1068, 4
        %v1070 = vsel %vm991, 0, %v1069
        %v1073 = vpack.i.b16 %v1068, %v1049
        %v1074 = vshrl.u32 %v1049, 16
        %v1075 = vshrl.u32 %v1068, 16
        %v1076 = vpack.i.b16 %v1075, %v1074
        %v1079 = vpack.i.b16 %v1070, %v1051
        %v1080 = vshrl.u32 %v1051, 16
        %v1081 = vshrl.u32 %v1070, 16
        %v1082 = vpack.i.b16 %v1081, %v1080
        %1083 = vrot.lane.b32.xlu0 %v960, 96
        %v1084 = vpop.permute.xlu0 %1083
        %1085 = vrot.lane.b32.xlu0 %v963, 96
        %v1086 = vpop.permute.xlu0 %1085
        %1087 = vrot.lane.b32.xlu0 %v965, 96
        %v1088 = vpop.permute.xlu0 %1087
        %1089 = vrot.lane.b32.xlu0 %v967, 96
        %v1090 = vpop.permute.xlu0 %1089
        %v1093 = vpack.i.b16 %v1086, %v1084
        %v1094 = vshrl.u32 %v1084, 16
        %v1095 = vshrl.u32 %v1086, 16
        %v1096 = vpack.i.b16 %v1095, %v1094
        %v1099 = vpack.i.b16 %v1090, %v1088
        %v1100 = vshrl.u32 %v1088, 16
        %v1101 = vshrl.u32 %v1090, 16
        %v1102 = vpack.i.b16 %v1101, %v1100
        %v1105 = vunpack.c.l.s4 1983009808
        %v1106 = vunpack.c.0.s8 %v1105
        %v1107 = vperm.slane %v1093, %v1106
        %v1110 = vunpack.c.l.s4 1983009808
        %v1111 = vunpack.c.0.s8 %v1110
        %v1112 = vperm.slane %v1099, %v1111
        %v1113 = vrot.slane %v1112, 4
        %v1114 = vsel %vm991, %v1113, %v1107
        %v1115 = vrot.slane %v1107, 4
        %v1116 = vsel %vm991, %v1112, %v1115
        %v1118 = vunpack.c.l.s4 1934713408
        %v1119 = vunpack.c.0.s8 %v1118
        %v1120 = vperm.slane %v1114, %v1119
        %v1122 = vunpack.c.l.s4 1934713408
        %v1123 = vunpack.c.0.s8 %v1122
        %v1124 = vperm.slane %v1116, %v1123
        %v1125 = vrot.slane %v1120, 4
        %v1126 = vsel %vm991, 0, %v1125
        %v1127 = vrot.slane %v1124, 4
        %v1128 = vsel %vm991, 0, %v1127
        %v1131 = vunpack.c.l.s4 1983009808
        %v1132 = vunpack.c.0.s8 %v1131
        %v1133 = vperm.slane %v1096, %v1132
        %v1136 = vunpack.c.l.s4 1983009808
        %v1137 = vunpack.c.0.s8 %v1136
        %v1138 = vperm.slane %v1102, %v1137
        %v1139 = vrot.slane %v1138, 4
        %v1140 = vsel %vm991, %v1139, %v1133
        %v1141 = vrot.slane %v1133, 4
        %v1142 = vsel %vm991, %v1138, %v1141
        %v1144 = vunpack.c.l.s4 1934713408
        %v1145 = vunpack.c.0.s8 %v1144
        %v1146 = vperm.slane %v1140, %v1145
        %v1148 = vunpack.c.l.s4 1934713408
        %v1149 = vunpack.c.0.s8 %v1148
        %v1150 = vperm.slane %v1142, %v1149
        %v1151 = vrot.slane %v1146, 4
        %v1152 = vsel %vm991, 0, %v1151
        %v1153 = vrot.slane %v1150, 4
        %v1154 = vsel %vm991, 0, %v1153
        %v1155 = vsel %vm991, %v1127, %v1120
        %v1157 = vunpack.c.l.s4 1983009808
        %v1158 = vunpack.c.0.s8 %v1157
        %v1159 = vperm.slane %v1155, %v1158
        %v1160 = vrot.slane %v1128, 4
        %v1161 = vsel %vm991, %v1160, %v1126
        %v1163 = vunpack.c.l.s4 1983009808
        %v1164 = vunpack.c.0.s8 %v1163
        %v1165 = vperm.slane %v1161, %v1164
        %v1166 = vrot.slane %v1165, 4
        %v1167 = vsel %vm991, %v1166, %v1159
        %v1169 = vunpack.c.l.s4 1934713408
        %v1170 = vunpack.c.0.s8 %v1169
        %v1171 = vperm.slane %v1167, %v1170
        %v1172 = vrot.slane %v1171, 4
        %v1173 = vsel %vm991, 0, %v1172
        %v1174 = vsel %vm991, %v1153, %v1146
        %v1176 = vunpack.c.l.s4 1983009808
        %v1177 = vunpack.c.0.s8 %v1176
        %v1178 = vperm.slane %v1174, %v1177
        %v1179 = vrot.slane %v1154, 4
        %v1180 = vsel %vm991, %v1179, %v1152
        %v1182 = vunpack.c.l.s4 1983009808
        %v1183 = vunpack.c.0.s8 %v1182
        %v1184 = vperm.slane %v1180, %v1183
        %v1185 = vrot.slane %v1184, 4
        %v1186 = vsel %vm991, %v1185, %v1178
        %v1188 = vunpack.c.l.s4 1934713408
        %v1189 = vunpack.c.0.s8 %v1188
        %v1190 = vperm.slane %v1186, %v1189
        %v1191 = vrot.slane %v1190, 4
        %v1192 = vsel %vm991, 0, %v1191
        %v1195 = vpack.i.b16 %v1190, %v1171
        %v1196 = vshrl.u32 %v1171, 16
        %v1197 = vshrl.u32 %v1190, 16
        %v1198 = vpack.i.b16 %v1197, %v1196
        %v1201 = vpack.i.b16 %v1192, %v1173
        %v1202 = vshrl.u32 %v1173, 16
        %v1203 = vshrl.u32 %v1192, 16
        %v1204 = vpack.i.b16 %v1203, %v1202
        %v1205 = vld [vmem:[#allocation2] sm:$0xf]
        %v1206 = vld [vmem:[#allocation2 + $0x4] sm:$0xf]
        %v1207 = vld [vmem:[#allocation2 + $0x8] sm:$0xf]
        %v1208 = vld [vmem:[#allocation2 + $0xc] sm:$0xf]
        %vm1209 = vcmask 64512
        %v1211 = vsel %vm1209, %v1205, 0
        %v1214 = vsel %vm1209, %v1073, 0
        %1216 = vmatpush.bf16.xpose.msra.mxu0 0
        %1217 = vmatpush.bf16.xpose.msra.mxu0 0
        %1218 = vmatpush.bf16.xpose.msra.mxu0 0
        %1219 = vmatpush.bf16.xpose.msra.mxu0 0
        %1220 = vmatpush.bf16.xpose.msra.mxu0 0
        %1221 = vmatpush.bf16.xpose.msra.mxu0 0
        %1222 = vmatpush.bf16.xpose.msra.mxu0 0
        %1223 = vmatpush.bf16.xpose.msra.mxu0 %v1214
        %1224 = vmatmul.bf16.gmra.mxu0 %v1211
        %v1225 = vpop.f32.mrf.mxu0
        %v1226 = vadd.f32 0.0, %v1225
        %v1227 = vpop.f32.mrf.mxu0
        %1228 = vdwg.mxu0
        %v1230 = vsel %vm1209, %v1206, 0
        %v1233 = vsel %vm1209, %v1076, 0
        %1235 = vmatpush.bf16.xpose.msra.mxu0 0
        %1236 = vmatpush.bf16.xpose.msra.mxu0 0
        %1237 = vmatpush.bf16.xpose.msra.mxu0 0
        %1238 = vmatpush.bf16.xpose.msra.mxu0 0
        %1239 = vmatpush.bf16.xpose.msra.mxu0 0
        %1240 = vmatpush.bf16.xpose.msra.mxu0 0
        %1241 = vmatpush.bf16.xpose.msra.mxu0 0
        %1242 = vmatpush.bf16.xpose.msra.mxu0 %v1233
        %1243 = vmatmul.bf16.gmra.mxu0 %v1230
        %v1244 = vpop.f32.mrf.mxu0
        %v1245 = vadd.f32 0.0, %v1244
        %v1246 = vpop.f32.mrf.mxu0
        %1247 = vdwg.mxu0
        %v1249 = vsel %vm1209, %v1207, 0
        %v1252 = vsel %vm1209, %v1079, 0
        %1254 = vmatpush.bf16.xpose.msra.mxu0 0
        %1255 = vmatpush.bf16.xpose.msra.mxu0 0
        %1256 = vmatpush.bf16.xpose.msra.mxu0 0
        %1257 = vmatpush.bf16.xpose.msra.mxu0 0
        %1258 = vmatpush.bf16.xpose.msra.mxu0 0
        %1259 = vmatpush.bf16.xpose.msra.mxu0 0
        %1260 = vmatpush.bf16.xpose.msra.mxu0 0
        %1261 = vmatpush.bf16.xpose.msra.mxu0 %v1252
        %1262 = vmatmul.bf16.gmra.mxu0 %v1249
        %v1263 = vpop.f32.mrf.mxu0
        %v1264 = vadd.f32 0.0, %v1263
        %v1265 = vpop.f32.mrf.mxu0
        %1266 = vdwg.mxu0
        %v1268 = vsel %vm1209, %v1208, 0
        %v1271 = vsel %vm1209, %v1082, 0
        %1273 = vmatpush.bf16.xpose.msra.mxu0 0
        %1274 = vmatpush.bf16.xpose.msra.mxu0 0
        %1275 = vmatpush.bf16.xpose.msra.mxu0 0
        %1276 = vmatpush.bf16.xpose.msra.mxu0 0
        %1277 = vmatpush.bf16.xpose.msra.mxu0 0
        %1278 = vmatpush.bf16.xpose.msra.mxu0 0
        %1279 = vmatpush.bf16.xpose.msra.mxu0 0
        %1280 = vmatpush.bf16.xpose.msra.mxu0 %v1271
        %1281 = vmatmul.bf16.gmra.mxu0 %v1268
        %v1282 = vpop.f32.mrf.mxu0
        %v1283 = vadd.f32 0.0, %v1282
        %v1284 = vpop.f32.mrf.mxu0
        %1285 = vdwg.mxu0
        %s1286 = sld [smem:[#allocation7 + %s49]]
        %s1287 = smul.u32 %s51, 8
        %v1288 = vlaneseq
        %v1289 = vand.u32 %v1288, 127
        %v1290 = vstv %s1287
        %v1291 = vadd.s32 %v1290, %v1289
        %v1292 = vstv %s1286
        %vm1293 = vcmp.ge.s32.totalorder %v1291, %v1292
        %v1294 = vsel %vm1293, 1, 0
        %vm1295 = vcmp.eq.s32.totalorder %v1294, 1
        %v1296 = vsel %vm1295, -1e+09, %v1226
        %v1297 = vsel %vm1295, -1e+09, %v1245
        %v1298 = vsel %vm1295, -1e+09, %v1264
        %v1299 = vsel %vm1295, -1e+09, %v1283
        %v1300 = vld [vmem:[#allocation3] sm:$0xff]
        %v1301 = vld [vmem:[#allocation3 + $0x8] sm:$0xff]
        %v1302 = vld [vmem:[#allocation3 + $0x10] sm:$0xff]
        %v1303 = vld [vmem:[#allocation3 + $0x18] sm:$0xff]
        %v1304 = vsel %vm1209, %v1296, -inf
        %1305 = vmax.xlane.f32.xlu0 %v1304
        %v1306 = vpop.xlane.xlu0 %1305
        %v1307 = vsel %vm1209, %v1297, -inf
        %1308 = vmax.xlane.f32.xlu0 %v1307
        %v1309 = vpop.xlane.xlu0 %1308
        %v1310 = vsel %vm1209, %v1298, -inf
        %1311 = vmax.xlane.f32.xlu0 %v1310
        %v1312 = vpop.xlane.xlu0 %1311
        %v1313 = vsel %vm1209, %v1299, -inf
        %1314 = vmax.xlane.f32.xlu0 %v1313
        %v1315 = vpop.xlane.xlu0 %1314
        %v1316 = vmax.f32 %v1300, %v1306
        %v1317 = vmax.f32 %v1301, %v1309
        %v1318 = vmax.f32 %v1302, %v1312
        %v1319 = vmax.f32 %v1303, %v1315
        %v1320 = vsub.f32 %v1300, %v1316
        %v1321 = vsub.f32 %v1301, %v1317
        %v1322 = vsub.f32 %v1302, %v1318
        %v1323 = vsub.f32 %v1303, %v1319
        %v1324 = vmul.f32 %v1320, 1.442695
        %v1325 = vpow.pop %v1324
        %v1326 = vmul.f32 %v1321, 1.442695
        %v1327 = vpow.pop %v1326
        %v1328 = vmul.f32 %v1322, 1.442695
        %v1329 = vpow.pop %v1328
        %v1330 = vmul.f32 %v1323, 1.442695
        %v1331 = vpow.pop %v1330
        %1333 = vset.pattern.permute.xlu0 0
        %1334 = vperm.xlu0 %1333, %v1316
        %v1335 = vpop.permute.xlu0 %1334
        %1338 = vset.pattern.permute.xlu0 0
        %1339 = vperm.xlu0 %1338, %v1317
        %v1340 = vpop.permute.xlu0 %1339
        %1343 = vset.pattern.permute.xlu0 0
        %1344 = vperm.xlu0 %1343, %v1318
        %v1345 = vpop.permute.xlu0 %1344
        %1348 = vset.pattern.permute.xlu0 0
        %1349 = vperm.xlu0 %1348, %v1319
        %v1350 = vpop.permute.xlu0 %1349
        %v1352 = vsub.f32 %v1296, %v1335
        %v1353 = vsub.f32 %v1297, %v1340
        %v1354 = vsub.f32 %v1298, %v1345
        %v1355 = vsub.f32 %v1299, %v1350
        %v1356 = vmul.f32 %v1352, 1.442695
        %v1357 = vpow.pop %v1356
        %v1358 = vmul.f32 %v1353, 1.442695
        %v1359 = vpow.pop %v1358
        %v1360 = vmul.f32 %v1354, 1.442695
        %v1361 = vpow.pop %v1360
        %v1362 = vmul.f32 %v1355, 1.442695
        %v1363 = vpow.pop %v1362
        %v1364 = vld [vmem:[#allocation4] sm:$0xff]
        %v1365 = vld [vmem:[#allocation4 + $0x8] sm:$0xff]
        %v1366 = vld [vmem:[#allocation4 + $0x10] sm:$0xff]
        %v1367 = vld [vmem:[#allocation4 + $0x18] sm:$0xff]
        %v1368 = vmul.f32 %v1325, %v1364
        %v1369 = vmul.f32 %v1327, %v1365
        %v1370 = vmul.f32 %v1329, %v1366
        %v1371 = vmul.f32 %v1331, %v1367
        %v1372 = vsel %vm1209, %v1357, 0.0
        %1373 = vadd.xlane.f32.xlu0 %v1372
        %v1374 = vpop.xlane.xlu0 %1373
        %v1375 = vsel %vm1209, %v1359, 0.0
        %1376 = vadd.xlane.f32.xlu0 %v1375
        %v1377 = vpop.xlane.xlu0 %1376
        %v1378 = vsel %vm1209, %v1361, 0.0
        %1379 = vadd.xlane.f32.xlu0 %v1378
        %v1380 = vpop.xlane.xlu0 %1379
        %v1381 = vsel %vm1209, %v1363, 0.0
        %1382 = vadd.xlane.f32.xlu0 %v1381
        %v1383 = vpop.xlane.xlu0 %1382
        %v1384 = vadd.f32 %v1368, %v1374
        %v1385 = vadd.f32 %v1369, %v1377
        %v1386 = vadd.f32 %v1370, %v1380
        %v1387 = vadd.f32 %v1371, %v1383
        %vm1388 = vcmask 7168
        %1389 = vst.msk [vmem:[#allocation4] sm:$0xff] %vm1388, %v1384
        %1390 = vst.msk [vmem:[#allocation4 + $0x8] sm:$0xff] %vm1388, %v1385
        %1391 = vst.msk [vmem:[#allocation4 + $0x10] sm:$0xff] %vm1388, %v1386
        %1392 = vst.msk [vmem:[#allocation4 + $0x18] sm:$0xff] %vm1388, %v1387
        %v1393 = vld [vmem:[#allocation5] sm:$0xff]
        %v1394 = vld [vmem:[#allocation5 + $0x8] sm:$0xff]
        %v1395 = vld [vmem:[#allocation5 + $0x10] sm:$0xff]
        %v1396 = vld [vmem:[#allocation5 + $0x18] sm:$0xff]
        %1398 = vset.pattern.permute.xlu0 0
        %1399 = vperm.xlu0 %1398, %v1325
        %v1400 = vpop.permute.xlu0 %1399
        %1403 = vset.pattern.permute.xlu0 0
        %1404 = vperm.xlu0 %1403, %v1327
        %v1405 = vpop.permute.xlu0 %1404
        %1408 = vset.pattern.permute.xlu0 0
        %1409 = vperm.xlu0 %1408, %v1329
        %v1410 = vpop.permute.xlu0 %1409
        %1413 = vset.pattern.permute.xlu0 0
        %1414 = vperm.xlu0 %1413, %v1331
        %v1415 = vpop.permute.xlu0 %1414
        %v1417 = vmul.f32 %v1400, %v1393
        %v1418 = vmul.f32 %v1405, %v1394
        %v1419 = vmul.f32 %v1410, %v1395
        %v1420 = vmul.f32 %v1415, %v1396
        %v1421 = vpack.c.bf16 %v1357, %v1357
        %v1422 = vpack.c.bf16 %v1359, %v1359
        %v1423 = vpack.c.bf16 %v1361, %v1361
        %v1424 = vpack.c.bf16 %v1363, %v1363
        %v1426 = vsel %vm1209, %v1421, 0
        %vm1428 = vcmask 1043456
        %v1430 = vsel %vm1428, %v1195, 0
        %1432 = vmatpush.bf16.msra.mxu0 0
        %1433 = vmatpush.bf16.msra.mxu0 0
        %1434 = vmatpush.bf16.msra.mxu0 0
        %1435 = vmatpush.bf16.msra.mxu0 0
        %1436 = vmatpush.bf16.msra.mxu0 0
        %1437 = vmatpush.bf16.msra.mxu0 0
        %1438 = vmatpush.bf16.msra.mxu0 0
        %1439 = vmatpush.bf16.msra.mxu0 %v1430
        %1440 = vmatmul.bf16.gmra.mxu0 %v1426
        %v1441 = vpop.f32.mrf.mxu0
        %v1442 = vadd.f32 0.0, %v1441
        %v1443 = vpop.f32.mrf.mxu0
        %1444 = vdwg.mxu0
        %v1446 = vsel %vm1209, %v1422, 0
        %v1449 = vsel %vm1428, %v1198, 0
        %1451 = vmatpush.bf16.msra.mxu0 0
        %1452 = vmatpush.bf16.msra.mxu0 0
        %1453 = vmatpush.bf16.msra.mxu0 0
        %1454 = vmatpush.bf16.msra.mxu0 0
        %1455 = vmatpush.bf16.msra.mxu0 0
        %1456 = vmatpush.bf16.msra.mxu0 0
        %1457 = vmatpush.bf16.msra.mxu0 0
        %1458 = vmatpush.bf16.msra.mxu0 %v1449
        %1459 = vmatmul.bf16.gmra.mxu0 %v1446
        %v1460 = vpop.f32.mrf.mxu0
        %v1461 = vadd.f32 0.0, %v1460
        %v1462 = vpop.f32.mrf.mxu0
        %1463 = vdwg.mxu0
        %v1465 = vsel %vm1209, %v1423, 0
        %v1468 = vsel %vm1428, %v1201, 0
        %1470 = vmatpush.bf16.msra.mxu0 0
        %1471 = vmatpush.bf16.msra.mxu0 0
        %1472 = vmatpush.bf16.msra.mxu0 0
        %1473 = vmatpush.bf16.msra.mxu0 0
        %1474 = vmatpush.bf16.msra.mxu0 0
        %1475 = vmatpush.bf16.msra.mxu0 0
        %1476 = vmatpush.bf16.msra.mxu0 0
        %1477 = vmatpush.bf16.msra.mxu0 %v1468
        %1478 = vmatmul.bf16.gmra.mxu0 %v1465
        %v1479 = vpop.f32.mrf.mxu0
        %v1480 = vadd.f32 0.0, %v1479
        %v1481 = vpop.f32.mrf.mxu0
        %1482 = vdwg.mxu0
        %v1484 = vsel %vm1209, %v1424, 0
        %v1487 = vsel %vm1428, %v1204, 0
        %1489 = vmatpush.bf16.msra.mxu0 0
        %1490 = vmatpush.bf16.msra.mxu0 0
        %1491 = vmatpush.bf16.msra.mxu0 0
        %1492 = vmatpush.bf16.msra.mxu0 0
        %1493 = vmatpush.bf16.msra.mxu0 0
        %1494 = vmatpush.bf16.msra.mxu0 0
        %1495 = vmatpush.bf16.msra.mxu0 0
        %1496 = vmatpush.bf16.msra.mxu0 %v1487
        %1497 = vmatmul.bf16.gmra.mxu0 %v1484
        %v1498 = vpop.f32.mrf.mxu0
        %v1499 = vadd.f32 0.0, %v1498
        %v1500 = vpop.f32.mrf.mxu0
        %1501 = vdwg.mxu0
        %v1502 = vadd.f32 %v1417, %v1442
        %v1503 = vadd.f32 %v1418, %v1461
        %v1504 = vadd.f32 %v1419, %v1480
        %v1505 = vadd.f32 %v1420, %v1499
        %1506 = vst.msk [vmem:[#allocation5] sm:$0xff] %vm1209, %v1502
        %1507 = vst.msk [vmem:[#allocation5 + $0x8] sm:$0xff] %vm1209, %v1503
        %1508 = vst.msk [vmem:[#allocation5 + $0x10] sm:$0xff] %vm1209, %v1504
        %1509 = vst.msk [vmem:[#allocation5 + $0x18] sm:$0xff] %vm1209, %v1505
        %1510 = vst.msk [vmem:[#allocation3] sm:$0xff] %vm1388, %v1316
        %1511 = vst.msk [vmem:[#allocation3 + $0x8] sm:$0xff] %vm1388, %v1317
        %1512 = vst.msk [vmem:[#allocation3 + $0x10] sm:$0xff] %vm1388, %v1318
        %1513 = vst.msk [vmem:[#allocation3 + $0x18] sm:$0xff] %vm1388, %v1319
        %p1514 = scmp.eq.s32.totalorder %s51, 1
        // Predicated region
        $region105: #{tpu_custom_call.1} parent=83 // pred_check
          %p1515 = pneg %p1514
        $region106: #{tpu_custom_call.1} parent=83 // pred_check_branch
          %1517 = sbr.rel (%p1515) target = $region108
        $region107: #{tpu_custom_call.1} parent=83 // pred_region
          %v1518 = vld [vmem:[#allocation4] sm:$0xff]
          %v1519 = vld [vmem:[#allocation4 + $0x8] sm:$0xff]
          %v1520 = vld [vmem:[#allocation4 + $0x10] sm:$0xff]
          %v1521 = vld [vmem:[#allocation4 + $0x18] sm:$0xff]
          %v1522 = vrcp.pop %v1518
          %v1523 = vrcp.pop %v1519
          %v1524 = vrcp.pop %v1520
          %v1525 = vrcp.pop %v1521
          %v1526 = vld [vmem:[#allocation5] sm:$0xff]
          %v1527 = vld [vmem:[#allocation5 + $0x8] sm:$0xff]
          %v1528 = vld [vmem:[#allocation5 + $0x10] sm:$0xff]
          %v1529 = vld [vmem:[#allocation5 + $0x18] sm:$0xff]
          %1531 = vset.pattern.permute.xlu0 0
          %1532 = vperm.xlu0 %1531, %v1522
          %v1533 = vpop.permute.xlu0 %1532
          %1536 = vset.pattern.permute.xlu0 0
          %1537 = vperm.xlu0 %1536, %v1523
          %v1538 = vpop.permute.xlu0 %1537
          %1541 = vset.pattern.permute.xlu0 0
          %1542 = vperm.xlu0 %1541, %v1524
          %v1543 = vpop.permute.xlu0 %1542
          %1546 = vset.pattern.permute.xlu0 0
          %1547 = vperm.xlu0 %1546, %v1525
          %v1548 = vpop.permute.xlu0 %1547
          %v1550 = vmul.f32 %v1526, %v1533
          %v1551 = vmul.f32 %v1527, %v1538
          %v1552 = vmul.f32 %v1528, %v1543
          %v1553 = vmul.f32 %v1529, %v1548
          %v1554 = vrot.slane %v1552, 4
          %vm1555 = vcmask 1047556
          %v1556 = vsel %vm1555, %v1554, %v1550
          %v1557 = vrot.slane %v1550, 4
          %v1558 = vsel %vm1555, %v1552, %v1557
          %v1560 = vunpack.c.l.s4 1983009808
          %v1561 = vunpack.c.0.s8 %v1560
          %v1562 = vperm.slane %v1556, %v1561
          %v1564 = vunpack.c.l.s4 1983009808
          %v1565 = vunpack.c.0.s8 %v1564
          %v1566 = vperm.slane %v1558, %v1565
          %v1567 = vrot.slane %v1553, 4
          %v1568 = vsel %vm1555, %v1567, %v1551
          %v1569 = vrot.slane %v1551, 4
          %v1570 = vsel %vm1555, %v1553, %v1569
          %v1572 = vunpack.c.l.s4 1983009808
          %v1573 = vunpack.c.0.s8 %v1572
          %v1574 = vperm.slane %v1568, %v1573
          %v1576 = vunpack.c.l.s4 1983009808
          %v1577 = vunpack.c.0.s8 %v1576
          %v1578 = vperm.slane %v1570, %v1577
          %v1579 = vrot.slane %v1574, 4
          %v1580 = vsel %vm1555, %v1579, %v1562
          %v1581 = vrot.slane %v1562, 4
          %v1582 = vsel %vm1555, %v1574, %v1581
          %v1584 = vunpack.c.l.s4 1934713408
          %v1585 = vunpack.c.0.s8 %v1584
          %v1586 = vperm.slane %v1580, %v1585
          %v1588 = vunpack.c.l.s4 1934713408
          %v1589 = vunpack.c.0.s8 %v1588
          %v1590 = vperm.slane %v1582, %v1589
          %v1591 = vrot.slane %v1578, 4
          %v1592 = vsel %vm1555, %v1591, %v1566
          %v1593 = vrot.slane %v1566, 4
          %v1594 = vsel %vm1555, %v1578, %v1593
          %v1596 = vunpack.c.l.s4 1934713408
          %v1597 = vunpack.c.0.s8 %v1596
          %v1598 = vperm.slane %v1592, %v1597
          %v1600 = vunpack.c.l.s4 1934713408
          %v1601 = vunpack.c.0.s8 %v1600
          %v1602 = vperm.slane %v1594, %v1601
          %v1603 = vrot.slane %v1586, 4
          %v1604 = vsel %vm1555, 0.0, %v1603
          %v1605 = vrot.slane %v1590, 4
          %v1606 = vsel %vm1555, 0.0, %v1605
          %v1607 = vrot.slane %v1598, 4
          %v1608 = vsel %vm1555, 0.0, %v1607
          %v1609 = vrot.slane %v1602, 4
          %v1610 = vsel %vm1555, 0.0, %v1609
          %v1611 = vsel %vm1555, %v1605, %v1586
          %v1613 = vunpack.c.l.s4 1983009808
          %v1614 = vunpack.c.0.s8 %v1613
          %v1615 = vperm.slane %v1611, %v1614
          %v1616 = vrot.slane %v1606, 4
          %v1617 = vsel %vm1555, %v1616, %v1604
          %v1619 = vunpack.c.l.s4 1983009808
          %v1620 = vunpack.c.0.s8 %v1619
          %v1621 = vperm.slane %v1617, %v1620
          %v1622 = vsel %vm1555, %v1609, %v1598
          %v1624 = vunpack.c.l.s4 1983009808
          %v1625 = vunpack.c.0.s8 %v1624
          %v1626 = vperm.slane %v1622, %v1625
          %v1627 = vrot.slane %v1610, 4
          %v1628 = vsel %vm1555, %v1627, %v1608
          %v1630 = vunpack.c.l.s4 1983009808
          %v1631 = vunpack.c.0.s8 %v1630
          %v1632 = vperm.slane %v1628, %v1631
          %v1633 = vrot.slane %v1621, 4
          %v1634 = vsel %vm1555, %v1633, %v1615
          %v1635 = vrot.slane %v1615, 4
          %v1636 = vsel %vm1555, %v1621, %v1635
          %v1638 = vunpack.c.l.s4 1934713408
          %v1639 = vunpack.c.0.s8 %v1638
          %v1640 = vperm.slane %v1634, %v1639
          %v1642 = vunpack.c.l.s4 1934713408
          %v1643 = vunpack.c.0.s8 %v1642
          %v1644 = vperm.slane %v1636, %v1643
          %v1645 = vrot.slane %v1632, 4
          %v1646 = vsel %vm1555, %v1645, %v1626
          %v1647 = vrot.slane %v1626, 4
          %v1648 = vsel %vm1555, %v1632, %v1647
          %v1650 = vunpack.c.l.s4 1934713408
          %v1651 = vunpack.c.0.s8 %v1650
          %v1652 = vperm.slane %v1646, %v1651
          %v1654 = vunpack.c.l.s4 1934713408
          %v1655 = vunpack.c.0.s8 %v1654
          %v1656 = vperm.slane %v1648, %v1655
          %v1657 = vrot.slane %v1652, 4
          %v1658 = vsel %vm1555, %v1657, %v1640
          %v1659 = vrot.slane %v1640, 4
          %v1660 = vsel %vm1555, %v1652, %v1659
          %v1661 = vrot.slane %v1656, 4
          %v1662 = vsel %vm1555, %v1661, %v1644
          %v1663 = vrot.slane %v1644, 4
          %v1664 = vsel %vm1555, %v1656, %v1663
          %1666 = vrot.lane.b32.xlu0 %v1660, 8
          %v1667 = vpop.permute.xlu0 %1666
          %1670 = vrot.lane.b32.xlu0 %v1662, 16
          %v1671 = vpop.permute.xlu0 %1670
          %1674 = vrot.lane.b32.xlu0 %v1664, 24
          %v1675 = vpop.permute.xlu0 %1674
          %v1677 = vsel %vm1209, %v1658, %v1667
          %vm1678 = vcmask 130048
          %v1679 = vsel %vm1678, %v1677, %v1671
          %vm1680 = vcmask 195584
          %v1681 = vsel %vm1680, %v1679, %v1675
          %v1682 = vpack.c.bf16 %v1681, %v1681
          %v1683 = vld [vmem:[#allocation13] sm:$0xf]
          %v1684 = vld [vmem:[#allocation13 + $0x4] sm:$0xf]
          %v1685 = vld [vmem:[#allocation13 + $0x8] sm:$0xf]
          %v1686 = vld [vmem:[#allocation13 + $0xc] sm:$0xf]
          %v1687 = vld [vmem:[%s10] sm:$0x1]
          %v1689 = vperm.slane %v1687, 0
          %v1695 = vunpack.c.l.b16 %v1683
          %v1696 = vunpack.c.l.b16 %v1684
          %v1697 = vunpack.c.l.b16 %v1685
          %v1698 = vunpack.c.l.b16 %v1686
          %v1699 = vpack.c.b16 %v1696, %v1695
          %v1700 = vpack.c.b16 %v1698, %v1697
          %v1704 = vsel %vm885, %v1682, 0
          %1706 = vmatpush.bf16.msra.mxu0 0
          %1707 = vmatpush.bf16.msra.mxu0 0
          %1708 = vmatpush.bf16.msra.mxu0 0
          %1709 = vmatpush.bf16.msra.mxu0 0
          %1710 = vmatpush.bf16.msra.mxu0 0
          %1711 = vmatpush.bf16.msra.mxu0 0
          %1712 = vmatpush.bf16.msra.mxu0 %v1700
          %1713 = vmatpush.bf16.msra.mxu0 %v1699
          %1714 = vmatmul.bf16.gmra.mxu0 %v1704
          %v1715 = vpop.f32.mrf.mxu0
          %v1716 = vadd.f32 %v1689, %v1715
          %v1717 = vpop.f32.mrf.mxu0
          %1718 = vdwg.mxu0
          %v1719 = vld [vmem:[%s653] sm:$0xff]
          %v1720 = vadd.f32 %v1719, %v1716
          %v1721 = vld [vmem:[%s11] sm:$0x1]
          %v1722 = vld [vmem:[%s12] sm:$0x1]
          %v1723 = vsel %vm885, %v1720, 0.0
          %1724 = vadd.xlane.f32.xlu0 %v1723
          %v1725 = vpop.xlane.xlu0 %1724
          %v1726 = vmul.f32 %v1725, %v895
          %v1727 = vsub.f32 %v1720, %v1726
          %v1728 = vmul.f32 %v1727, %v1727
          %v1729 = vsel %vm885, %v1728, 0.0
          %1730 = vadd.xlane.f32.xlu0 %v1729
          %v1731 = vpop.xlane.xlu0 %1730
          %v1732 = vmul.f32 %v1731, %v895
          %v1733 = vadd.f32 %v1732, 1e-05
          %v1734 = vrsqrt.pop %v1733
          %v1735 = vmul.f32 %v1734, %v1733
          %v1736 = vmul.f32 %v1735, %v1734
          %v1737 = vmul.f32 0.5, %v1736
          %v1738 = vsub.f32 1.5, %v1737
          %v1739 = vmul.f32 %v1734, %v1738
          %vm1740 = vweird.f32 %v1733
          %vm1741 = vweird.f32 %v1734
          %vm1742 = vmor %vm1740, %vm1741
          %v1743 = vsel %vm1742, %v1734, %v1739
          %v1744 = vmul.f32 %v1727, %v1743
          %v1746 = vperm.slane %v1721, 0
          %v1748 = vmul.f32 %v1744, %v1746
          %v1750 = vperm.slane %v1722, 0
          %v1752 = vadd.f32 %v1748, %v1750
          %v1753 = vpack.c.bf16 %v1752, %v1752
          %v1754 = vld [vmem:[#allocation14] sm:$0xf]
          %v1755 = vld [vmem:[#allocation14 + $0x4] sm:$0xf]
          %v1756 = vld [vmem:[#allocation14 + $0x8] sm:$0xf]
          %v1757 = vld [vmem:[#allocation14 + $0xc] sm:$0xf]
          %v1758 = vld [vmem:[%s14] sm:$0x1]
          %v1760 = vperm.slane %v1758, 0
          %v1766 = vunpack.c.l.b16 %v1754
          %v1767 = vunpack.c.l.b16 %v1755
          %v1768 = vunpack.c.l.b16 %v1756
          %v1769 = vunpack.c.l.b16 %v1757
          %v1770 = vpack.c.b16 %v1767, %v1766
          %v1771 = vpack.c.b16 %v1769, %v1768
          %v1775 = vsel %vm885, %v1753, 0
          %1777 = vmatpush.bf16.msra.mxu0 0
          %1778 = vmatpush.bf16.msra.mxu0 0
          %1779 = vmatpush.bf16.msra.mxu0 0
          %1780 = vmatpush.bf16.msra.mxu0 0
          %1781 = vmatpush.bf16.msra.mxu0 0
          %1782 = vmatpush.bf16.msra.mxu0 0
          %1783 = vmatpush.bf16.msra.mxu0 %v1771
          %1784 = vmatpush.bf16.msra.mxu0 %v1770
          %1785 = vmatmul.bf16.gmra.mxu0 %v1775
          %v1786 = vpop.f32.mrf.mxu0
          %v1787 = vadd.f32 %v1760, %v1786
          %v1788 = vpop.f32.mrf.mxu0
          %1789 = vdwg.mxu0
          %v1790 = vmul.f32 %v1787, %v1787
          %v1791 = vmul.f32 %v1790, %v1787
          %v1792 = vmul.f32 %v1787, 0.5
          %v1793 = vmul.f32 %v1791, 0.044715
          %v1794 = vadd.f32 %v1787, %v1793
          %v1795 = vmul.f32 %v1794, 0.7978846
          %v1796 = vtanh.pop %v1795
          %v1797 = vadd.f32 %v1796, 1.0
          %v1798 = vmul.f32 %v1792, %v1797
          %v1799 = vpack.c.bf16 %v1798, %v1798
          %v1800 = vld [vmem:[%s15] sm:$0xf]
          %v1801 = vld [vmem:[%s15 + $0x4] sm:$0xf]
          %v1802 = vld [vmem:[%s15 + $0x8] sm:$0xf]
          %v1803 = vld [vmem:[%s15 + $0xc] sm:$0xf]
          %v1804 = vld [vmem:[%s15 + $0x10] sm:$0xf]
          %v1805 = vld [vmem:[%s15 + $0x14] sm:$0xf]
          %v1806 = vld [vmem:[%s15 + $0x18] sm:$0xf]
          %v1807 = vld [vmem:[%s15 + $0x1c] sm:$0xf]
          %v1808 = vld [vmem:[%s16] sm:$0x1]
          %v1810 = vperm.slane %v1808, 0
          %v1820 = vunpack.c.l.b16 %v1800
          %v1821 = vunpack.c.l.b16 %v1801
          %v1822 = vunpack.c.l.b16 %v1802
          %v1823 = vunpack.c.l.b16 %v1803
          %v1824 = vunpack.c.l.b16 %v1804
          %v1825 = vunpack.c.l.b16 %v1805
          %v1826 = vunpack.c.l.b16 %v1806
          %v1827 = vunpack.c.l.b16 %v1807
          %v1828 = vpack.c.b16 %v1821, %v1820
          %v1829 = vpack.c.b16 %v1823, %v1822
          %v1830 = vpack.c.b16 %v1825, %v1824
          %v1831 = vpack.c.b16 %v1827, %v1826
          %vm1836 = vcmask 523264
          %v1838 = vsel %vm1836, %v1799, 0
          %1840 = vmatpush.bf16.msra.mxu0 0
          %1841 = vmatpush.bf16.msra.mxu0 0
          %1842 = vmatpush.bf16.msra.mxu0 0
          %1843 = vmatpush.bf16.msra.mxu0 0
          %1844 = vmatpush.bf16.msra.mxu0 %v1831
          %1845 = vmatpush.bf16.msra.mxu0 %v1830
          %1846 = vmatpush.bf16.msra.mxu0 %v1829
          %1847 = vmatpush.bf16.msra.mxu0 %v1828
          %1848 = vmatmul.bf16.gmra.mxu0 %v1838
          %v1849 = vpop.f32.mrf.mxu0
          %v1850 = vadd.f32 %v1810, %v1849
          %v1851 = vpop.f32.mrf.mxu0
          %1852 = vdwg.mxu0
          %v1853 = vadd.f32 %v1720, %v1850
          %1854 = vst.msk [vmem:[%s645] sm:$0xff] %vm885, %v1853
        $region108: #{tpu_custom_call.1} parent=83 // pred_fallthru
          _
        %s1855 = sand.u32 %s423, 1
        %s1856 = scalar_lea.sflag [#allocation10], %s1855
        %s1857 = sand.u32 %s423, 1
        %s1858 = smul.addr %s1857, 8
        %s1859 = scalar_lea.vmem [#allocation16], %s1858
        // Predicated region
        $region109: #{tpu_custom_call.1} parent=83 // pred_check
          %p1860 = pneg %p433
        $region110: #{tpu_custom_call.1} parent=83 // pred_check_branch
          %1862 = sbr.rel (%p1860) target = $region112
        $region111: #{tpu_custom_call.1} parent=83 // pred_region
          %1864 = vsyncadd %s1856, 0
          %s1865 = smul.addr %s49, 2
          %s1866 = sadd.s32 %s50, %s1865
          %s1867 = smul.addr %s1866, 8
          %s1868 = scalar_lea.hbm %s17, %s1867
          %s1870 = sshll.u32 %s1859, 4
          %s1871 = int_to_ptr.vmem [resolvable:$true] %s1870
          %s1872 = sshll.u32 %s1868, 4
          %s1873 = int_to_ptr.hbm [resolvable:$true] %s1872
          %1875 = dma.vmem_to_hbm [thread:$0]  %s1871, 128, %s1873, %s1856
        $region112: #{tpu_custom_call.1} parent=83 // pred_fallthru
          _
      $region84: #{tpu_custom_call.1} parent=5 // pred_fallthru
        _
      %p1876 = scmp.le.s32.totalorder 2, %s39
      // Predicated region
      $region113: #{tpu_custom_call.1} parent=5 // pred_check
        %p1877 = pneg %p1876
      $region114: #{tpu_custom_call.1} parent=5 // pred_check_branch
        %1879 = sbr.rel (%p1877) target = $region116
      $region115: #{tpu_custom_call.1} parent=5 // pred_region
        %s1880 = ssub.s32 %s39, 2
        // Predicated region
        $region117: #{tpu_custom_call.1} parent=115 // pred_check
          %p1881 = pneg %p439
        $region118: #{tpu_custom_call.1} parent=115 // pred_check_branch
          %1883 = sbr.rel (%p1881) target = $region120
        $region119: #{tpu_custom_call.1} parent=115 // pred_region
          %s1884 = sand.u32 %s424, 1
          %s1885 = scalar_lea.sflag [#allocation10], %s1884
          %s1886 = sand.u32 %s424, 1
          %s1887 = smul.addr %s1886, 8
          %s1888 = scalar_lea.vmem [#allocation16], %s1887
          %1890 = dma.done %s1885, 128
        $region120: #{tpu_custom_call.1} parent=115 // pred_fallthru
          _
      $region116: #{tpu_custom_call.1} parent=5 // pred_fallthru
        _
    $region6: #{tpu_custom_call.1} parent=1 // loop_footer
      %s43 = sadd.s32 1, %s39
    $region7: #{tpu_custom_call.1} parent=1 // loop_footer_branch
      %38 = sbr.rel target = $region3
    $region8: #{tpu_custom_call.1} parent=1 // loop_exit
      _
    %1891 = vsyncpa [#allocation9], 1
    %s1892 = scalar_lea.sflag [#allocation9], 1
    %1893 = vsyncpa %s1892, 1
    %1894 = vsyncpa [#allocation12], 1
    %1895 = vsyncpa [#allocation15], 1
    %1896 = vsyncpa [#allocation10], 1
    %s1897 = scalar_lea.sflag [#allocation10], 1
    %1898 = vsyncpa %s1897, 1

// kernel: tpu_custom_call.1
$region0: #{tpu_custom_call.1}
  #allocation0 [shape = 'u32[]', space=smem, size = 0x4, offset = 0x4, fixed_abs, tag = 'smem constant byte address 0x4 - core index']
  #allocation1 [shape = 'u32[72,128]{1,0:T(1,128)}', space=vmem, size = 0x9000, scoped, tag = 'internal scratch']
  #allocation2 [shape = 'bf16[4,8,8]{2,1,0:T(8,128)(2,1)}', space=vmem, size = 0x2000, scoped, tag = 'scratch operand']
  #allocation3 [shape = 'f32[4,8,1]{2,1,0:T(8,128)}', space=vmem, size = 0x4000, scoped, tag = 'scratch operand']
  #allocation4 [shape = 'f32[4,8,1]{2,1,0:T(8,128)}', space=vmem, size = 0x4000, scoped, tag = 'scratch operand']
  #allocation5 [shape = 'f32[4,8,8]{2,1,0:T(8,128)}', space=vmem, size = 0x4000, scoped, tag = 'scratch operand']
  #allocation6 [shape = 's32[1]{0}', space=sflag, size = 0x4, scoped, tag = 'scoped memory for tpu_custom_call.1']
  #allocation7 [shape = 'u8[512]{0}', space=smem, size = 0x200, scoped, tag = 'prefetched SMEM operand 0']
  %s0 = inlined_call_operand.hbm [shape: s32[2], index: 0, kind: input, shape index: {}]
  %s1 = inlined_call_operand.vmem [shape: f32[2,16,32], index: 1, kind: input, shape index: {}]
  %s2 = inlined_call_operand.hbm [shape: f32[2,16,32], index: 2, kind: input, shape index: {}]
  %s3 = inlined_call_operand.vmem [shape: f32[1,32], index: 3, kind: input, shape index: {}]
  %s4 = inlined_call_operand.vmem [shape: f32[1,32], index: 4, kind: input, shape index: {}]
  %s5 = inlined_call_operand.vmem [shape: bf16[32,32], index: 5, kind: input, shape index: {}]
  %s6 = inlined_call_operand.vmem [shape: f32[1,32], index: 6, kind: input, shape index: {}]
  %s7 = inlined_call_operand.hbm [shape: bf16[32,64], index: 7, kind: input, shape index: {}]
  %s8 = inlined_call_operand.vmem [shape: f32[1,64], index: 8, kind: input, shape index: {}]
  %s9 = inlined_call_operand.hbm [shape: bf16[32,32], index: 9, kind: input, shape index: {}]
  %s10 = inlined_call_operand.vmem [shape: f32[1,32], index: 10, kind: input, shape index: {}]
  %s11 = inlined_call_operand.vmem [shape: f32[1,32], index: 11, kind: input, shape index: {}]
  %s12 = inlined_call_operand.vmem [shape: f32[1,32], index: 12, kind: input, shape index: {}]
  %s13 = inlined_call_operand.hbm [shape: bf16[32,64], index: 13, kind: input, shape index: {}]
  %s14 = inlined_call_operand.vmem [shape: f32[1,64], index: 14, kind: input, shape index: {}]
  %s15 = inlined_call_operand.vmem [shape: bf16[64,32], index: 15, kind: input, shape index: {}]
  %s16 = inlined_call_operand.vmem [shape: f32[1,32], index: 16, kind: input, shape index: {}]
  %s17 = inlined_call_operand.hbm [shape: f32[2,16,32], index: 17, kind: output, shape index: {}]
  %s18 = sld [smem:[#allocation0]]
  $region121: #{tpu_custom_call.1} parent=0
    _
  %s20 = ssub.s32 1, %s18
  %s21 = scalar_select 0, %s20, %s18
  %s23 = sshll.u32 %s0, 4
  %s24 = int_to_ptr.hbm [resolvable:$true] %s23
  %26 = dma.hbm_to_smem %s24, 16, [#allocation7], [#allocation6]
  %28 = dma.done [#allocation6], 16
  %29 = sfence
  $region1: #{tpu_custom_call.1} parent=0
    #allocation8 [shape = 'u8[8192]{0}', space=vmem, size = 0x2000, scoped, tag = 'input window, operand 2']
    #allocation9 [shape = 's32[2]{0}', space=sflag, size = 0x8, scoped, tag = 'scoped memory for tpu_custom_call.1']
    #allocation10 [shape = 's32[2]{0}', space=sflag, size = 0x8, scoped, tag = 'scoped memory for tpu_custom_call.1']
    #allocation11 [shape = 'u8[8192]{0}', space=vmem, size = 0x2000, scoped, tag = 'input window, operand 7, single buffered']
    #allocation12 [shape = 's32[1]{0}', space=sflag, size = 0x4, scoped, tag = 'scoped memory for tpu_custom_call.1']
    #allocation13 [shape = 'u8[8192]{0}', space=vmem, size = 0x2000, scoped, tag = 'input window, operand 9, single buffered']
    #allocation14 [shape = 'u8[8192]{0}', space=vmem, size = 0x2000, scoped, tag = 'input window, operand 13, single buffered']
    #allocation15 [shape = 's32[1]{0}', space=sflag, size = 0x4, scoped, tag = 'scoped memory for tpu_custom_call.1']
    #allocation16 [shape = 'u8[8192]{0}', space=vmem, size = 0x2000, scoped, tag = 'output window, operand 0']
    %30 = vsyncpa [#allocation9], 0
    %s31 = scalar_lea.sflag [#allocation9], 1
    %32 = vsyncpa %s31, 0
    %33 = vsyncpa [#allocation12], 0
    %34 = vsyncpa [#allocation15], 0
    %35 = vsyncpa [#allocation10], 0
    %s36 = scalar_lea.sflag [#allocation10], 1
    %37 = vsyncpa %s36, 0
    loop: start=0, step=1, limit=10
    $region2: #{tpu_custom_call.1} parent=1 // loop_pre_header
      _
    $region3: #{tpu_custom_call.1} parent=1 // loop_header
      %s39 = sphi 0, %s43
      %p40 = scmp.ge.s32.totalorder %s39, 10
      %s46 = sphi 0, %s65
      %s47 = sphi 0, %s61
      %s48 = sphi 0, %s57
      %s49 = sphi 0, %s46
      %s50 = sphi 0, %s47
      %s51 = sphi 0, %s48
      %s52 = sphi 0, %s49
      %s53 = sphi 0, %s50
      %s54 = sphi 0, %s51
      %s70 = sphi 0, %s72
      %s73 = sphi 0, %s70
      %s74 = sphi 0, %s73
      %s90 = sphi 0, %s74
      %s98 = sphi 0, %s100
      %s101 = sphi 0, %s98
      %s102 = sphi 0, %s101
      %s118 = sphi 0, %s102
      %s122 = sphi 0, %s122
      %s124 = sphi 0, %s122
      %s125 = sphi 0, %s124
      %s139 = sphi 0, %s125
      %s143 = sphi 0, %s143
      %s145 = sphi 0, %s143
      %s146 = sphi 0, %s145
      %s160 = sphi 0, %s146
      %s164 = sphi 0, %s164
      %s166 = sphi 0, %s164
      %s167 = sphi 0, %s166
      %s181 = sphi 0, %s167
      %s185 = sphi 0, %s185
      %s187 = sphi 0, %s185
      %s188 = sphi 0, %s187
      %s202 = sphi 0, %s188
      %s206 = sphi 0, %s206
      %s208 = sphi 0, %s206
      %s209 = sphi 0, %s208
      %s223 = sphi 0, %s209
      %s227 = sphi 0, %s227
      %s229 = sphi 0, %s227
      %s230 = sphi 0, %s229
      %s244 = sphi 0, %s230
      %s248 = sphi 0, %s248
      %s250 = sphi 0, %s248
      %s251 = sphi 0, %s250
      %s265 = sphi 0, %s251
      %s269 = sphi 0, %s269
      %s271 = sphi 0, %s269
      %s272 = sphi 0, %s271
      %s286 = sphi 0, %s272
      %s290 = sphi 0, %s290
      %s292 = sphi 0, %s290
      %s293 = sphi 0, %s292
      %s307 = sphi 0, %s293
      %s311 = sphi 0, %s311
      %s313 = sphi 0, %s311
      %s314 = sphi 0, %s313
      %s328 = sphi 0, %s314
      %s332 = sphi 0, %s332
      %s334 = sphi 0, %s332
      %s335 = sphi 0, %s334
      %s349 = sphi 0, %s335
      %s353 = sphi 0, %s353
      %s355 = sphi 0, %s353
      %s356 = sphi 0, %s355
      %s370 = sphi 0, %s356
      %s374 = sphi 0, %s374
      %s376 = sphi 0, %s374
      %s377 = sphi 0, %s376
      %s391 = sphi 0, %s377
      %s395 = sphi 0, %s395
      %s397 = sphi 0, %s395
      %s398 = sphi 0, %s397
      %s412 = sphi 0, %s398
      %s420 = sphi 0, %s422
      %s423 = sphi 0, %s420
      %s424 = sphi 0, %s423
      %s440 = sphi 0, %s424
    $region4: #{tpu_custom_call.1} parent=1 // loop_header_branch
      %42 = sbr.rel (%p40) target = $region8
    $region5: #{tpu_custom_call.1} parent=1 // loop_body
      %s44 = ssub.s32 %s39, 1
      %s45 = ssub.s32 %s39, 2
      %s55 = sadd.s32 1, %s48
      %p56 = scmp.ge.s32.totalorder %s55, 2
      %s57 = scalar_select %p56, 0, %s55
      %s58 = sadd.s32 1, %s47
      %s59 = scalar_select %p56, %s58, %s47
      %p60 = scmp.ge.s32.totalorder %s59, 2
      %s61 = scalar_select %p60, 0, %s59
      %s62 = sadd.s32 1, %s46
      %s63 = scalar_select %p60, %s62, %s46
      %p64 = scmp.ge.s32.totalorder %s63, 2
      %s65 = scalar_select %p64, 0, %s63
      %s66 = ssub.s32 %s46, %s65
      %s67 = ssub.s32 %s47, %s61
      %s68 = sor.u32 %s66, %s67
      %p69 = scmp.eq.s32.totalorder %s68, 0
      %s71 = sadd.s32 %s70, 1
      %s72 = scalar_select %p69, %s70, %s71
      %p75 = pneg %p69
      %p76 = scmp.eq.s32.totalorder %s39, 7
      %p77 = por %p75, %p76
      %p78 = scmp.ne.s32.totalorder %s70, %s73
      %p79 = scmp.eq.s32.totalorder %s39, 0
      %p80 = por %p78, %p79
      %p81 = scmp.ne.s32.totalorder %s70, %s73
      %p82 = scmp.eq.s32.totalorder %s44, 7
      %p83 = por %p81, %p82
      %p84 = scmp.ne.s32.totalorder %s73, %s74
      %p85 = scmp.eq.s32.totalorder %s44, 0
      %p86 = por %p84, %p85
      %p87 = scmp.ne.s32.totalorder %s73, %s74
      %p88 = scmp.eq.s32.totalorder %s45, 7
      %p89 = por %p87, %p88
      %p91 = scmp.ne.s32.totalorder %s74, %s90
      %p92 = scmp.eq.s32.totalorder %s45, 0
      %p93 = por %p91, %p92
      %s94 = ssub.s32 %s46, %s65
      %s95 = ssub.s32 %s48, %s57
      %s96 = sor.u32 %s94, %s95
      %p97 = scmp.eq.s32.totalorder %s96, 0
      %s99 = sadd.s32 %s98, 1
      %s100 = scalar_select %p97, %s98, %s99
      %p103 = pneg %p97
      %p104 = scmp.eq.s32.totalorder %s39, 7
      %p105 = por %p103, %p104
      %p106 = scmp.ne.s32.totalorder %s98, %s101
      %p107 = scmp.eq.s32.totalorder %s39, 0
      %p108 = por %p106, %p107
      %p109 = scmp.ne.s32.totalorder %s98, %s101
      %p110 = scmp.eq.s32.totalorder %s44, 7
      %p111 = por %p109, %p110
      %p112 = scmp.ne.s32.totalorder %s101, %s102
      %p113 = scmp.eq.s32.totalorder %s44, 0
      %p114 = por %p112, %p113
      %p115 = scmp.ne.s32.totalorder %s101, %s102
      %p116 = scmp.eq.s32.totalorder %s45, 7
      %p117 = por %p115, %p116
      %p119 = scmp.ne.s32.totalorder %s102, %s118
      %p120 = scmp.eq.s32.totalorder %s45, 0
      %p121 = por %p119, %p120
      %s123 = sadd.s32 %s122, 1
      %p126 = scmp.eq.s32.totalorder %s39, 7
      %p127 = scmp.ne.s32.totalorder %s122, %s124
      %p128 = scmp.eq.s32.totalorder %s39, 0
      %p129 = por %p127, %p128
      %p130 = scmp.ne.s32.totalorder %s122, %s124
      %p131 = scmp.eq.s32.totalorder %s44, 7
      %p132 = por %p130, %p131
      %p133 = scmp.ne.s32.totalorder %s124, %s125
      %p134 = scmp.eq.s32.totalorder %s44, 0
      %p135 = por %p133, %p134
      %p136 = scmp.ne.s32.totalorder %s124, %s125
      %p137 = scmp.eq.s32.totalorder %s45, 7
      %p138 = por %p136, %p137
      %p140 = scmp.ne.s32.totalorder %s125, %s139
      %p141 = scmp.eq.s32.totalorder %s45, 0
      %p142 = por %p140, %p141
      %s144 = sadd.s32 %s143, 1
      %p147 = scmp.eq.s32.totalorder %s39, 7
      %p148 = scmp.ne.s32.totalorder %s143, %s145
      %p149 = scmp.eq.s32.totalorder %s39, 0
      %p150 = por %p148, %p149
      %p151 = scmp.ne.s32.totalorder %s143, %s145
      %p152 = scmp.eq.s32.totalorder %s44, 7
      %p153 = por %p151, %p152
      %p154 = scmp.ne.s32.totalorder %s145, %s146
      %p155 = scmp.eq.s32.totalorder %s44, 0
      %p156 = por %p154, %p155
      %p157 = scmp.ne.s32.totalorder %s145, %s146
      %p158 = scmp.eq.s32.totalorder %s45, 7
      %p159 = por %p157, %p158
      %p161 = scmp.ne.s32.totalorder %s146, %s160
      %p162 = scmp.eq.s32.totalorder %s45, 0
      %p163 = por %p161, %p162
      %s165 = sadd.s32 %s164, 1
      %p168 = scmp.eq.s32.totalorder %s39, 7
      %p169 = scmp.ne.s32.totalorder %s164, %s166
      %p170 = scmp.eq.s32.totalorder %s39, 0
      %p171 = por %p169, %p170
      %p172 = scmp.ne.s32.totalorder %s164, %s166
      %p173 = scmp.eq.s32.totalorder %s44, 7
      %p174 = por %p172, %p173
      %p175 = scmp.ne.s32.totalorder %s166, %s167
      %p176 = scmp.eq.s32.totalorder %s44, 0
      %p177 = por %p175, %p176
      %p178 = scmp.ne.s32.totalorder %s166, %s167
      %p179 = scmp.eq.s32.totalorder %s45, 7
      %p180 = por %p178, %p179
      %p182 = scmp.ne.s32.totalorder %s167, %s181
      %p183 = scmp.eq.s32.totalorder %s45, 0
      %p184 = por %p182, %p183
      %s186 = sadd.s32 %s185, 1
      %p189 = scmp.eq.s32.totalorder %s39, 7
      %p190 = scmp.ne.s32.totalorder %s185, %s187
      %p191 = scmp.eq.s32.totalorder %s39, 0
      %p192 = por %p190, %p191
      %p193 = scmp.ne.s32.totalorder %s185, %s187
      %p194 = scmp.eq.s32.totalorder %s44, 7
      %p195 = por %p193, %p194
      %p196 = scmp.ne.s32.totalorder %s187, %s188
      %p197 = scmp.eq.s32.totalorder %s44, 0
      %p198 = por %p196, %p197
      %p199 = scmp.ne.s32.totalorder %s187, %s188
      %p200 = scmp.eq.s32.totalorder %s45, 7
      %p201 = por %p199, %p200
      %p203 = scmp.ne.s32.totalorder %s188, %s202
      %p204 = scmp.eq.s32.totalorder %s45, 0
      %p205 = por %p203, %p204
      %s207 = sadd.s32 %s206, 1
      %p210 = scmp.eq.s32.totalorder %s39, 7
      %p211 = scmp.ne.s32.totalorder %s206, %s208
      %p212 = scmp.eq.s32.totalorder %s39, 0
      %p213 = por %p211, %p212
      %p214 = scmp.ne.s32.totalorder %s206, %s208
      %p215 = scmp.eq.s32.totalorder %s44, 7
      %p216 = por %p214, %p215
      %p217 = scmp.ne.s32.totalorder %s208, %s209
      %p218 = scmp.eq.s32.totalorder %s44, 0
      %p219 = por %p217, %p218
      %p220 = scmp.ne.s32.totalorder %s208, %s209
      %p221 = scmp.eq.s32.totalorder %s45, 7
      %p222 = por %p220, %p221
      %p224 = scmp.ne.s32.totalorder %s209, %s223
      %p225 = scmp.eq.s32.totalorder %s45, 0
      %p226 = por %p224, %p225
      %s228 = sadd.s32 %s227, 1
      %p231 = scmp.eq.s32.totalorder %s39, 7
      %p232 = scmp.ne.s32.totalorder %s227, %s229
      %p233 = scmp.eq.s32.totalorder %s39, 0
      %p234 = por %p232, %p233
      %p235 = scmp.ne.s32.totalorder %s227, %s229
      %p236 = scmp.eq.s32.totalorder %s44, 7
      %p237 = por %p235, %p236
      %p238 = scmp.ne.s32.totalorder %s229, %s230
      %p239 = scmp.eq.s32.totalorder %s44, 0
      %p240 = por %p238, %p239
      %p241 = scmp.ne.s32.totalorder %s229, %s230
      %p242 = scmp.eq.s32.totalorder %s45, 7
      %p243 = por %p241, %p242
      %p245 = scmp.ne.s32.totalorder %s230, %s244
      %p246 = scmp.eq.s32.totalorder %s45, 0
      %p247 = por %p245, %p246
      %s249 = sadd.s32 %s248, 1
      %p252 = scmp.eq.s32.totalorder %s39, 7
      %p253 = scmp.ne.s32.totalorder %s248, %s250
      %p254 = scmp.eq.s32.totalorder %s39, 0
      %p255 = por %p253, %p254
      %p256 = scmp.ne.s32.totalorder %s248, %s250
      %p257 = scmp.eq.s32.totalorder %s44, 7
      %p258 = por %p256, %p257
      %p259 = scmp.ne.s32.totalorder %s250, %s251
      %p260 = scmp.eq.s32.totalorder %s44, 0
      %p261 = por %p259, %p260
      %p262 = scmp.ne.s32.totalorder %s250, %s251
      %p263 = scmp.eq.s32.totalorder %s45, 7
      %p264 = por %p262, %p263
      %p266 = scmp.ne.s32.totalorder %s251, %s265
      %p267 = scmp.eq.s32.totalorder %s45, 0
      %p268 = por %p266, %p267
      %s270 = sadd.s32 %s269, 1
      %p273 = scmp.eq.s32.totalorder %s39, 7
      %p274 = scmp.ne.s32.totalorder %s269, %s271
      %p275 = scmp.eq.s32.totalorder %s39, 0
      %p276 = por %p274, %p275
      %p277 = scmp.ne.s32.totalorder %s269, %s271
      %p278 = scmp.eq.s32.totalorder %s44, 7
      %p279 = por %p277, %p278
      %p280 = scmp.ne.s32.totalorder %s271, %s272
      %p281 = scmp.eq.s32.totalorder %s44, 0
      %p282 = por %p280, %p281
      %p283 = scmp.ne.s32.totalorder %s271, %s272
      %p284 = scmp.eq.s32.totalorder %s45, 7
      %p285 = por %p283, %p284
      %p287 = scmp.ne.s32.totalorder %s272, %s286
      %p288 = scmp.eq.s32.totalorder %s45, 0
      %p289 = por %p287, %p288
      %s291 = sadd.s32 %s290, 1
      %p294 = scmp.eq.s32.totalorder %s39, 7
      %p295 = scmp.ne.s32.totalorder %s290, %s292
      %p296 = scmp.eq.s32.totalorder %s39, 0
      %p297 = por %p295, %p296
      %p298 = scmp.ne.s32.totalorder %s290, %s292
      %p299 = scmp.eq.s32.totalorder %s44, 7
      %p300 = por %p298, %p299
      %p301 = scmp.ne.s32.totalorder %s292, %s293
      %p302 = scmp.eq.s32.totalorder %s44, 0
      %p303 = por %p301, %p302
      %p304 = scmp.ne.s32.totalorder %s292, %s293
      %p305 = scmp.eq.s32.totalorder %s45, 7
      %p306 = por %p304, %p305
      %p308 = scmp.ne.s32.totalorder %s293, %s307
      %p309 = scmp.eq.s32.totalorder %s45, 0
      %p310 = por %p308, %p309
      %s312 = sadd.s32 %s311, 1
      %p315 = scmp.eq.s32.totalorder %s39, 7
      %p316 = scmp.ne.s32.totalorder %s311, %s313
      %p317 = scmp.eq.s32.totalorder %s39, 0
      %p318 = por %p316, %p317
      %p319 = scmp.ne.s32.totalorder %s311, %s313
      %p320 = scmp.eq.s32.totalorder %s44, 7
      %p321 = por %p319, %p320
      %p322 = scmp.ne.s32.totalorder %s313, %s314
      %p323 = scmp.eq.s32.totalorder %s44, 0
      %p324 = por %p322, %p323
      %p325 = scmp.ne.s32.totalorder %s313, %s314
      %p326 = scmp.eq.s32.totalorder %s45, 7
      %p327 = por %p325, %p326
      %p329 = scmp.ne.s32.totalorder %s314, %s328
      %p330 = scmp.eq.s32.totalorder %s45, 0
      %p331 = por %p329, %p330
      %s333 = sadd.s32 %s332, 1
      %p336 = scmp.eq.s32.totalorder %s39, 7
      %p337 = scmp.ne.s32.totalorder %s332, %s334
      %p338 = scmp.eq.s32.totalorder %s39, 0
      %p339 = por %p337, %p338
      %p340 = scmp.ne.s32.totalorder %s332, %s334
      %p341 = scmp.eq.s32.totalorder %s44, 7
      %p342 = por %p340, %p341
      %p343 = scmp.ne.s32.totalorder %s334, %s335
      %p344 = scmp.eq.s32.totalorder %s44, 0
      %p345 = por %p343, %p344
      %p346 = scmp.ne.s32.totalorder %s334, %s335
      %p347 = scmp.eq.s32.totalorder %s45, 7
      %p348 = por %p346, %p347
      %p350 = scmp.ne.s32.totalorder %s335, %s349
      %p351 = scmp.eq.s32.totalorder %s45, 0
      %p352 = por %p350, %p351
      %s354 = sadd.s32 %s353, 1
      %p357 = scmp.eq.s32.totalorder %s39, 7
      %p358 = scmp.ne.s32.totalorder %s353, %s355
      %p359 = scmp.eq.s32.totalorder %s39, 0
      %p360 = por %p358, %p359
      %p361 = scmp.ne.s32.totalorder %s353, %s355
      %p362 = scmp.eq.s32.totalorder %s44, 7
      %p363 = por %p361, %p362
      %p364 = scmp.ne.s32.totalorder %s355, %s356
      %p365 = scmp.eq.s32.totalorder %s44, 0
      %p366 = por %p364, %p365
      %p367 = scmp.ne.s32.totalorder %s355, %s356
      %p368 = scmp.eq.s32.totalorder %s45, 7
      %p369 = por %p367, %p368
      %p371 = scmp.ne.s32.totalorder %s356, %s370
      %p372 = scmp.eq.s32.totalorder %s45, 0
      %p373 = por %p371, %p372
      %s375 = sadd.s32 %s374, 1
      %p378 = scmp.eq.s32.totalorder %s39, 7
      %p379 = scmp.ne.s32.totalorder %s374, %s376
      %p380 = scmp.eq.s32.totalorder %s39, 0
      %p381 = por %p379, %p380
      %p382 = scmp.ne.s32.totalorder %s374, %s376
      %p383 = scmp.eq.s32.totalorder %s44, 7
      %p384 = por %p382, %p383
      %p385 = scmp.ne.s32.totalorder %s376, %s377
      %p386 = scmp.eq.s32.totalorder %s44, 0
      %p387 = por %p385, %p386
      %p388 = scmp.ne.s32.totalorder %s376, %s377
      %p389 = scmp.eq.s32.totalorder %s45, 7
      %p390 = por %p388, %p389
      %p392 = scmp.ne.s32.totalorder %s377, %s391
      %p393 = scmp.eq.s32.totalorder %s45, 0
      %p394 = por %p392, %p393
      %s396 = sadd.s32 %s395, 1
      %p399 = scmp.eq.s32.totalorder %s39, 7
      %p400 = scmp.ne.s32.totalorder %s395, %s397
      %p401 = scmp.eq.s32.totalorder %s39, 0
      %p402 = por %p400, %p401
      %p403 = scmp.ne.s32.totalorder %s395, %s397
      %p404 = scmp.eq.s32.totalorder %s44, 7
      %p405 = por %p403, %p404
      %p406 = scmp.ne.s32.totalorder %s397, %s398
      %p407 = scmp.eq.s32.totalorder %s44, 0
      %p408 = por %p406, %p407
      %p409 = scmp.ne.s32.totalorder %s397, %s398
      %p410 = scmp.eq.s32.totalorder %s45, 7
      %p411 = por %p409, %p410
      %p413 = scmp.ne.s32.totalorder %s398, %s412
      %p414 = scmp.eq.s32.totalorder %s45, 0
      %p415 = por %p413, %p414
      %s416 = ssub.s32 %s46, %s65
      %s417 = ssub.s32 %s47, %s61
      %s418 = sor.u32 %s416, %s417
      %p419 = scmp.eq.s32.totalorder %s418, 0
      %s421 = sadd.s32 %s420, 1
      %s422 = scalar_select %p419, %s420, %s421
      %p425 = pneg %p419
      %p426 = scmp.eq.s32.totalorder %s39, 7
      %p427 = por %p425, %p426
      %p428 = scmp.ne.s32.totalorder %s420, %s423
      %p429 = scmp.eq.s32.totalorder %s39, 0
      %p430 = por %p428, %p429
      %p431 = scmp.ne.s32.totalorder %s420, %s423
      %p432 = scmp.eq.s32.totalorder %s44, 7
      %p433 = por %p431, %p432
      %p434 = scmp.ne.s32.totalorder %s423, %s424
      %p435 = scmp.eq.s32.totalorder %s44, 0
      %p436 = por %p434, %p435
      %p437 = scmp.ne.s32.totalorder %s423, %s424
      %p438 = scmp.eq.s32.totalorder %s45, 7
      %p439 = por %p437, %p438
      %p441 = scmp.ne.s32.totalorder %s424, %s440
      %p442 = scmp.eq.s32.totalorder %s45, 0
      %p443 = por %p441, %p442
      %p444 = scmp.le.s32.totalorder 1, %s39
      %p445 = scmp.lt.s32.totalorder %s39, 9
      %p446 = pnand %p444, %p445
      %p447 = pneg %p446
      // Predicated region
      $region9: #{tpu_custom_call.1} parent=5 // pred_check
        _
      $region10: #{tpu_custom_call.1} parent=5 // pred_check_branch
        %449 = sbr.rel (%p446) target = $region12
      $region11: #{tpu_custom_call.1} parent=5 // pred_region
        %s450 = ssub.s32 %s39, 1
        // Predicated region
        $region13: #{tpu_custom_call.1} parent=11 // pred_check
          %p451 = pneg %p135
        $region14: #{tpu_custom_call.1} parent=11 // pred_check_branch
          %453 = sbr.rel (%p451) target = $region16
        $region15: #{tpu_custom_call.1} parent=11 // pred_region
          _
        $region16: #{tpu_custom_call.1} parent=11 // pred_fallthru
          _
        // Predicated region
        $region17: #{tpu_custom_call.1} parent=11 // pred_check
          %p454 = pneg %p156
        $region18: #{tpu_custom_call.1} parent=11 // pred_check_branch
          %456 = sbr.rel (%p454) target = $region20
        $region19: #{tpu_custom_call.1} parent=11 // pred_region
          _
        $region20: #{tpu_custom_call.1} parent=11 // pred_fallthru
          _
        // Predicated region
        $region21: #{tpu_custom_call.1} parent=11 // pred_check
          %p457 = pneg %p177
        $region22: #{tpu_custom_call.1} parent=11 // pred_check_branch
          %459 = sbr.rel (%p457) target = $region24
        $region23: #{tpu_custom_call.1} parent=11 // pred_region
          _
        $region24: #{tpu_custom_call.1} parent=11 // pred_fallthru
          _
        // Predicated region
        $region25: #{tpu_custom_call.1} parent=11 // pred_check
          %p460 = pneg %p198
        $region26: #{tpu_custom_call.1} parent=11 // pred_check_branch
          %462 = sbr.rel (%p460) target = $region28
        $region27: #{tpu_custom_call.1} parent=11 // pred_region
          _
        $region28: #{tpu_custom_call.1} parent=11 // pred_fallthru
          _
        // Predicated region
        $region29: #{tpu_custom_call.1} parent=11 // pred_check
          %p463 = pneg %p219
        $region30: #{tpu_custom_call.1} parent=11 // pred_check_branch
          %465 = sbr.rel (%p463) target = $region32
        $region31: #{tpu_custom_call.1} parent=11 // pred_region
          %467 = vsyncadd [#allocation12], 0
          %s468 = sshll.u32 %s7, 4
          %s469 = int_to_ptr.hbm [resolvable:$true] %s468
          %s470 = sshll.u32 [#allocation11], 4
          %s471 = int_to_ptr.vmem [resolvable:$true] %s470
          %476 = dma.hbm_to_vmem [thread:$0]  %s469, 256, %s471, [#allocation12], 64, 64, 4
        $region32: #{tpu_custom_call.1} parent=11 // pred_fallthru
          _
        // Predicated region
        $region33: #{tpu_custom_call.1} parent=11 // pred_check
          %p477 = pneg %p240
        $region34: #{tpu_custom_call.1} parent=11 // pred_check_branch
          %479 = sbr.rel (%p477) target = $region36
        $region35: #{tpu_custom_call.1} parent=11 // pred_region
          _
        $region36: #{tpu_custom_call.1} parent=11 // pred_fallthru
          _
        // Predicated region
        $region37: #{tpu_custom_call.1} parent=11 // pred_check
          %p480 = pneg %p261
        $region38: #{tpu_custom_call.1} parent=11 // pred_check_branch
          %482 = sbr.rel (%p480) target = $region40
        $region39: #{tpu_custom_call.1} parent=11 // pred_region
          %484 = vsyncadd [#allocation12], 0
          %s485 = sshll.u32 %s9, 4
          %s486 = int_to_ptr.hbm [resolvable:$true] %s485
          %s487 = sshll.u32 [#allocation13], 4
          %s488 = int_to_ptr.vmem [resolvable:$true] %s487
          %493 = dma.hbm_to_vmem [thread:$0]  %s486, 256, %s488, [#allocation12], 64, 64, 4
        $region40: #{tpu_custom_call.1} parent=11 // pred_fallthru
          _
        // Predicated region
        $region41: #{tpu_custom_call.1} parent=11 // pred_check
          %p494 = pneg %p282
        $region42: #{tpu_custom_call.1} parent=11 // pred_check_branch
          %496 = sbr.rel (%p494) target = $region44
        $region43: #{tpu_custom_call.1} parent=11 // pred_region
          _
        $region44: #{tpu_custom_call.1} parent=11 // pred_fallthru
          _
        // Predicated region
        $region45: #{tpu_custom_call.1} parent=11 // pred_check
          %p497 = pneg %p303
        $region46: #{tpu_custom_call.1} parent=11 // pred_check_branch
          %499 = sbr.rel (%p497) target = $region48
        $region47: #{tpu_custom_call.1} parent=11 // pred_region
          _
        $region48: #{tpu_custom_call.1} parent=11 // pred_fallthru
          _
        // Predicated region
        $region49: #{tpu_custom_call.1} parent=11 // pred_check
          %p500 = pneg %p324
        $region50: #{tpu_custom_call.1} parent=11 // pred_check_branch
          %502 = sbr.rel (%p500) target = $region52
        $region51: #{tpu_custom_call.1} parent=11 // pred_region
          _
        $region52: #{tpu_custom_call.1} parent=11 // pred_fallthru
          _
        // Predicated region
        $region53: #{tpu_custom_call.1} parent=11 // pred_check
          %p503 = pneg %p345
        $region54: #{tpu_custom_call.1} parent=11 // pred_check_branch
          %505 = sbr.rel (%p503) target = $region56
        $region55: #{tpu_custom_call.1} parent=11 // pred_region
          %507 = vsyncadd [#allocation15], 0
          %s508 = sshll.u32 %s13, 4
          %s509 = int_to_ptr.hbm [resolvable:$true] %s508
          %s510 = sshll.u32 [#allocation14], 4
          %s511 = int_to_ptr.vmem [resolvable:$true] %s510
          %516 = dma.hbm_to_vmem [thread:$0]  %s509, 256, %s511, [#allocation15], 64, 64, 4
        $region56: #{tpu_custom_call.1} parent=11 // pred_fallthru
          _
        // Predicated region
        $region57: #{tpu_custom_call.1} parent=11 // pred_check
          %p517 = pneg %p366
        $region58: #{tpu_custom_call.1} parent=11 // pred_check_branch
          %519 = sbr.rel (%p517) target = $region60
        $region59: #{tpu_custom_call.1} parent=11 // pred_region
          _
        $region60: #{tpu_custom_call.1} parent=11 // pred_fallthru
          _
        // Predicated region
        $region61: #{tpu_custom_call.1} parent=11 // pred_check
          %p520 = pneg %p387
        $region62: #{tpu_custom_call.1} parent=11 // pred_check_branch
          %522 = sbr.rel (%p520) target = $region64
        $region63: #{tpu_custom_call.1} parent=11 // pred_region
          _
        $region64: #{tpu_custom_call.1} parent=11 // pred_fallthru
          _
        // Predicated region
        $region65: #{tpu_custom_call.1} parent=11 // pred_check
          %p523 = pneg %p408
        $region66: #{tpu_custom_call.1} parent=11 // pred_check_branch
          %525 = sbr.rel (%p523) target = $region68
        $region67: #{tpu_custom_call.1} parent=11 // pred_region
          _
        $region68: #{tpu_custom_call.1} parent=11 // pred_fallthru
          _
      $region12: #{tpu_custom_call.1} parent=5 // pred_fallthru
        _
      %p526 = scmp.lt.s32.totalorder %s39, 8
      // Predicated region
      $region69: #{tpu_custom_call.1} parent=5 // pred_check
        %p527 = pneg %p526
      $region70: #{tpu_custom_call.1} parent=5 // pred_check_branch
        %529 = sbr.rel (%p527) target = $region72
      $region71: #{tpu_custom_call.1} parent=5 // pred_region
        // Predicated region
        $region73: #{tpu_custom_call.1} parent=71 // pred_check
          %p530 = pneg %p80
        $region74: #{tpu_custom_call.1} parent=71 // pred_check_branch
          %532 = sbr.rel (%p530) target = $region76
        $region75: #{tpu_custom_call.1} parent=71 // pred_region
          %p533 = scmp.lt.s32.totalorder %s46, 1
          %s534 = scalar_select %p533, %s46, 1
          %p535 = scmp.lt.s32.totalorder %s47, 1
          %s536 = scalar_select %p535, %s47, 1
          %s537 = smul.addr %s534, 2
          %s538 = sadd.s32 %s536, %s537
          %s539 = smul.addr %s538, 8
          %s540 = scalar_lea.vmem %s1, %s539
        $region76: #{tpu_custom_call.1} parent=71 // pred_fallthru
          _
        // Predicated region
        $region77: #{tpu_custom_call.1} parent=71 // pred_check
          %p541 = pneg %p108
        $region78: #{tpu_custom_call.1} parent=71 // pred_check_branch
          %543 = sbr.rel (%p541) target = $region80
        $region79: #{tpu_custom_call.1} parent=71 // pred_region
          %s544 = sand.u32 %s98, 1
          %s545 = scalar_lea.sflag [#allocation9], %s544
          %s546 = sand.u32 %s98, 1
          %s547 = smul.addr %s546, 8
          %s548 = scalar_lea.vmem [#allocation8], %s547
          %550 = vsyncadd %s545, 0
          %s551 = smul.addr %s46, 2
          %s552 = sadd.s32 %s48, %s551
          %s553 = smul.addr %s552, 8
          %s554 = scalar_lea.hbm %s2, %s553
          %s556 = sshll.u32 %s554, 4
          %s557 = int_to_ptr.hbm [resolvable:$true] %s556
          %s558 = sshll.u32 %s548, 4
          %s559 = int_to_ptr.vmem [resolvable:$true] %s558
          %561 = dma.hbm_to_vmem [thread:$0]  %s557, 128, %s559, %s545
        $region80: #{tpu_custom_call.1} parent=71 // pred_fallthru
          _
      $region72: #{tpu_custom_call.1} parent=5 // pred_fallthru
        _
      %p562 = scmp.le.s32.totalorder 1, %s39
      %p563 = scmp.lt.s32.totalorder %s39, 9
      %p564 = pnand %p562, %p563
      %p565 = pneg %p564
      // Predicated region
      $region81: #{tpu_custom_call.1} parent=5 // pred_check
        _
      $region82: #{tpu_custom_call.1} parent=5 // pred_check_branch
        %567 = sbr.rel (%p564) target = $region84
      $region83: #{tpu_custom_call.1} parent=5 // pred_region
        %s568 = ssub.s32 %s39, 1
        %s569 = sand.u32 %s101, 1
        %s570 = scalar_lea.sflag [#allocation9], %s569
        %s571 = sand.u32 %s101, 1
        %s572 = smul.addr %s571, 8
        %s573 = scalar_lea.vmem [#allocation8], %s572
        // Predicated region
        $region85: #{tpu_custom_call.1} parent=83 // pred_check
          %p574 = pneg %p114
        $region86: #{tpu_custom_call.1} parent=83 // pred_check_branch
          %576 = sbr.rel (%p574) target = $region88
        $region87: #{tpu_custom_call.1} parent=83 // pred_region
          %578 = dma.done %s570, 128
        $region88: #{tpu_custom_call.1} parent=83 // pred_fallthru
          _
        // Predicated region
        $region89: #{tpu_custom_call.1} parent=83 // pred_check
          %p579 = pneg %p219
        $region90: #{tpu_custom_call.1} parent=83 // pred_check_branch
          %581 = sbr.rel (%p579) target = $region92
        $region91: #{tpu_custom_call.1} parent=83 // pred_region
          %583 = dma.done [#allocation12], 256
        $region92: #{tpu_custom_call.1} parent=83 // pred_fallthru
          _
        // Predicated region
        $region93: #{tpu_custom_call.1} parent=83 // pred_check
          %p584 = pneg %p261
        $region94: #{tpu_custom_call.1} parent=83 // pred_check_branch
          %586 = sbr.rel (%p584) target = $region96
        $region95: #{tpu_custom_call.1} parent=83 // pred_region
          %588 = dma.done [#allocation12], 256
        $region96: #{tpu_custom_call.1} parent=83 // pred_fallthru
          _
        // Predicated region
        $region97: #{tpu_custom_call.1} parent=83 // pred_check
          %p589 = pneg %p345
        $region98: #{tpu_custom_call.1} parent=83 // pred_check_branch
          %591 = sbr.rel (%p589) target = $region100
        $region99: #{tpu_custom_call.1} parent=83 // pred_region
          %593 = dma.done [#allocation15], 256
        $region100: #{tpu_custom_call.1} parent=83 // pred_fallthru
          _
        %p594 = scmp.lt.s32.totalorder %s49, 1
        %s595 = scalar_select %p594, %s49, 1
        %p596 = scmp.lt.s32.totalorder %s50, 1
        %s597 = scalar_select %p596, %s50, 1
        %s598 = smul.addr %s595, 2
        %s599 = sadd.s32 %s597, %s598
        %s600 = smul.addr %s599, 8
        %s601 = scalar_lea.vmem %s1, %s600
        %p602 = pneg %p86
        %p603 = pneg %p83
        %s604 = sand.u32 %s101, 1
        %s605 = scalar_lea.sflag [#allocation9], %s604
        %s606 = sand.u32 %s101, 1
        %s607 = smul.addr %s606, 8
        %s608 = scalar_lea.vmem [#allocation8], %s607
        %p609 = pneg %p114
        %p610 = pneg %p111
        %p611 = pneg %p135
        %p612 = pneg %p132
        %p613 = pneg %p156
        %p614 = pneg %p153
        %p615 = pneg %p177
        %p616 = pneg %p174
        %p617 = pneg %p198
        %p618 = pneg %p195
        %p619 = pneg %p219
        %p620 = pneg %p216
        %p621 = pneg %p240
        %p622 = pneg %p237
        %p623 = pneg %p261
        %p624 = pneg %p258
        %p625 = pneg %p282
        %p626 = pneg %p279
        %p627 = pneg %p303
        %p628 = pneg %p300
        %p629 = pneg %p324
        %p630 = pneg %p321
        %p631 = pneg %p345
        %p632 = pneg %p342
        %p633 = pneg %p366
        %p634 = pneg %p363
        %p635 = pneg %p387
        %p636 = pneg %p384
        %p637 = pneg %p408
        %p638 = pneg %p405
        %p639 = pneg %p436
        %p640 = pneg %p433
        %s641 = sand.u32 %s423, 1
        %s642 = scalar_lea.sflag [#allocation10], %s641
        %s643 = sand.u32 %s423, 1
        %s644 = smul.addr %s643, 8
        %s645 = scalar_lea.vmem [#allocation16], %s644
        %p646 = scmp.lt.s32.totalorder %s49, 1
        %s647 = scalar_select %p646, %s49, 1
        %p648 = scmp.lt.s32.totalorder %s50, 1
        %s649 = scalar_select %p648, %s50, 1
        %s650 = smul.addr %s647, 2
        %s651 = sadd.s32 %s649, %s650
        %s652 = smul.addr %s651, 8
        %s653 = scalar_lea.vmem %s1, %s652
        %p655 = scmp.eq.s32.totalorder %s51, 0
        // Predicated region
        $region101: #{tpu_custom_call.1} parent=83 // pred_check
          %p656 = pneg %p655
        $region102: #{tpu_custom_call.1} parent=83 // pred_check_branch
          %658 = sbr.rel (%p656) target = $region104
        $region103: #{tpu_custom_call.1} parent=83 // pred_region
          %v659 = vld [vmem:[%s653] sm:$0xff]
          %v660 = vld [vmem:[%s3] sm:$0x1]
          %v661 = vld [vmem:[%s4] sm:$0x1]
          %vm662 = vcmask 261120
          %v663 = vsel %vm662, %v659, 0.0
          %664 = vadd.xlane.f32.xlu0 %v663
          %v665 = vpop.xlane.xlu0 %664
          %v666 = vrcp.pop 32.0
          %v667 = vmul.f32 32.0, %v666
          %v668 = vsub.f32 1.0, %v667
          %v669 = vmul.f32 %v666, %v668
          %v670 = vadd.f32 %v666, %v669
          %vm671 = vweird.f32 %v666
          %v672 = vsel %vm671, %v666, %v670
          %v673 = vmul.f32 %v665, %v672
          %v674 = vsub.f32 %v659, %v673
          %v675 = vmul.f32 %v674, %v674
          %v676 = vsel %vm662, %v675, 0.0
          %677 = vadd.xlane.f32.xlu0 %v676
          %v678 = vpop.xlane.xlu0 %677
          %v679 = vmul.f32 %v678, %v672
          %v680 = vadd.f32 %v679, 1e-05
          %v681 = vrsqrt.pop %v680
          %v682 = vmul.f32 %v681, %v680
          %v683 = vmul.f32 %v682, %v681
          %v684 = vmul.f32 0.5, %v683
          %v685 = vsub.f32 1.5, %v684
          %v686 = vmul.f32 %v681, %v685
          %vm687 = vweird.f32 %v680
          %vm688 = vweird.f32 %v681
          %vm689 = vmor %vm687, %vm688
          %v690 = vsel %vm689, %v681, %v686
          %v691 = vmul.f32 %v674, %v690
          %v693 = vperm.slane %v660, 0
          %v695 = vmul.f32 %v691, %v693
          %v697 = vperm.slane %v661, 0
          %v699 = vadd.f32 %v695, %v697
          %v700 = vpack.c.bf16 %v699, %v699
          %v701 = vld [vmem:[%s5] sm:$0xf]
          %v702 = vld [vmem:[%s5 + $0x4] sm:$0xf]
          %v703 = vld [vmem:[%s5 + $0x8] sm:$0xf]
          %v704 = vld [vmem:[%s5 + $0xc] sm:$0xf]
          %v705 = vld [vmem:[%s6] sm:$0x1]
          %v707 = vperm.slane %v705, 0
          %v713 = vunpack.c.l.b16 %v701
          %v714 = vunpack.c.l.b16 %v702
          %v715 = vunpack.c.l.b16 %v703
          %v716 = vunpack.c.l.b16 %v704
          %v717 = vpack.c.b16 %v714, %v713
          %v718 = vpack.c.b16 %v716, %v715
          %v722 = vsel %vm662, %v700, 0
          %724 = vmatpush.bf16.msra.mxu0 0
          %725 = vmatpush.bf16.msra.mxu0 0
          %726 = vmatpush.bf16.msra.mxu0 0
          %727 = vmatpush.bf16.msra.mxu0 0
          %728 = vmatpush.bf16.msra.mxu0 0
          %729 = vmatpush.bf16.msra.mxu0 0
          %730 = vmatpush.bf16.msra.mxu0 %v718
          %731 = vmatpush.bf16.msra.mxu0 %v717
          %732 = vmatmul.bf16.gmra.mxu0 %v722
          %v733 = vpop.f32.mrf.mxu0
          %v734 = vadd.f32 %v707, %v733
          %v735 = vpop.f32.mrf.mxu0
          %736 = vdwg.mxu0
          %v737 = vmul.f32 %v734, 0.35355338
          %739 = vrot.lane.b32.xlu0 %v737, 120
          %v740 = vpop.permute.xlu0 %739
          %742 = vrot.lane.b32.xlu0 %v737, 112
          %v743 = vpop.permute.xlu0 %742
          %745 = vrot.lane.b32.xlu0 %v737, 104
          %v746 = vpop.permute.xlu0 %745
          %v748 = vrot.slane %v743, 4
          %vm749 = vcmask 1047556
          %v750 = vsel %vm749, %v748, %v737
          %v751 = vrot.slane %v737, 4
          %v752 = vsel %vm749, %v743, %v751
          %v754 = vunpack.c.l.s4 1983009808
          %v755 = vunpack.c.0.s8 %v754
          %v756 = vperm.slane %v750, %v755
          %v758 = vunpack.c.l.s4 1983009808
          %v759 = vunpack.c.0.s8 %v758
          %v760 = vperm.slane %v752, %v759
          %v761 = vrot.slane %v746, 4
          %v762 = vsel %vm749, %v761, %v740
          %v763 = vrot.slane %v740, 4
          %v764 = vsel %vm749, %v746, %v763
          %v766 = vunpack.c.l.s4 1983009808
          %v767 = vunpack.c.0.s8 %v766
          %v768 = vperm.slane %v762, %v767
          %v770 = vunpack.c.l.s4 1983009808
          %v771 = vunpack.c.0.s8 %v770
          %v772 = vperm.slane %v764, %v771
          %v773 = vrot.slane %v768, 4
          %v774 = vsel %vm749, %v773, %v756
          %v775 = vrot.slane %v756, 4
          %v776 = vsel %vm749, %v768, %v775
          %v778 = vunpack.c.l.s4 1934713408
          %v779 = vunpack.c.0.s8 %v778
          %v780 = vperm.slane %v774, %v779
          %v782 = vunpack.c.l.s4 1934713408
          %v783 = vunpack.c.0.s8 %v782
          %v784 = vperm.slane %v776, %v783
          %v785 = vrot.slane %v772, 4
          %v786 = vsel %vm749, %v785, %v760
          %v787 = vrot.slane %v760, 4
          %v788 = vsel %vm749, %v772, %v787
          %v790 = vunpack.c.l.s4 1934713408
          %v791 = vunpack.c.0.s8 %v790
          %v792 = vperm.slane %v786, %v791
          %v794 = vunpack.c.l.s4 1934713408
          %v795 = vunpack.c.0.s8 %v794
          %v796 = vperm.slane %v788, %v795
          %v797 = vrot.slane %v780, 4
          %v798 = vsel %vm749, 0.0, %v797
          %v799 = vrot.slane %v784, 4
          %v800 = vsel %vm749, 0.0, %v799
          %v801 = vrot.slane %v792, 4
          %v802 = vsel %vm749, 0.0, %v801
          %v803 = vrot.slane %v796, 4
          %v804 = vsel %vm749, 0.0, %v803
          %v805 = vsel %vm749, %v799, %v780
          %v807 = vunpack.c.l.s4 1983009808
          %v808 = vunpack.c.0.s8 %v807
          %v809 = vperm.slane %v805, %v808
          %v810 = vrot.slane %v800, 4
          %v811 = vsel %vm749, %v810, %v798
          %v813 = vunpack.c.l.s4 1983009808
          %v814 = vunpack.c.0.s8 %v813
          %v815 = vperm.slane %v811, %v814
          %v816 = vsel %vm749, %v803, %v792
          %v818 = vunpack.c.l.s4 1983009808
          %v819 = vunpack.c.0.s8 %v818
          %v820 = vperm.slane %v816, %v819
          %v821 = vrot.slane %v804, 4
          %v822 = vsel %vm749, %v821, %v802
          %v824 = vunpack.c.l.s4 1983009808
          %v825 = vunpack.c.0.s8 %v824
          %v826 = vperm.slane %v822, %v825
          %v827 = vrot.slane %v815, 4
          %v828 = vsel %vm749, %v827, %v809
          %v829 = vrot.slane %v809, 4
          %v830 = vsel %vm749, %v815, %v829
          %v832 = vunpack.c.l.s4 1934713408
          %v833 = vunpack.c.0.s8 %v832
          %v834 = vperm.slane %v828, %v833
          %v836 = vunpack.c.l.s4 1934713408
          %v837 = vunpack.c.0.s8 %v836
          %v838 = vperm.slane %v830, %v837
          %v839 = vrot.slane %v826, 4
          %v840 = vsel %vm749, %v839, %v820
          %v841 = vrot.slane %v820, 4
          %v842 = vsel %vm749, %v826, %v841
          %v844 = vunpack.c.l.s4 1934713408
          %v845 = vunpack.c.0.s8 %v844
          %v846 = vperm.slane %v840, %v845
          %v848 = vunpack.c.l.s4 1934713408
          %v849 = vunpack.c.0.s8 %v848
          %v850 = vperm.slane %v842, %v849
          %v851 = vrot.slane %v846, 4
          %v852 = vsel %vm749, %v851, %v834
          %v853 = vrot.slane %v834, 4
          %v854 = vsel %vm749, %v846, %v853
          %v855 = vrot.slane %v850, 4
          %v856 = vsel %vm749, %v855, %v838
          %v857 = vrot.slane %v838, 4
          %v858 = vsel %vm749, %v850, %v857
          %v859 = vpack.c.bf16 %v852, %v852
          %v860 = vpack.c.bf16 %v854, %v854
          %v861 = vpack.c.bf16 %v856, %v856
          %v862 = vpack.c.bf16 %v858, %v858
          %vm863 = vcmask 60416
          %864 = vst.msk [vmem:[#allocation2] sm:$0xf] %vm863, %v859
          %865 = vst.msk [vmem:[#allocation2 + $0x4] sm:$0xf] %vm863, %v860
          %866 = vst.msk [vmem:[#allocation2 + $0x8] sm:$0xf] %vm863, %v861
          %867 = vst.msk [vmem:[#allocation2 + $0xc] sm:$0xf] %vm863, %v862
          %vm868 = vcmask 7168
          %869 = vst.msk [vmem:[#allocation3] sm:$0xff] %vm868, -inf
          %870 = vst.msk [vmem:[#allocation3 + $0x8] sm:$0xff] %vm868, -inf
          %871 = vst.msk [vmem:[#allocation3 + $0x10] sm:$0xff] %vm868, -inf
          %872 = vst.msk [vmem:[#allocation3 + $0x18] sm:$0xff] %vm868, -inf
          %873 = vst.msk [vmem:[#allocation4] sm:$0xff] %vm868, 0.0
          %874 = vst.msk [vmem:[#allocation4 + $0x8] sm:$0xff] %vm868, 0.0
          %875 = vst.msk [vmem:[#allocation4 + $0x10] sm:$0xff] %vm868, 0.0
          %876 = vst.msk [vmem:[#allocation4 + $0x18] sm:$0xff] %vm868, 0.0
          %vm877 = vcmask 64512
          %878 = vst.msk [vmem:[#allocation5] sm:$0xff] %vm877, 0.0
          %879 = vst.msk [vmem:[#allocation5 + $0x8] sm:$0xff] %vm877, 0.0
          %880 = vst.msk [vmem:[#allocation5 + $0x10] sm:$0xff] %vm877, 0.0
          %881 = vst.msk [vmem:[#allocation5 + $0x18] sm:$0xff] %vm877, 0.0
        $region104: #{tpu_custom_call.1} parent=83 // pred_fallthru
          _
        %v882 = vld [vmem:[%s573] sm:$0xff]
        %v883 = vld [vmem:[%s3] sm:$0x1]
        %v884 = vld [vmem:[%s4] sm:$0x1]
        %vm885 = vcmask 261120
        %v886 = vsel %vm885, %v882, 0.0
        %887 = vadd.xlane.f32.xlu0 %v886
        %v888 = vpop.xlane.xlu0 %887
        %v889 = vrcp.pop 32.0
        %v890 = vmul.f32 32.0, %v889
        %v891 = vsub.f32 1.0, %v890
        %v892 = vmul.f32 %v889, %v891
        %v893 = vadd.f32 %v889, %v892
        %vm894 = vweird.f32 %v889
        %v895 = vsel %vm894, %v889, %v893
        %v896 = vmul.f32 %v888, %v895
        %v897 = vsub.f32 %v882, %v896
        %v898 = vmul.f32 %v897, %v897
        %v899 = vsel %vm885, %v898, 0.0
        %900 = vadd.xlane.f32.xlu0 %v899
        %v901 = vpop.xlane.xlu0 %900
        %v902 = vmul.f32 %v901, %v895
        %v903 = vadd.f32 %v902, 1e-05
        %v904 = vrsqrt.pop %v903
        %v905 = vmul.f32 %v904, %v903
        %v906 = vmul.f32 %v905, %v904
        %v907 = vmul.f32 0.5, %v906
        %v908 = vsub.f32 1.5, %v907
        %v909 = vmul.f32 %v904, %v908
        %vm910 = vweird.f32 %v903
        %vm911 = vweird.f32 %v904
        %vm912 = vmor %vm910, %vm911
        %v913 = vsel %vm912, %v904, %v909
        %v914 = vmul.f32 %v897, %v913
        %v916 = vperm.slane %v883, 0
        %v918 = vmul.f32 %v914, %v916
        %v920 = vperm.slane %v884, 0
        %v922 = vadd.f32 %v918, %v920
        %v923 = vpack.c.bf16 %v922, %v922
        %v924 = vld [vmem:[#allocation11] sm:$0xf]
        %v925 = vld [vmem:[#allocation11 + $0x4] sm:$0xf]
        %v926 = vld [vmem:[#allocation11 + $0x8] sm:$0xf]
        %v927 = vld [vmem:[#allocation11 + $0xc] sm:$0xf]
        %v928 = vld [vmem:[%s8] sm:$0x1]
        %v930 = vperm.slane %v928, 0
        %v936 = vunpack.c.l.b16 %v924
        %v937 = vunpack.c.l.b16 %v925
        %v938 = vunpack.c.l.b16 %v926
        %v939 = vunpack.c.l.b16 %v927
        %v940 = vpack.c.b16 %v937, %v936
        %v941 = vpack.c.b16 %v939, %v938
        %v945 = vsel %vm885, %v923, 0
        %947 = vmatpush.bf16.msra.mxu0 0
        %948 = vmatpush.bf16.msra.mxu0 0
        %949 = vmatpush.bf16.msra.mxu0 0
        %950 = vmatpush.bf16.msra.mxu0 0
        %951 = vmatpush.bf16.msra.mxu0 0
        %952 = vmatpush.bf16.msra.mxu0 0
        %953 = vmatpush.bf16.msra.mxu0 %v941
        %954 = vmatpush.bf16.msra.mxu0 %v940
        %955 = vmatmul.bf16.gmra.mxu0 %v945
        %v956 = vpop.f32.mrf.mxu0
        %v957 = vadd.f32 %v930, %v956
        %v958 = vpop.f32.mrf.mxu0
        %959 = vdwg.mxu0
        %v960 = vpack.c.bf16 %v957, %v957
        %962 = vrot.lane.b32.xlu0 %v960, 120
        %v963 = vpop.permute.xlu0 %962
        %964 = vrot.lane.b32.xlu0 %v960, 112
        %v965 = vpop.permute.xlu0 %964
        %966 = vrot.lane.b32.xlu0 %v960, 104
        %v967 = vpop.permute.xlu0 %966
        %v970 = vpack.i.b16 %v963, %v960
        %v971 = vshrl.u32 %v960, 16
        %v972 = vshrl.u32 %v963, 16
        %v973 = vpack.i.b16 %v972, %v971
        %v976 = vpack.i.b16 %v967, %v965
        %v977 = vshrl.u32 %v965, 16
        %v978 = vshrl.u32 %v967, 16
        %v979 = vpack.i.b16 %v978, %v977
        %v982 = vunpack.c.l.s4 1983009808
        %v983 = vunpack.c.0.s8 %v982
        %v984 = vperm.slane %v970, %v983
        %v987 = vunpack.c.l.s4 1983009808
        %v988 = vunpack.c.0.s8 %v987
        %v989 = vperm.slane %v976, %v988
        %v990 = vrot.slane %v989, 4
        %vm991 = vcmask 1047556
        %v992 = vsel %vm991, %v990, %v984
        %v993 = vrot.slane %v984, 4
        %v994 = vsel %vm991, %v989, %v993
        %v996 = vunpack.c.l.s4 1934713408
        %v997 = vunpack.c.0.s8 %v996
        %v998 = vperm.slane %v992, %v997
        %v1000 = vunpack.c.l.s4 1934713408
        %v1001 = vunpack.c.0.s8 %v1000
        %v1002 = vperm.slane %v994, %v1001
        %v1003 = vrot.slane %v998, 4
        %v1004 = vsel %vm991, 0, %v1003
        %v1005 = vrot.slane %v1002, 4
        %v1006 = vsel %vm991, 0, %v1005
        %v1009 = vunpack.c.l.s4 1983009808
        %v1010 = vunpack.c.0.s8 %v1009
        %v1011 = vperm.slane %v973, %v1010
        %v1014 = vunpack.c.l.s4 1983009808
        %v1015 = vunpack.c.0.s8 %v1014
        %v1016 = vperm.slane %v979, %v1015
        %v1017 = vrot.slane %v1016, 4
        %v1018 = vsel %vm991, %v1017, %v1011
        %v1019 = vrot.slane %v1011, 4
        %v1020 = vsel %vm991, %v1016, %v1019
        %v1022 = vunpack.c.l.s4 1934713408
        %v1023 = vunpack.c.0.s8 %v1022
        %v1024 = vperm.slane %v1018, %v1023
        %v1026 = vunpack.c.l.s4 1934713408
        %v1027 = vunpack.c.0.s8 %v1026
        %v1028 = vperm.slane %v1020, %v1027
        %v1029 = vrot.slane %v1024, 4
        %v1030 = vsel %vm991, 0, %v1029
        %v1031 = vrot.slane %v1028, 4
        %v1032 = vsel %vm991, 0, %v1031
        %v1033 = vsel %vm991, %v1005, %v998
        %v1035 = vunpack.c.l.s4 1983009808
        %v1036 = vunpack.c.0.s8 %v1035
        %v1037 = vperm.slane %v1033, %v1036
        %v1038 = vrot.slane %v1006, 4
        %v1039 = vsel %vm991, %v1038, %v1004
        %v1041 = vunpack.c.l.s4 1983009808
        %v1042 = vunpack.c.0.s8 %v1041
        %v1043 = vperm.slane %v1039, %v1042
        %v1044 = vrot.slane %v1043, 4
        %v1045 = vsel %vm991, %v1044, %v1037
        %v1047 = vunpack.c.l.s4 1934713408
        %v1048 = vunpack.c.0.s8 %v1047
        %v1049 = vperm.slane %v1045, %v1048
        %v1050 = vrot.slane %v1049, 4
        %v1051 = vsel %vm991, 0, %v1050
        %v1052 = vsel %vm991, %v1031, %v1024
        %v1054 = vunpack.c.l.s4 1983009808
        %v1055 = vunpack.c.0.s8 %v1054
        %v1056 = vperm.slane %v1052, %v1055
        %v1057 = vrot.slane %v1032, 4
        %v1058 = vsel %vm991, %v1057, %v1030
        %v1060 = vunpack.c.l.s4 1983009808
        %v1061 = vunpack.c.0.s8 %v1060
        %v1062 = vperm.slane %v1058, %v1061
        %v1063 = vrot.slane %v1062, 4
        %v1064 = vsel %vm991, %v1063, %v1056
        %v1066 = vunpack.c.l.s4 1934713408
        %v1067 = vunpack.c.0.s8 %v1066
        %v1068 = vperm.slane %v1064, %v1067
        %v1069 = vrot.slane %v1068, 4
        %v1070 = vsel %vm991, 0, %v1069
        %v1073 = vpack.i.b16 %v1068, %v1049
        %v1074 = vshrl.u32 %v1049, 16
        %v1075 = vshrl.u32 %v1068, 16
        %v1076 = vpack.i.b16 %v1075, %v1074
        %v1079 = vpack.i.b16 %v1070, %v1051
        %v1080 = vshrl.u32 %v1051, 16
        %v1081 = vshrl.u32 %v1070, 16
        %v1082 = vpack.i.b16 %v1081, %v1080
        %1083 = vrot.lane.b32.xlu0 %v960, 96
        %v1084 = vpop.permute.xlu0 %1083
        %1085 = vrot.lane.b32.xlu0 %v963, 96
        %v1086 = vpop.permute.xlu0 %1085
        %1087 = vrot.lane.b32.xlu0 %v965, 96
        %v1088 = vpop.permute.xlu0 %1087
        %1089 = vrot.lane.b32.xlu0 %v967, 96
        %v1090 = vpop.permute.xlu0 %1089
        %v1093 = vpack.i.b16 %v1086, %v1084
        %v1094 = vshrl.u32 %v1084, 16
        %v1095 = vshrl.u32 %v1086, 16
        %v1096 = vpack.i.b16 %v1095, %v1094
        %v1099 = vpack.i.b16 %v1090, %v1088
        %v1100 = vshrl.u32 %v1088, 16
        %v1101 = vshrl.u32 %v1090, 16
        %v1102 = vpack.i.b16 %v1101, %v1100
        %v1105 = vunpack.c.l.s4 1983009808
        %v1106 = vunpack.c.0.s8 %v1105
        %v1107 = vperm.slane %v1093, %v1106
        %v1110 = vunpack.c.l.s4 1983009808
        %v1111 = vunpack.c.0.s8 %v1110
        %v1112 = vperm.slane %v1099, %v1111
        %v1113 = vrot.slane %v1112, 4
        %v1114 = vsel %vm991, %v1113, %v1107
        %v1115 = vrot.slane %v1107, 4
        %v1116 = vsel %vm991, %v1112, %v1115
        %v1118 = vunpack.c.l.s4 1934713408
        %v1119 = vunpack.c.0.s8 %v1118
        %v1120 = vperm.slane %v1114, %v1119
        %v1122 = vunpack.c.l.s4 1934713408
        %v1123 = vunpack.c.0.s8 %v1122
        %v1124 = vperm.slane %v1116, %v1123
        %v1125 = vrot.slane %v1120, 4
        %v1126 = vsel %vm991, 0, %v1125
        %v1127 = vrot.slane %v1124, 4
        %v1128 = vsel %vm991, 0, %v1127
        %v1131 = vunpack.c.l.s4 1983009808
        %v1132 = vunpack.c.0.s8 %v1131
        %v1133 = vperm.slane %v1096, %v1132
        %v1136 = vunpack.c.l.s4 1983009808
        %v1137 = vunpack.c.0.s8 %v1136
        %v1138 = vperm.slane %v1102, %v1137
        %v1139 = vrot.slane %v1138, 4
        %v1140 = vsel %vm991, %v1139, %v1133
        %v1141 = vrot.slane %v1133, 4
        %v1142 = vsel %vm991, %v1138, %v1141
        %v1144 = vunpack.c.l.s4 1934713408
        %v1145 = vunpack.c.0.s8 %v1144
        %v1146 = vperm.slane %v1140, %v1145
        %v1148 = vunpack.c.l.s4 1934713408
        %v1149 = vunpack.c.0.s8 %v1148
        %v1150 = vperm.slane %v1142, %v1149
        %v1151 = vrot.slane %v1146, 4
        %v1152 = vsel %vm991, 0, %v1151
        %v1153 = vrot.slane %v1150, 4
        %v1154 = vsel %vm991, 0, %v1153
        %v1155 = vsel %vm991, %v1127, %v1120
        %v1157 = vunpack.c.l.s4 1983009808
        %v1158 = vunpack.c.0.s8 %v1157
        %v1159 = vperm.slane %v1155, %v1158
        %v1160 = vrot.slane %v1128, 4
        %v1161 = vsel %vm991, %v1160, %v1126
        %v1163 = vunpack.c.l.s4 1983009808
        %v1164 = vunpack.c.0.s8 %v1163
        %v1165 = vperm.slane %v1161, %v1164
        %v1166 = vrot.slane %v1165, 4
        %v1167 = vsel %vm991, %v1166, %v1159
        %v1169 = vunpack.c.l.s4 1934713408
        %v1170 = vunpack.c.0.s8 %v1169
        %v1171 = vperm.slane %v1167, %v1170
        %v1172 = vrot.slane %v1171, 4
        %v1173 = vsel %vm991, 0, %v1172
        %v1174 = vsel %vm991, %v1153, %v1146
        %v1176 = vunpack.c.l.s4 1983009808
        %v1177 = vunpack.c.0.s8 %v1176
        %v1178 = vperm.slane %v1174, %v1177
        %v1179 = vrot.slane %v1154, 4
        %v1180 = vsel %vm991, %v1179, %v1152
        %v1182 = vunpack.c.l.s4 1983009808
        %v1183 = vunpack.c.0.s8 %v1182
        %v1184 = vperm.slane %v1180, %v1183
        %v1185 = vrot.slane %v1184, 4
        %v1186 = vsel %vm991, %v1185, %v1178
        %v1188 = vunpack.c.l.s4 1934713408
        %v1189 = vunpack.c.0.s8 %v1188
        %v1190 = vperm.slane %v1186, %v1189
        %v1191 = vrot.slane %v1190, 4
        %v1192 = vsel %vm991, 0, %v1191
        %v1195 = vpack.i.b16 %v1190, %v1171
        %v1196 = vshrl.u32 %v1171, 16
        %v1197 = vshrl.u32 %v1190, 16
        %v1198 = vpack.i.b16 %v1197, %v1196
        %v1201 = vpack.i.b16 %v1192, %v1173
        %v1202 = vshrl.u32 %v1173, 16
        %v1203 = vshrl.u32 %v1192, 16
        %v1204 = vpack.i.b16 %v1203, %v1202
        %v1205 = vld [vmem:[#allocation2] sm:$0xf]
        %v1206 = vld [vmem:[#allocation2 + $0x4] sm:$0xf]
        %v1207 = vld [vmem:[#allocation2 + $0x8] sm:$0xf]
        %v1208 = vld [vmem:[#allocation2 + $0xc] sm:$0xf]
        %vm1209 = vcmask 64512
        %v1211 = vsel %vm1209, %v1205, 0
        %v1214 = vsel %vm1209, %v1073, 0
        %1216 = vmatpush.bf16.xpose.msra.mxu0 0
        %1217 = vmatpush.bf16.xpose.msra.mxu0 0
        %1218 = vmatpush.bf16.xpose.msra.mxu0 0
        %1219 = vmatpush.bf16.xpose.msra.mxu0 0
        %1220 = vmatpush.bf16.xpose.msra.mxu0 0
        %1221 = vmatpush.bf16.xpose.msra.mxu0 0
        %1222 = vmatpush.bf16.xpose.msra.mxu0 0
        %1223 = vmatpush.bf16.xpose.msra.mxu0 %v1214
        %1224 = vmatmul.bf16.gmra.mxu0 %v1211
        %v1225 = vpop.f32.mrf.mxu0
        %v1226 = vadd.f32 0.0, %v1225
        %v1227 = vpop.f32.mrf.mxu0
        %1228 = vdwg.mxu0
        %v1230 = vsel %vm1209, %v1206, 0
        %v1233 = vsel %vm1209, %v1076, 0
        %1235 = vmatpush.bf16.xpose.msra.mxu0 0
        %1236 = vmatpush.bf16.xpose.msra.mxu0 0
        %1237 = vmatpush.bf16.xpose.msra.mxu0 0
        %1238 = vmatpush.bf16.xpose.msra.mxu0 0
        %1239 = vmatpush.bf16.xpose.msra.mxu0 0
        %1240 = vmatpush.bf16.xpose.msra.mxu0 0
        %1241 = vmatpush.bf16.xpose.msra.mxu0 0
        %1242 = vmatpush.bf16.xpose.msra.mxu0 %v1233
        %1243 = vmatmul.bf16.gmra.mxu0 %v1230
        %v1244 = vpop.f32.mrf.mxu0
        %v1245 = vadd.f32 0.0, %v1244
        %v1246 = vpop.f32.mrf.mxu0
        %1247 = vdwg.mxu0
        %v1249 = vsel %vm1209, %v1207, 0
        %v1252 = vsel %vm1209, %v1079, 0
        %1254 = vmatpush.bf16.xpose.msra.mxu0 0
        %1255 = vmatpush.bf16.xpose.msra.mxu0 0
        %1256 = vmatpush.bf16.xpose.msra.mxu0 0
        %1257 = vmatpush.bf16.xpose.msra.mxu0 0
        %1258 = vmatpush.bf16.xpose.msra.mxu0 0
        %1259 = vmatpush.bf16.xpose.msra.mxu0 0
        %1260 = vmatpush.bf16.xpose.msra.mxu0 0
        %1261 = vmatpush.bf16.xpose.msra.mxu0 %v1252
        %1262 = vmatmul.bf16.gmra.mxu0 %v1249
        %v1263 = vpop.f32.mrf.mxu0
        %v1264 = vadd.f32 0.0, %v1263
        %v1265 = vpop.f32.mrf.mxu0
        %1266 = vdwg.mxu0
        %v1268 = vsel %vm1209, %v1208, 0
        %v1271 = vsel %vm1209, %v1082, 0
        %1273 = vmatpush.bf16.xpose.msra.mxu0 0
        %1274 = vmatpush.bf16.xpose.msra.mxu0 0
        %1275 = vmatpush.bf16.xpose.msra.mxu0 0
        %1276 = vmatpush.bf16.xpose.msra.mxu0 0
        %1277 = vmatpush.bf16.xpose.msra.mxu0 0
        %1278 = vmatpush.bf16.xpose.msra.mxu0 0
        %1279 = vmatpush.bf16.xpose.msra.mxu0 0
        %1280 = vmatpush.bf16.xpose.msra.mxu0 %v1271
        %1281 = vmatmul.bf16.gmra.mxu0 %v1268
        %v1282 = vpop.f32.mrf.mxu0
        %v1283 = vadd.f32 0.0, %v1282
        %v1284 = vpop.f32.mrf.mxu0
        %1285 = vdwg.mxu0
        %s1286 = sld [smem:[#allocation7 + %s49]]
        %s1287 = smul.u32 %s51, 8
        %v1288 = vlaneseq
        %v1289 = vand.u32 %v1288, 127
        %v1290 = vstv %s1287
        %v1291 = vadd.s32 %v1290, %v1289
        %v1292 = vstv %s1286
        %vm1293 = vcmp.ge.s32.totalorder %v1291, %v1292
        %v1294 = vsel %vm1293, 1, 0
        %vm1295 = vcmp.eq.s32.totalorder %v1294, 1
        %v1296 = vsel %vm1295, -1e+09, %v1226
        %v1297 = vsel %vm1295, -1e+09, %v1245
        %v1298 = vsel %vm1295, -1e+09, %v1264
        %v1299 = vsel %vm1295, -1e+09, %v1283
        %v1300 = vld [vmem:[#allocation3] sm:$0xff]
        %v1301 = vld [vmem:[#allocation3 + $0x8] sm:$0xff]
        %v1302 = vld [vmem:[#allocation3 + $0x10] sm:$0xff]
        %v1303 = vld [vmem:[#allocation3 + $0x18] sm:$0xff]
        %v1304 = vsel %vm1209, %v1296, -inf
        %1305 = vmax.xlane.f32.xlu0 %v1304
        %v1306 = vpop.xlane.xlu0 %1305
        %v1307 = vsel %vm1209, %v1297, -inf
        %1308 = vmax.xlane.f32.xlu0 %v1307
        %v1309 = vpop.xlane.xlu0 %1308
        %v1310 = vsel %vm1209, %v1298, -inf
        %1311 = vmax.xlane.f32.xlu0 %v1310
        %v1312 = vpop.xlane.xlu0 %1311
        %v1313 = vsel %vm1209, %v1299, -inf
        %1314 = vmax.xlane.f32.xlu0 %v1313
        %v1315 = vpop.xlane.xlu0 %1314
        %v1316 = vmax.f32 %v1300, %v1306
        %v1317 = vmax.f32 %v1301, %v1309
        %v1318 = vmax.f32 %v1302, %v1312
        %v1319 = vmax.f32 %v1303, %v1315
        %v1320 = vsub.f32 %v1300, %v1316
        %v1321 = vsub.f32 %v1301, %v1317
        %v1322 = vsub.f32 %v1302, %v1318
        %v1323 = vsub.f32 %v1303, %v1319
        %v1324 = vmul.f32 %v1320, 1.442695
        %v1325 = vpow.pop %v1324
        %v1326 = vmul.f32 %v1321, 1.442695
        %v1327 = vpow.pop %v1326
        %v1328 = vmul.f32 %v1322, 1.442695
        %v1329 = vpow.pop %v1328
        %v1330 = vmul.f32 %v1323, 1.442695
        %v1331 = vpow.pop %v1330
        %1333 = vset.pattern.permute.xlu0 0
        %1334 = vperm.xlu0 %1333, %v1316
        %v1335 = vpop.permute.xlu0 %1334
        %1338 = vset.pattern.permute.xlu0 0
        %1339 = vperm.xlu0 %1338, %v1317
        %v1340 = vpop.permute.xlu0 %1339
        %1343 = vset.pattern.permute.xlu0 0
        %1344 = vperm.xlu0 %1343, %v1318
        %v1345 = vpop.permute.xlu0 %1344
        %1348 = vset.pattern.permute.xlu0 0
        %1349 = vperm.xlu0 %1348, %v1319
        %v1350 = vpop.permute.xlu0 %1349
        %v1352 = vsub.f32 %v1296, %v1335
        %v1353 = vsub.f32 %v1297, %v1340
        %v1354 = vsub.f32 %v1298, %v1345
        %v1355 = vsub.f32 %v1299, %v1350
        %v1356 = vmul.f32 %v1352, 1.442695
        %v1357 = vpow.pop %v1356
        %v1358 = vmul.f32 %v1353, 1.442695
        %v1359 = vpow.pop %v1358
        %v1360 = vmul.f32 %v1354, 1.442695
        %v1361 = vpow.pop %v1360
        %v1362 = vmul.f32 %v1355, 1.442695
        %v1363 = vpow.pop %v1362
        %v1364 = vld [vmem:[#allocation4] sm:$0xff]
        %v1365 = vld [vmem:[#allocation4 + $0x8] sm:$0xff]
        %v1366 = vld [vmem:[#allocation4 + $0x10] sm:$0xff]
        %v1367 = vld [vmem:[#allocation4 + $0x18] sm:$0xff]
        %v1368 = vmul.f32 %v1325, %v1364
        %v1369 = vmul.f32 %v1327, %v1365
        %v1370 = vmul.f32 %v1329, %v1366
        %v1371 = vmul.f32 %v1331, %v1367
        %v1372 = vsel %vm1209, %v1357, 0.0
        %1373 = vadd.xlane.f32.xlu0 %v1372
        %v1374 = vpop.xlane.xlu0 %1373
        %v1375 = vsel %vm1209, %v1359, 0.0
        %1376 = vadd.xlane.f32.xlu0 %v1375
        %v1377 = vpop.xlane.xlu0 %1376
        %v1378 = vsel %vm1209, %v1361, 0.0
        %1379 = vadd.xlane.f32.xlu0 %v1378
        %v1380 = vpop.xlane.xlu0 %1379
        %v1381 = vsel %vm1209, %v1363, 0.0
        %1382 = vadd.xlane.f32.xlu0 %v1381
        %v1383 = vpop.xlane.xlu0 %1382
        %v1384 = vadd.f32 %v1368, %v1374
        %v1385 = vadd.f32 %v1369, %v1377
        %v1386 = vadd.f32 %v1370, %v1380
        %v1387 = vadd.f32 %v1371, %v1383
        %vm1388 = vcmask 7168
        %1389 = vst.msk [vmem:[#allocation4] sm:$0xff] %vm1388, %v1384
        %1390 = vst.msk [vmem:[#allocation4 + $0x8] sm:$0xff] %vm1388, %v1385
        %1391 = vst.msk [vmem:[#allocation4 + $0x10] sm:$0xff] %vm1388, %v1386
        %1392 = vst.msk [vmem:[#allocation4 + $0x18] sm:$0xff] %vm1388, %v1387
        %v1393 = vld [vmem:[#allocation5] sm:$0xff]
        %v1394 = vld [vmem:[#allocation5 + $0x8] sm:$0xff]
        %v1395 = vld [vmem:[#allocation5 + $0x10] sm:$0xff]
        %v1396 = vld [vmem:[#allocation5 + $0x18] sm:$0xff]
        %1398 = vset.pattern.permute.xlu0 0
        %1399 = vperm.xlu0 %1398, %v1325
        %v1400 = vpop.permute.xlu0 %1399
        %1403 = vset.pattern.permute.xlu0 0
        %1404 = vperm.xlu0 %1403, %v1327
        %v1405 = vpop.permute.xlu0 %1404
        %1408 = vset.pattern.permute.xlu0 0
        %1409 = vperm.xlu0 %1408, %v1329
        %v1410 = vpop.permute.xlu0 %1409
        %1413 = vset.pattern.permute.xlu0 0
        %1414 = vperm.xlu0 %1413, %v1331
        %v1415 = vpop.permute.xlu0 %1414
        %v1417 = vmul.f32 %v1400, %v1393
        %v1418 = vmul.f32 %v1405, %v1394
        %v1419 = vmul.f32 %v1410, %v1395
        %v1420 = vmul.f32 %v1415, %v1396
        %v1421 = vpack.c.bf16 %v1357, %v1357
        %v1422 = vpack.c.bf16 %v1359, %v1359
        %v1423 = vpack.c.bf16 %v1361, %v1361
        %v1424 = vpack.c.bf16 %v1363, %v1363
        %v1426 = vsel %vm1209, %v1421, 0
        %vm1428 = vcmask 1043456
        %v1430 = vsel %vm1428, %v1195, 0
        %1432 = vmatpush.bf16.msra.mxu0 0
        %1433 = vmatpush.bf16.msra.mxu0 0
        %1434 = vmatpush.bf16.msra.mxu0 0
        %1435 = vmatpush.bf16.msra.mxu0 0
        %1436 = vmatpush.bf16.msra.mxu0 0
        %1437 = vmatpush.bf16.msra.mxu0 0
        %1438 = vmatpush.bf16.msra.mxu0 0
        %1439 = vmatpush.bf16.msra.mxu0 %v1430
        %1440 = vmatmul.bf16.gmra.mxu0 %v1426
        %v1441 = vpop.f32.mrf.mxu0
        %v1442 = vadd.f32 0.0, %v1441
        %v1443 = vpop.f32.mrf.mxu0
        %1444 = vdwg.mxu0
        %v1446 = vsel %vm1209, %v1422, 0
        %v1449 = vsel %vm1428, %v1198, 0
        %1451 = vmatpush.bf16.msra.mxu0 0
        %1452 = vmatpush.bf16.msra.mxu0 0
        %1453 = vmatpush.bf16.msra.mxu0 0
        %1454 = vmatpush.bf16.msra.mxu0 0
        %1455 = vmatpush.bf16.msra.mxu0 0
        %1456 = vmatpush.bf16.msra.mxu0 0
        %1457 = vmatpush.bf16.msra.mxu0 0
        %1458 = vmatpush.bf16.msra.mxu0 %v1449
        %1459 = vmatmul.bf16.gmra.mxu0 %v1446
        %v1460 = vpop.f32.mrf.mxu0
        %v1461 = vadd.f32 0.0, %v1460
        %v1462 = vpop.f32.mrf.mxu0
        %1463 = vdwg.mxu0
        %v1465 = vsel %vm1209, %v1423, 0
        %v1468 = vsel %vm1428, %v1201, 0
        %1470 = vmatpush.bf16.msra.mxu0 0
        %1471 = vmatpush.bf16.msra.mxu0 0
        %1472 = vmatpush.bf16.msra.mxu0 0
        %1473 = vmatpush.bf16.msra.mxu0 0
        %1474 = vmatpush.bf16.msra.mxu0 0
        %1475 = vmatpush.bf16.msra.mxu0 0
        %1476 = vmatpush.bf16.msra.mxu0 0
        %1477 = vmatpush.bf16.msra.mxu0 %v1468
        %1478 = vmatmul.bf16.gmra.mxu0 %v1465
        %v1479 = vpop.f32.mrf.mxu0
        %v1480 = vadd.f32 0.0, %v1479
        %v1481 = vpop.f32.mrf.mxu0
        %1482 = vdwg.mxu0
        %v1484 = vsel %vm1209, %v1424, 0
        %v1487 = vsel %vm1428, %v1204, 0
        %1489 = vmatpush.bf16.msra.mxu0 0
        %1490 = vmatpush.bf16.msra.mxu0 0
        %1491 = vmatpush.bf16.msra.mxu0 0
        %1492 = vmatpush.bf16.msra.mxu0 0
        %1493 = vmatpush.bf16.msra.mxu0 0
        %1494 = vmatpush.bf16.msra.mxu0 0
        %1495 = vmatpush.bf16.msra.mxu0 0
        %1496 = vmatpush.bf16.msra.mxu0 %v1487
        %1497 = vmatmul.bf16.gmra.mxu0 %v1484
        %v1498 = vpop.f32.mrf.mxu0
        %v1499 = vadd.f32 0.0, %v1498
        %v1500 = vpop.f32.mrf.mxu0
        %1501 = vdwg.mxu0
        %v1502 = vadd.f32 %v1417, %v1442
        %v1503 = vadd.f32 %v1418, %v1461
        %v1504 = vadd.f32 %v1419, %v1480
        %v1505 = vadd.f32 %v1420, %v1499
        %1506 = vst.msk [vmem:[#allocation5] sm:$0xff] %vm1209, %v1502
        %1507 = vst.msk [vmem:[#allocation5 + $0x8] sm:$0xff] %vm1209, %v1503
        %1508 = vst.msk [vmem:[#allocation5 + $0x10] sm:$0xff] %vm1209, %v1504
        %1509 = vst.msk [vmem:[#allocation5 + $0x18] sm:$0xff] %vm1209, %v1505
        %1510 = vst.msk [vmem:[#allocation3] sm:$0xff] %vm1388, %v1316
        %1511 = vst.msk [vmem:[#allocation3 + $0x8] sm:$0xff] %vm1388, %v1317
        %1512 = vst.msk [vmem:[#allocation3 + $0x10] sm:$0xff] %vm1388, %v1318
        %1513 = vst.msk [vmem:[#allocation3 + $0x18] sm:$0xff] %vm1388, %v1319
        %p1514 = scmp.eq.s32.totalorder %s51, 1
        // Predicated region
        $region105: #{tpu_custom_call.1} parent=83 // pred_check
          %p1515 = pneg %p1514
        $region106: #{tpu_custom_call.1} parent=83 // pred_check_branch
          %1517 = sbr.rel (%p1515) target = $region108
        $region107: #{tpu_custom_call.1} parent=83 // pred_region
          %v1518 = vld [vmem:[#allocation4] sm:$0xff]
          %v1519 = vld [vmem:[#allocation4 + $0x8] sm:$0xff]
          %v1520 = vld [vmem:[#allocation4 + $0x10] sm:$0xff]
          %v1521 = vld [vmem:[#allocation4 + $0x18] sm:$0xff]
          %v1522 = vrcp.pop %v1518
          %v1523 = vrcp.pop %v1519
          %v1524 = vrcp.pop %v1520
          %v1525 = vrcp.pop %v1521
          %v1526 = vld [vmem:[#allocation5] sm:$0xff]
          %v1527 = vld [vmem:[#allocation5 + $0x8] sm:$0xff]
          %v1528 = vld [vmem:[#allocation5 + $0x10] sm:$0xff]
          %v1529 = vld [vmem:[#allocation5 + $0x18] sm:$0xff]
          %1531 = vset.pattern.permute.xlu0 0
          %1532 = vperm.xlu0 %1531, %v1522
          %v1533 = vpop.permute.xlu0 %1532
          %1536 = vset.pattern.permute.xlu0 0
          %1537 = vperm.xlu0 %1536, %v1523
          %v1538 = vpop.permute.xlu0 %1537
          %1541 = vset.pattern.permute.xlu0 0
          %1542 = vperm.xlu0 %1541, %v1524
          %v1543 = vpop.permute.xlu0 %1542
          %1546 = vset.pattern.permute.xlu0 0
          %1547 = vperm.xlu0 %1546, %v1525
          %v1548 = vpop.permute.xlu0 %1547
          %v1550 = vmul.f32 %v1526, %v1533
          %v1551 = vmul.f32 %v1527, %v1538
          %v1552 = vmul.f32 %v1528, %v1543
          %v1553 = vmul.f32 %v1529, %v1548
          %v1554 = vrot.slane %v1552, 4
          %vm1555 = vcmask 1047556
          %v1556 = vsel %vm1555, %v1554, %v1550
          %v1557 = vrot.slane %v1550, 4
          %v1558 = vsel %vm1555, %v1552, %v1557
          %v1560 = vunpack.c.l.s4 1983009808
          %v1561 = vunpack.c.0.s8 %v1560
          %v1562 = vperm.slane %v1556, %v1561
          %v1564 = vunpack.c.l.s4 1983009808
          %v1565 = vunpack.c.0.s8 %v1564
          %v1566 = vperm.slane %v1558, %v1565
          %v1567 = vrot.slane %v1553, 4
          %v1568 = vsel %vm1555, %v1567, %v1551
          %v1569 = vrot.slane %v1551, 4
          %v1570 = vsel %vm1555, %v1553, %v1569
          %v1572 = vunpack.c.l.s4 1983009808
          %v1573 = vunpack.c.0.s8 %v1572
          %v1574 = vperm.slane %v1568, %v1573
          %v1576 = vunpack.c.l.s4 1983009808
          %v1577 = vunpack.c.0.s8 %v1576
          %v1578 = vperm.slane %v1570, %v1577
          %v1579 = vrot.slane %v1574, 4
          %v1580 = vsel %vm1555, %v1579, %v1562
          %v1581 = vrot.slane %v1562, 4
          %v1582 = vsel %vm1555, %v1574, %v1581
          %v1584 = vunpack.c.l.s4 1934713408
          %v1585 = vunpack.c.0.s8 %v1584
          %v1586 = vperm.slane %v1580, %v1585
          %v1588 = vunpack.c.l.s4 1934713408
          %v1589 = vunpack.c.0.s8 %v1588
          %v1590 = vperm.slane %v1582, %v1589
          %v1591 = vrot.slane %v1578, 4
          %v1592 = vsel %vm1555, %v1591, %v1566
          %v1593 = vrot.slane %v1566, 4
          %v1594 = vsel %vm1555, %v1578, %v1593
          %v1596 = vunpack.c.l.s4 1934713408
          %v1597 = vunpack.c.0.s8 %v1596
          %v1598 = vperm.slane %v1592, %v1597
          %v1600 = vunpack.c.l.s4 1934713408
          %v1601 = vunpack.c.0.s8 %v1600
          %v1602 = vperm.slane %v1594, %v1601
          %v1603 = vrot.slane %v1586, 4
          %v1604 = vsel %vm1555, 0.0, %v1603
          %v1605 = vrot.slane %v1590, 4
          %v1606 = vsel %vm1555, 0.0, %v1605
          %v1607 = vrot.slane %v1598, 4
          %v1608 = vsel %vm1555, 0.0, %v1607
          %v1609 = vrot.slane %v1602, 4
          %v1610 = vsel %vm1555, 0.0, %v1609
          %v1611 = vsel %vm1555, %v1605, %v1586
          %v1613 = vunpack.c.l.s4 1983009808
          %v1614 = vunpack.c.0.s8 %v1613
          %v1615 = vperm.slane %v1611, %v1614
          %v1616 = vrot.slane %v1606, 4
          %v1617 = vsel %vm1555, %v1616, %v1604
          %v1619 = vunpack.c.l.s4 1983009808
          %v1620 = vunpack.c.0.s8 %v1619
          %v1621 = vperm.slane %v1617, %v1620
          %v1622 = vsel %vm1555, %v1609, %v1598
          %v1624 = vunpack.c.l.s4 1983009808
          %v1625 = vunpack.c.0.s8 %v1624
          %v1626 = vperm.slane %v1622, %v1625
          %v1627 = vrot.slane %v1610, 4
          %v1628 = vsel %vm1555, %v1627, %v1608
          %v1630 = vunpack.c.l.s4 1983009808
          %v1631 = vunpack.c.0.s8 %v1630
          %v1632 = vperm.slane %v1628, %v1631
          %v1633 = vrot.slane %v1621, 4
          %v1634 = vsel %vm1555, %v1633, %v1615
          %v1635 = vrot.slane %v1615, 4
          %v1636 = vsel %vm1555, %v1621, %v1635
          %v1638 = vunpack.c.l.s4 1934713408
          %v1639 = vunpack.c.0.s8 %v1638
          %v1640 = vperm.slane %v1634, %v1639
          %v1642 = vunpack.c.l.s4 1934713408
          %v1643 = vunpack.c.0.s8 %v1642
          %v1644 = vperm.slane %v1636, %v1643
          %v1645 = vrot.slane %v1632, 4
          %v1646 = vsel %vm1555, %v1645, %v1626
          %v1647 = vrot.slane %v1626, 4
          %v1648 = vsel %vm1555, %v1632, %v1647
          %v1650 = vunpack.c.l.s4 1934713408
          %v1651 = vunpack.c.0.s8 %v1650
          %v1652 = vperm.slane %v1646, %v1651
          %v1654 = vunpack.c.l.s4 1934713408
          %v1655 = vunpack.c.0.s8 %v1654
          %v1656 = vperm.slane %v1648, %v1655
          %v1657 = vrot.slane %v1652, 4
          %v1658 = vsel %vm1555, %v1657, %v1640
          %v1659 = vrot.slane %v1640, 4
          %v1660 = vsel %vm1555, %v1652, %v1659
          %v1661 = vrot.slane %v1656, 4
          %v1662 = vsel %vm1555, %v1661, %v1644
          %v1663 = vrot.slane %v1644, 4
          %v1664 = vsel %vm1555, %v1656, %v1663
          %1666 = vrot.lane.b32.xlu0 %v1660, 8
          %v1667 = vpop.permute.xlu0 %1666
          %1670 = vrot.lane.b32.xlu0 %v1662, 16
          %v1671 = vpop.permute.xlu0 %1670
          %1674 = vrot.lane.b32.xlu0 %v1664, 24
          %v1675 = vpop.permute.xlu0 %1674
          %v1677 = vsel %vm1209, %v1658, %v1667
          %vm1678 = vcmask 130048
          %v1679 = vsel %vm1678, %v1677, %v1671
          %vm1680 = vcmask 195584
          %v1681 = vsel %vm1680, %v1679, %v1675
          %v1682 = vpack.c.bf16 %v1681, %v1681
          %v1683 = vld [vmem:[#allocation13] sm:$0xf]
          %v1684 = vld [vmem:[#allocation13 + $0x4] sm:$0xf]
          %v1685 = vld [vmem:[#allocation13 + $0x8] sm:$0xf]
          %v1686 = vld [vmem:[#allocation13 + $0xc] sm:$0xf]
          %v1687 = vld [vmem:[%s10] sm:$0x1]
          %v1689 = vperm.slane %v1687, 0
          %v1695 = vunpack.c.l.b16 %v1683
          %v1696 = vunpack.c.l.b16 %v1684
          %v1697 = vunpack.c.l.b16 %v1685
          %v1698 = vunpack.c.l.b16 %v1686
          %v1699 = vpack.c.b16 %v1696, %v1695
          %v1700 = vpack.c.b16 %v1698, %v1697
          %v1704 = vsel %vm885, %v1682, 0
          %1706 = vmatpush.bf16.msra.mxu0 0
          %1707 = vmatpush.bf16.msra.mxu0 0
          %1708 = vmatpush.bf16.msra.mxu0 0
          %1709 = vmatpush.bf16.msra.mxu0 0
          %1710 = vmatpush.bf16.msra.mxu0 0
          %1711 = vmatpush.bf16.msra.mxu0 0
          %1712 = vmatpush.bf16.msra.mxu0 %v1700
          %1713 = vmatpush.bf16.msra.mxu0 %v1699
          %1714 = vmatmul.bf16.gmra.mxu0 %v1704
          %v1715 = vpop.f32.mrf.mxu0
          %v1716 = vadd.f32 %v1689, %v1715
          %v1717 = vpop.f32.mrf.mxu0
          %1718 = vdwg.mxu0
          %v1719 = vld [vmem:[%s653] sm:$0xff]
          %v1720 = vadd.f32 %v1719, %v1716
          %v1721 = vld [vmem:[%s11] sm:$0x1]
          %v1722 = vld [vmem:[%s12] sm:$0x1]
          %v1723 = vsel %vm885, %v1720, 0.0
          %1724 = vadd.xlane.f32.xlu0 %v1723
          %v1725 = vpop.xlane.xlu0 %1724
          %v1726 = vmul.f32 %v1725, %v895
          %v1727 = vsub.f32 %v1720, %v1726
          %v1728 = vmul.f32 %v1727, %v1727
          %v1729 = vsel %vm885, %v1728, 0.0
          %1730 = vadd.xlane.f32.xlu0 %v1729
          %v1731 = vpop.xlane.xlu0 %1730
          %v1732 = vmul.f32 %v1731, %v895
          %v1733 = vadd.f32 %v1732, 1e-05
          %v1734 = vrsqrt.pop %v1733
          %v1735 = vmul.f32 %v1734, %v1733
          %v1736 = vmul.f32 %v1735, %v1734
          %v1737 = vmul.f32 0.5, %v1736
          %v1738 = vsub.f32 1.5, %v1737
          %v1739 = vmul.f32 %v1734, %v1738
          %vm1740 = vweird.f32 %v1733
          %vm1741 = vweird.f32 %v1734
          %vm1742 = vmor %vm1740, %vm1741
          %v1743 = vsel %vm1742, %v1734, %v1739
          %v1744 = vmul.f32 %v1727, %v1743
          %v1746 = vperm.slane %v1721, 0
          %v1748 = vmul.f32 %v1744, %v1746
          %v1750 = vperm.slane %v1722, 0
          %v1752 = vadd.f32 %v1748, %v1750
          %v1753 = vpack.c.bf16 %v1752, %v1752
          %v1754 = vld [vmem:[#allocation14] sm:$0xf]
          %v1755 = vld [vmem:[#allocation14 + $0x4] sm:$0xf]
          %v1756 = vld [vmem:[#allocation14 + $0x8] sm:$0xf]
          %v1757 = vld [vmem:[#allocation14 + $0xc] sm:$0xf]
          %v1758 = vld [vmem:[%s14] sm:$0x1]
          %v1760 = vperm.slane %v1758, 0
          %v1766 = vunpack.c.l.b16 %v1754
          %v1767 = vunpack.c.l.b16 %v1755
          %v1768 = vunpack.c.l.b16 %v1756
          %v1769 = vunpack.c.l.b16 %v1757
          %v1770 = vpack.c.b16 %v1767, %v1766
          %v1771 = vpack.c.b16 %v1769, %v1768
          %v1775 = vsel %vm885, %v1753, 0
          %1777 = vmatpush.bf16.msra.mxu0 0
          %1778 = vmatpush.bf16.msra.mxu0 0
          %1779 = vmatpush.bf16.msra.mxu0 0
          %1780 = vmatpush.bf16.msra.mxu0 0
          %1781 = vmatpush.bf16.msra.mxu0 0
          %1782 = vmatpush.bf16.msra.mxu0 0
          %1783 = vmatpush.bf16.msra.mxu0 %v1771
          %1784 = vmatpush.bf16.msra.mxu0 %v1770
          %1785 = vmatmul.bf16.gmra.mxu0 %v1775
          %v1786 = vpop.f32.mrf.mxu0
          %v1787 = vadd.f32 %v1760, %v1786
          %v1788 = vpop.f32.mrf.mxu0
          %1789 = vdwg.mxu0
          %v1790 = vmul.f32 %v1787, %v1787
          %v1791 = vmul.f32 %v1790, %v1787
          %v1792 = vmul.f32 %v1787, 0.5
          %v1793 = vmul.f32 %v1791, 0.044715
          %v1794 = vadd.f32 %v1787, %v1793
          %v1795 = vmul.f32 %v1794, 0.7978846
          %v1796 = vtanh.pop %v1795
          %v1797 = vadd.f32 %v1796, 1.0
          %v1798 = vmul.f32 %v1792, %v1797
          %v1799 = vpack.c.bf16 %v1798, %v1798
          %v1800 = vld [vmem:[%s15] sm:$0xf]
          %v1801 = vld [vmem:[%s15 + $0x4] sm:$0xf]
          %v1802 = vld [vmem:[%s15 + $0x8] sm:$0xf]
          %v1803 = vld [vmem:[%s15 + $0xc] sm:$0xf]
          %v1804 = vld [vmem:[%s15 + $0x10] sm:$0xf]
          %v1805 = vld [vmem:[%s15 + $0x14] sm:$0xf]
          %v1806 = vld [vmem:[%s15 + $0x18] sm:$0xf]
          %v1807 = vld [vmem:[%s15 + $0x1c] sm:$0xf]
          %v1808 = vld [vmem:[%s16] sm:$0x1]
          %v1810 = vperm.slane %v1808, 0
          %v1820 = vunpack.c.l.b16 %v1800
          %v1821 = vunpack.c.l.b16 %v1801
          %v1822 = vunpack.c.l.b16 %v1802
          %v1823 = vunpack.c.l.b16 %v1803
          %v1824 = vunpack.c.l.b16 %v1804
          %v1825 = vunpack.c.l.b16 %v1805
          %v1826 = vunpack.c.l.b16 %v1806
          %v1827 = vunpack.c.l.b16 %v1807
          %v1828 = vpack.c.b16 %v1821, %v1820
          %v1829 = vpack.c.b16 %v1823, %v1822
          %v1830 = vpack.c.b16 %v1825, %v1824
          %v1831 = vpack.c.b16 %v1827, %v1826
          %vm1836 = vcmask 523264
          %v1838 = vsel %vm1836, %v1799, 0
          %1840 = vmatpush.bf16.msra.mxu0 0
          %1841 = vmatpush.bf16.msra.mxu0 0
          %1842 = vmatpush.bf16.msra.mxu0 0
          %1843 = vmatpush.bf16.msra.mxu0 0
          %1844 = vmatpush.bf16.msra.mxu0 %v1831
          %1845 = vmatpush.bf16.msra.mxu0 %v1830
          %1846 = vmatpush.bf16.msra.mxu0 %v1829
          %1847 = vmatpush.bf16.msra.mxu0 %v1828
          %1848 = vmatmul.bf16.gmra.mxu0 %v1838
          %v1849 = vpop.f32.mrf.mxu0
          %v1850 = vadd.f32 %v1810, %v1849
          %v1851 = vpop.f32.mrf.mxu0
          %1852 = vdwg.mxu0
          %v1853 = vadd.f32 %v1720, %v1850
          %1854 = vst.msk [vmem:[%s645] sm:$0xff] %vm885, %v1853
        $region108: #{tpu_custom_call.1} parent=83 // pred_fallthru
          _
        %s1855 = sand.u32 %s423, 1
        %s1856 = scalar_lea.sflag [#allocation10], %s1855
        %s1857 = sand.u32 %s423, 1
        %s1858 = smul.addr %s1857, 8
        %s1859 = scalar_lea.vmem [#allocation16], %s1858
        // Predicated region
        $region109: #{tpu_custom_call.1} parent=83 // pred_check
          %p1860 = pneg %p433
        $region110: #{tpu_custom_call.1} parent=83 // pred_check_branch
          %1862 = sbr.rel (%p1860) target = $region112
        $region111: #{tpu_custom_call.1} parent=83 // pred_region
          %1864 = vsyncadd %s1856, 0
          %s1865 = smul.addr %s49, 2
          %s1866 = sadd.s32 %s50, %s1865
          %s1867 = smul.addr %s1866, 8
          %s1868 = scalar_lea.hbm %s17, %s1867
          %s1870 = sshll.u32 %s1859, 4
          %s1871 = int_to_ptr.vmem [resolvable:$true] %s1870
          %s1872 = sshll.u32 %s1868, 4
          %s1873 = int_to_ptr.hbm [resolvable:$true] %s1872
          %1875 = dma.vmem_to_hbm [thread:$0]  %s1871, 128, %s1873, %s1856
        $region112: #{tpu_custom_call.1} parent=83 // pred_fallthru
          _
      $region84: #{tpu_custom_call.1} parent=5 // pred_fallthru
        _
      %p1876 = scmp.le.s32.totalorder 2, %s39
      // Predicated region
      $region113: #{tpu_custom_call.1} parent=5 // pred_check
        %p1877 = pneg %p1876
      $region114: #{tpu_custom_call.1} parent=5 // pred_check_branch
        %1879 = sbr.rel (%p1877) target = $region116
      $region115: #{tpu_custom_call.1} parent=5 // pred_region
        %s1880 = ssub.s32 %s39, 2
        // Predicated region
        $region117: #{tpu_custom_call.1} parent=115 // pred_check
          %p1881 = pneg %p439
        $region118: #{tpu_custom_call.1} parent=115 // pred_check_branch
          %1883 = sbr.rel (%p1881) target = $region120
        $region119: #{tpu_custom_call.1} parent=115 // pred_region
          %s1884 = sand.u32 %s424, 1
          %s1885 = scalar_lea.sflag [#allocation10], %s1884
          %s1886 = sand.u32 %s424, 1
          %s1887 = smul.addr %s1886, 8
          %s1888 = scalar_lea.vmem [#allocation16], %s1887
          %1890 = dma.done %s1885, 128
        $region120: #{tpu_custom_call.1} parent=115 // pred_fallthru
          _
      $region116: #{tpu_custom_call.1} parent=5 // pred_fallthru
        _
    $region6: #{tpu_custom_call.1} parent=1 // loop_footer
      %s43 = sadd.s32 1, %s39
    $region7: #{tpu_custom_call.1} parent=1 // loop_footer_branch
      %38 = sbr.rel target = $region3
    $region8: #{tpu_custom_call.1} parent=1 // loop_exit
      _
    %1891 = vsyncpa [#allocation9], 1
    %s1892 = scalar_lea.sflag [#allocation9], 1
    %1893 = vsyncpa %s1892, 1
    %1894 = vsyncpa [#allocation12], 1
    %1895 = vsyncpa [#allocation15], 1
    %1896 = vsyncpa [#allocation10], 1
    %s1897 = scalar_lea.sflag [#allocation10], 1
    %1898 = vsyncpa %s1897, 1

</llo_original>
